<compile_context>
chip_gen: v7x
topology: tpu7x:2x2x1
jax: 0.10.0
libtpu: 0.0.40
codegen_flags: <defaults>
</compile_context>

<pallas_src>
import functools

import jax
import jax.numpy as jnp
import numpy as np
from jax import lax
from jax.experimental import pallas as pl
from jax.experimental.pallas import tpu as pltpu

NEG_SLOPE = 0.1
BN_EPS = 1e-5

# Scoped VMEM request: per-image blocks here are < a few MiB even at real
# WideResNet stage-1 widths; 32 MiB is safe on v5e/v6e (128 MiB physical) and
# v7x (64 MiB physical) while keeping double-buffering alive.
VMEM_LIMIT_BYTES = 32 * 1024 * 1024


def _leaky(v):
    return jnp.where(v >= 0, v, NEG_SLOPE * v)


def _tap(pad_ref, ky, kx, Ho, Wo, stride):
    """Load tap (ky, kx) of a 3x3 conv from the zero-padded VMEM image."""
    if stride == 1:
        return pad_ref[ky:ky + Ho, kx:kx + Wo, :]
    return pad_ref[pl.ds(ky, Ho, stride), pl.ds(kx, Wo, stride), :]


# --------------------------------------------------------------------------
# Kernel A: conv1 (3x3, stride s) with fused bn1+LeakyReLU prologue,
#           bn2+LeakyReLU epilogue, and (optionally) the fused 1x1 shortcut.
# One grid step == one image; no HBM im2col, no separate elementwise pass.
# --------------------------------------------------------------------------
def _make_conv1_kernel(H, W, Cin, Cout, stride, apply_act, with_shortcut):
    Ho = (H - 1) // stride + 1
    Wo = (W - 1) // stride + 1

    def kernel(x_ref, w_ref, s1_ref, b1_ref, s2_ref, b2_ref, *rest):
        if with_shortcut:
            ws_ref, out_ref, short_ref, pad_ref = rest
        else:
            out_ref, pad_ref = rest

        x = x_ref[0]                                          # (H, W, Cin) f32
        if apply_act:
            # Fused bn1 + LeakyReLU prologue (inference-form BN affine).
            a = _leaky(x * s1_ref[...] + b1_ref[...])
        else:
            # (in!=out, activate_before_residual=False): conv1 and the shortcut
            # consume the ORIGINAL x; the activation is never materialized.
            a = x

        # Zero-padded activated image lives only in VMEM scratch.
        pad_ref[...] = jnp.zeros(pad_ref.shape, pad_ref.dtype)
        pad_ref[1:H + 1, 1:W + 1, :] = a

        # conv1 = 9 accumulated tap matmuls; bf16 MXU operands, f32 accumulation.
        acc = jnp.zeros((Ho * Wo, Cout), jnp.float32)
        for k in range(9):
            ky, kx = k // 3, k % 3
            t = _tap(pad_ref, ky, kx, Ho, Wo, stride)          # (Ho, Wo, Cin)
            lhs = t.reshape(Ho * Wo, Cin).astype(jnp.bfloat16)
            acc = acc + jnp.dot(lhs, w_ref[k],
                                preferred_element_type=jnp.float32)

        # Fused bn2 + LeakyReLU epilogue.
        out = _leaky(acc * s2_ref[...] + b2_ref[...])
        out_ref[0] = out.reshape(Ho, Wo, Cout).astype(out_ref.dtype)

        if with_shortcut:
            # 1x1 shortcut conv (stride s, pad 0) fused here: it reads the same
            # (activated or raw) image already resident in VMEM at the centre
            # taps (padded coords 1 + oy*s, 1 + ox*s).
            si = _tap(pad_ref, 1, 1, Ho, Wo, stride)           # (Ho, Wo, Cin)
            sc = jnp.dot(si.reshape(Ho * Wo, Cin).astype(jnp.bfloat16),
                         ws_ref[...], preferred_element_type=jnp.float32)
            short_ref[0] = sc.reshape(Ho, Wo, Cout).astype(short_ref.dtype)

    return kernel, Ho, Wo


# --------------------------------------------------------------------------
# Kernel B: conv2 (3x3, stride 1) with fused residual-add epilogue.
# --------------------------------------------------------------------------
def _make_conv2_kernel(Ho, Wo, C):
    def kernel(h_ref, w_ref, r_ref, y_ref, pad_ref):
        h = h_ref[0]                                           # (Ho, Wo, C) f32
        pad_ref[...] = jnp.zeros(pad_ref.shape, pad_ref.dtype)
        pad_ref[1:Ho + 1, 1:Wo + 1, :] = h

        acc = jnp.zeros((Ho * Wo, C), jnp.float32)
        for k in range(9):
            ky, kx = k // 3, k % 3
            t = pad_ref[ky:ky + Ho, kx:kx + Wo, :]
            lhs = t.reshape(Ho * Wo, C).astype(jnp.bfloat16)
            acc = acc + jnp.dot(lhs, w_ref[k],
                                preferred_element_type=jnp.float32)

        y = acc.reshape(Ho, Wo, C) + r_ref[0]                  # fused residual add
        y_ref[0] = y.astype(y_ref.dtype)

    return kernel


# --------------------------------------------------------------------------
# One-time parameter preparation (hoisted out of the per-call hot path):
# BN folding (inference form), weight re-layout and bf16 cast.
# --------------------------------------------------------------------------
def prepare_params(params):
    Cout, Cin, _, _ = params["conv1_w"].shape
    s1 = params["bn1_gamma"] / jnp.sqrt(params["bn1_var"] + BN_EPS)
    b1 = params["bn1_beta"] - params["bn1_mean"] * s1
    s2 = params["bn2_gamma"] / jnp.sqrt(params["bn2_var"] + BN_EPS)
    b2 = params["bn2_beta"] - params["bn2_mean"] * s2
    prep = {
        "s1": s1.reshape(1, Cin).astype(jnp.float32),
        "b1": b1.reshape(1, Cin).astype(jnp.float32),
        "s2": s2.reshape(1, Cout).astype(jnp.float32),
        "b2": b2.reshape(1, Cout).astype(jnp.float32),
        # (Cout, Cin, 3, 3) -> (ky, kx, Cin, Cout) -> (9, Cin, Cout), bf16 for MXU.
        "w1": jnp.transpose(params["conv1_w"], (2, 3, 1, 0))
                 .reshape(9, Cin, Cout).astype(jnp.bfloat16),
        "w2": jnp.transpose(params["conv2_w"], (2, 3, 1, 0))
                 .reshape(9, Cout, Cout).astype(jnp.bfloat16),
    }
    if "convS_w" in params:
        prep["ws"] = params["convS_w"].reshape(Cout, Cin).T.astype(jnp.bfloat16)
    return prep


# --------------------------------------------------------------------------
# BasicBlock forward (2 pallas_calls total).
# --------------------------------------------------------------------------
@functools.partial(jax.jit,
                   static_argnames=("stride", "drop_rate",
                                    "activate_before_residual"))
def basic_block_forward(x_nchw, prep, *, stride, drop_rate=0.0,
                        activate_before_residual=False):
    assert drop_rate == 0.0  # TODO(synk): dropout not implemented.
    _, Cin, Cout = prep["w1"].shape
    equal = Cin == Cout
    if equal:
        assert stride == 1  # identity shortcut needs matching spatial dims

    x = jnp.transpose(x_nchw, (0, 2, 3, 1)).astype(jnp.float32)   # NCHW -> NHWC
    N, H, W, _ = x.shape

    apply_act = equal or activate_before_residual
    with_shortcut = not equal

    conv1_kernel, Ho, Wo = _make_conv1_kernel(H, W, Cin, Cout, stride,
                                              apply_act, with_shortcut)

    cp = pltpu.CompilerParams(dimension_semantics=("parallel",),
                              vmem_limit_bytes=VMEM_LIMIT_BYTES)

    in_specs = [
        pl.BlockSpec((1, H, W, Cin), lambda n: (n, 0, 0, 0)),
        pl.BlockSpec((9, Cin, Cout), lambda n: (0, 0, 0)),
        pl.BlockSpec((1, Cin), lambda n: (0, 0)),
        pl.BlockSpec((1, Cin), lambda n: (0, 0)),
        pl.BlockSpec((1, Cout), lambda n: (0, 0)),
        pl.BlockSpec((1, Cout), lambda n: (0, 0)),
    ]
    args = [x, prep["w1"], prep["s1"], prep["b1"], prep["s2"], prep["b2"]]
    out_spec = pl.BlockSpec((1, Ho, Wo, Cout), lambda n: (n, 0, 0, 0))
    scratch1 = [pltpu.VMEM((H + 2, W + 2, Cin), jnp.float32)]

    if with_shortcut:
        in_specs.append(pl.BlockSpec((Cin, Cout), lambda n: (0, 0)))
        args.append(prep["ws"])
        out1, residual = pl.pallas_call(
            conv1_kernel,
            out_shape=(jax.ShapeDtypeStruct((N, Ho, Wo, Cout), jnp.float32),
                       jax.ShapeDtypeStruct((N, Ho, Wo, Cout), jnp.float32)),
            grid=(N,),
            in_specs=in_specs,
            out_specs=(out_spec, out_spec),
            scratch_shapes=scratch1,
            compiler_params=cp,
        )(*args)
    else:
        out1 = pl.pallas_call(
            conv1_kernel,
            out_shape=jax.ShapeDtypeStruct((N, Ho, Wo, Cout), jnp.float32),
            grid=(N,),
            in_specs=in_specs,
            out_specs=out_spec,
            scratch_shapes=scratch1,
            compiler_params=cp,
        )(*args)
        residual = x  # identity shortcut (equal in/out, stride 1)

    conv2_kernel = _make_conv2_kernel(Ho, Wo, Cout)
    y = pl.pallas_call(
        conv2_kernel,
        out_shape=jax.ShapeDtypeStruct((N, Ho, Wo, Cout), jnp.float32),
        grid=(N,),
        in_specs=[pl.BlockSpec((1, Ho, Wo, Cout), lambda n: (n, 0, 0, 0)),
                  pl.BlockSpec((9, Cout, Cout), lambda n: (0, 0, 0)),
                  pl.BlockSpec((1, Ho, Wo, Cout), lambda n: (n, 0, 0, 0))],
        out_specs=pl.BlockSpec((1, Ho, Wo, Cout), lambda n: (n, 0, 0, 0)),
        scratch_shapes=[pltpu.VMEM((Ho + 2, Wo + 2, Cout), jnp.float32)],
        compiler_params=cp,
    )(out1, prep["w2"], residual)

    return jnp.transpose(y, (0, 3, 1, 2))                        # back to NCHW


# ---------------- pure-JAX reference (for correctness check) -----------------
def ref_forward(x, params, *, stride, activate_before_residual=False):
    def bn(v, g, b, m, var):
        sh = (1, -1, 1, 1)
        return ((v - m.reshape(sh)) / jnp.sqrt(var.reshape(sh) + BN_EPS)
                * g.reshape(sh) + b.reshape(sh))

    def conv(v, w, s, p):
        return lax.conv_general_dilated(v, w, (s, s), [(p, p), (p, p)],
                                        dimension_numbers=("NCHW", "OIHW", "NCHW"))

    in_p = x.shape[1]
    out_p = params["conv1_w"].shape[0]
    equal = in_p == out_p
    if (not equal) and activate_before_residual:
        x = _leaky(bn(x, params["bn1_gamma"], params["bn1_beta"],
                      params["bn1_mean"], params["bn1_var"]))
        out = x
    else:
        out = _leaky(bn(x, params["bn1_gamma"], params["bn1_beta"],
                        params["bn1_mean"], params["bn1_var"]))
    h = conv(out if equal else x, params["conv1_w"], stride, 1)
    h = _leaky(bn(h, params["bn2_gamma"], params["bn2_beta"],
                  params["bn2_mean"], params["bn2_var"]))
    h = conv(h, params["conv2_w"], 1, 1)
    short = x if equal else conv(x, params["convS_w"], stride, 0)
    return short + h


# ---------------- deterministic parameter init --------------------------------
def init_params(key, in_planes, out_planes):
    ks = jax.random.split(key, 11)
    p = {
        "bn1_gamma": jax.random.uniform(ks[0], (in_planes,), jnp.float32, 0.8, 1.2),
        "bn1_beta": 0.1 * jax.random.normal(ks[1], (in_planes,), jnp.float32),
        "bn1_mean": 0.1 * jax.random.normal(ks[2], (in_planes,), jnp.float32),
        "bn1_var": jax.random.uniform(ks[3], (in_planes,), jnp.float32, 0.5, 1.5),
        "bn2_gamma": jax.random.uniform(ks[4], (out_planes,), jnp.float32, 0.8, 1.2),
        "bn2_beta": 0.1 * jax.random.normal(ks[5], (out_planes,), jnp.float32),
        "bn2_mean": 0.1 * jax.random.normal(ks[6], (out_planes,), jnp.float32),
        "bn2_var": jax.random.uniform(ks[7], (out_planes,), jnp.float32, 0.5, 1.5),
        "conv1_w": jax.random.normal(ks[8], (out_planes, in_planes, 3, 3),
                                     jnp.float32) * (2.0 / (9 * in_planes)) ** 0.5,
        "conv2_w": jax.random.normal(ks[9], (out_planes, out_planes, 3, 3),
                                     jnp.float32) * (2.0 / (9 * out_planes)) ** 0.5,
    }
    if in_planes != out_planes:
        p["convS_w"] = jax.random.normal(ks[10], (out_planes, in_planes, 1, 1),
                                         jnp.float32) * (2.0 / in_planes) ** 0.5
    return p


if __name__ == "__main__":
    key = jax.random.PRNGKey(0)
    kx1, kx2, kp1, kp2 = jax.random.split(key, 4)

    # bf16 MXU operands vs f32 reference -> slightly looser tolerance.
    TOL = dict(rtol=3e-2, atol=3e-2)

    # Case 1: in_planes != out_planes, stride 2, activate_before_residual=True
    x1 = jax.random.normal(kx1, (2, 4, 16, 16), jnp.float32)
    p1 = init_params(kp1, 4, 8)
    prep1 = prepare_params(p1)
    y1 = jax.block_until_ready(
        basic_block_forward(x1, prep1, stride=2, activate_before_residual=True))
    r1 = ref_forward(x1, p1, stride=2, activate_before_residual=True)
    np.testing.assert_allclose(np.asarray(y1), np.asarray(r1), **TOL)

    # Case 2: in_planes != out_planes, stride 2, activate_before_residual=False
    y1b = jax.block_until_ready(
        basic_block_forward(x1, prep1, stride=2, activate_before_residual=False))
    r1b = ref_forward(x1, p1, stride=2, activate_before_residual=False)
    np.testing.assert_allclose(np.asarray(y1b), np.asarray(r1b), **TOL)

    # Case 3: in_planes == out_planes, stride 1 (identity shortcut)
    x2 = jax.random.normal(kx2, (2, 8, 16, 16), jnp.float32)
    p2 = init_params(kp2, 8, 8)
    prep2 = prepare_params(p2)
    y2 = jax.block_until_ready(
        basic_block_forward(x2, prep2, stride=1, activate_before_residual=False))
    r2 = ref_forward(x2, p2, stride=1, activate_before_residual=False)
    np.testing.assert_allclose(np.asarray(y2), np.asarray(r2), **TOL)

    print("KERNEL_OK")
</pallas_src>

<mosaic_0001>
module attributes {stable_mosaic.version = 11 : i64} {
  func.func @kernel(%arg0: i32, %arg1: memref<1x16x16x4xf32, #tpu.memory_space<vmem>>, %arg2: memref<9x4x8xbf16, #tpu.memory_space<vmem>>, %arg3: memref<1x4xf32, #tpu.memory_space<vmem>>, %arg4: memref<1x4xf32, #tpu.memory_space<vmem>>, %arg5: memref<1x8xf32, #tpu.memory_space<vmem>>, %arg6: memref<1x8xf32, #tpu.memory_space<vmem>>, %arg7: memref<4x8xbf16, #tpu.memory_space<vmem>>, %arg8: memref<1x8x8x8xf32, #tpu.memory_space<vmem>>, %arg9: memref<1x8x8x8xf32, #tpu.memory_space<vmem>>, %arg10: memref<18x18x4xf32, #tpu.memory_space<vmem>>) attributes {dimension_semantics = [#tpu.dimension_semantics<parallel>], iteration_bounds = array<i64: 2>, scalar_prefetch = 0 : i64, scratch_operands = 1 : i64, tpu.core_type = #tpu.core_type<tc>, window_params = [{transform_indices = @transform_0, window_bounds = array<i64: 1, 16, 16, 4>}, {pipeline_mode = #tpu.pipeline_mode<synchronous>, transform_indices = @transform_1, window_bounds = array<i64: 9, 4, 8>}, {pipeline_mode = #tpu.pipeline_mode<synchronous>, transform_indices = @transform_2, window_bounds = array<i64: 1, 4>}, {pipeline_mode = #tpu.pipeline_mode<synchronous>, transform_indices = @transform_3, window_bounds = array<i64: 1, 4>}, {pipeline_mode = #tpu.pipeline_mode<synchronous>, transform_indices = @transform_4, window_bounds = array<i64: 1, 8>}, {pipeline_mode = #tpu.pipeline_mode<synchronous>, transform_indices = @transform_5, window_bounds = array<i64: 1, 8>}, {pipeline_mode = #tpu.pipeline_mode<synchronous>, transform_indices = @transform_6, window_bounds = array<i64: 4, 8>}, {transform_indices = @transform_7, window_bounds = array<i64: 1, 8, 8, 8>}, {transform_indices = @transform_8, window_bounds = array<i64: 1, 8, 8, 8>}]} {
    %c0 = arith.constant 0 : index
    %c0_0 = arith.constant 0 : index
    %c0_1 = arith.constant 0 : index
    %c0_2 = arith.constant 0 : index
    %0 = vector.load %arg1[%c0, %c0_0, %c0_1, %c0_2] : memref<1x16x16x4xf32, #tpu.memory_space<vmem>>, vector<1x16x16x4xf32>
    %1 = vector.shape_cast %0 : vector<1x16x16x4xf32> to vector<16x16x4xf32>
    %c0_3 = arith.constant 0 : index
    %c0_4 = arith.constant 0 : index
    %2 = vector.load %arg3[%c0_3, %c0_4] : memref<1x4xf32, #tpu.memory_space<vmem>>, vector<1x4xf32>
    %3 = vector.shape_cast %2 : vector<1x4xf32> to vector<1x1x4xf32>
    %4 = vector.broadcast %3 : vector<1x1x4xf32> to vector<16x16x4xf32>
    %5 = arith.mulf %1, %4 : vector<16x16x4xf32>
    %c0_5 = arith.constant 0 : index
    %c0_6 = arith.constant 0 : index
    %6 = vector.load %arg4[%c0_5, %c0_6] : memref<1x4xf32, #tpu.memory_space<vmem>>, vector<1x4xf32>
    %7 = vector.shape_cast %6 : vector<1x4xf32> to vector<1x1x4xf32>
    %8 = vector.broadcast %7 : vector<1x1x4xf32> to vector<16x16x4xf32>
    %9 = arith.addf %5, %8 : vector<16x16x4xf32>
    %cst = arith.constant 0.000000e+00 : f32
    %10 = vector.broadcast %cst : f32 to vector<16x16x4xf32>
    %11 = arith.cmpf oge, %9, %10 : vector<16x16x4xf32>
    %cst_7 = arith.constant 1.000000e-01 : f32
    %12 = vector.broadcast %cst_7 : f32 to vector<16x16x4xf32>
    %13 = arith.mulf %12, %9 : vector<16x16x4xf32>
    %14 = arith.select %11, %9, %13 : vector<16x16x4xi1>, vector<16x16x4xf32>
    %cst_8 = arith.constant 0.000000e+00 : f32
    %15 = vector.broadcast %cst_8 : f32 to vector<18x18x4xf32>
    %c0_9 = arith.constant 0 : index
    %c0_10 = arith.constant 0 : index
    %c0_11 = arith.constant 0 : index
    %16 = vector.load %arg10[%c0_9, %c0_10, %c0_11] : memref<18x18x4xf32, #tpu.memory_space<vmem>>, vector<18x18x4xf32>
    tpu.vector_store %arg10[%c0_9, %c0_10, %c0_11], %15 {strides = array<i32>} : memref<18x18x4xf32, #tpu.memory_space<vmem>>, vector<18x18x4xf32>,
    %c1 = arith.constant 1 : index
    %c1_12 = arith.constant 1 : index
    %c0_13 = arith.constant 0 : index
    %17 = vector.load %arg10[%c1, %c1_12, %c0_13] : memref<18x18x4xf32, #tpu.memory_space<vmem>>, vector<16x16x4xf32>
    tpu.vector_store %arg10[%c1, %c1_12, %c0_13], %14 {strides = array<i32>} : memref<18x18x4xf32, #tpu.memory_space<vmem>>, vector<16x16x4xf32>,
    %cst_14 = arith.constant 0.000000e+00 : f32
    %18 = vector.broadcast %cst_14 : f32 to vector<64x8xf32>
    %c0_15 = arith.constant 0 : index
    %c0_16 = arith.constant 0 : index
    %c0_17 = arith.constant 0 : index
    %19 = tpu.strided_load %arg10[%c0_15, %c0_16, %c0_17] {strides = array<i32: 2, 2, 1>} : memref<18x18x4xf32, #tpu.memory_space<vmem>>, vector<8x8x4xf32>
    %20 = vector.shape_cast %19 : vector<8x8x4xf32> to vector<64x4xf32>
    %21 = arith.truncf %20 : vector<64x4xf32> to vector<64x4xbf16>
    %c0_18 = arith.constant 0 : index
    %c0_19 = arith.constant 0 : index
    %c0_20 = arith.constant 0 : index
    %22 = vector.load %arg2[%c0_18, %c0_19, %c0_20] : memref<9x4x8xbf16, #tpu.memory_space<vmem>>, vector<1x4x8xbf16>
    %23 = vector.shape_cast %22 : vector<1x4x8xbf16> to vector<4x8xbf16>
    %cst_21 = arith.constant dense<0.000000e+00> : vector<64x8xf32>
    %24 = tpu.matmul %21, %23, %cst_21 {dimension_numbers = #tpu.dot_dimension_numbers<[1], [0], [0], [1], [0, 0, 1, 1], [], []>} : vector<64x4xbf16>, vector<4x8xbf16>, vector<64x8xf32> -> vector<64x8xf32>
    %25 = arith.addf %18, %24 : vector<64x8xf32>
    %c0_22 = arith.constant 0 : index
    %c1_23 = arith.constant 1 : index
    %c0_24 = arith.constant 0 : index
    %26 = tpu.strided_load %arg10[%c0_22, %c1_23, %c0_24] {strides = array<i32: 2, 2, 1>} : memref<18x18x4xf32, #tpu.memory_space<vmem>>, vector<8x8x4xf32>
    %27 = vector.shape_cast %26 : vector<8x8x4xf32> to vector<64x4xf32>
    %28 = arith.truncf %27 : vector<64x4xf32> to vector<64x4xbf16>
    %c1_25 = arith.constant 1 : index
    %c0_26 = arith.constant 0 : index
    %c0_27 = arith.constant 0 : index
    %29 = vector.load %arg2[%c1_25, %c0_26, %c0_27] : memref<9x4x8xbf16, #tpu.memory_space<vmem>>, vector<1x4x8xbf16>
    %30 = vector.shape_cast %29 : vector<1x4x8xbf16> to vector<4x8xbf16>
    %cst_28 = arith.constant dense<0.000000e+00> : vector<64x8xf32>
    %31 = tpu.matmul %28, %30, %cst_28 {dimension_numbers = #tpu.dot_dimension_numbers<[1], [0], [0], [1], [0, 0, 1, 1], [], []>} : vector<64x4xbf16>, vector<4x8xbf16>, vector<64x8xf32> -> vector<64x8xf32>
    %32 = arith.addf %25, %31 : vector<64x8xf32>
    %c0_29 = arith.constant 0 : index
    %c2 = arith.constant 2 : index
    %c0_30 = arith.constant 0 : index
    %33 = tpu.strided_load %arg10[%c0_29, %c2, %c0_30] {strides = array<i32: 2, 2, 1>} : memref<18x18x4xf32, #tpu.memory_space<vmem>>, vector<8x8x4xf32>
    %34 = vector.shape_cast %33 : vector<8x8x4xf32> to vector<64x4xf32>
    %35 = arith.truncf %34 : vector<64x4xf32> to vector<64x4xbf16>
    %c2_31 = arith.constant 2 : index
    %c0_32 = arith.constant 0 : index
    %c0_33 = arith.constant 0 : index
    %36 = vector.load %arg2[%c2_31, %c0_32, %c0_33] : memref<9x4x8xbf16, #tpu.memory_space<vmem>>, vector<1x4x8xbf16>
    %37 = vector.shape_cast %36 : vector<1x4x8xbf16> to vector<4x8xbf16>
    %cst_34 = arith.constant dense<0.000000e+00> : vector<64x8xf32>
    %38 = tpu.matmul %35, %37, %cst_34 {dimension_numbers = #tpu.dot_dimension_numbers<[1], [0], [0], [1], [0, 0, 1, 1], [], []>} : vector<64x4xbf16>, vector<4x8xbf16>, vector<64x8xf32> -> vector<64x8xf32>
    %39 = arith.addf %32, %38 : vector<64x8xf32>
    %c1_35 = arith.constant 1 : index
    %c0_36 = arith.constant 0 : index
    %c0_37 = arith.constant 0 : index
    %40 = tpu.strided_load %arg10[%c1_35, %c0_36, %c0_37] {strides = array<i32: 2, 2, 1>} : memref<18x18x4xf32, #tpu.memory_space<vmem>>, vector<8x8x4xf32>
    %41 = vector.shape_cast %40 : vector<8x8x4xf32> to vector<64x4xf32>
    %42 = arith.truncf %41 : vector<64x4xf32> to vector<64x4xbf16>
    %c3 = arith.constant 3 : index
    %c0_38 = arith.constant 0 : index
    %c0_39 = arith.constant 0 : index
    %43 = vector.load %arg2[%c3, %c0_38, %c0_39] : memref<9x4x8xbf16, #tpu.memory_space<vmem>>, vector<1x4x8xbf16>
    %44 = vector.shape_cast %43 : vector<1x4x8xbf16> to vector<4x8xbf16>
    %cst_40 = arith.constant dense<0.000000e+00> : vector<64x8xf32>
    %45 = tpu.matmul %42, %44, %cst_40 {dimension_numbers = #tpu.dot_dimension_numbers<[1], [0], [0], [1], [0, 0, 1, 1], [], []>} : vector<64x4xbf16>, vector<4x8xbf16>, vector<64x8xf32> -> vector<64x8xf32>
    %46 = arith.addf %39, %45 : vector<64x8xf32>
    %c1_41 = arith.constant 1 : index
    %c1_42 = arith.constant 1 : index
    %c0_43 = arith.constant 0 : index
    %47 = tpu.strided_load %arg10[%c1_41, %c1_42, %c0_43] {strides = array<i32: 2, 2, 1>} : memref<18x18x4xf32, #tpu.memory_space<vmem>>, vector<8x8x4xf32>
    %48 = vector.shape_cast %47 : vector<8x8x4xf32> to vector<64x4xf32>
    %49 = arith.truncf %48 : vector<64x4xf32> to vector<64x4xbf16>
    %c4 = arith.constant 4 : index
    %c0_44 = arith.constant 0 : index
    %c0_45 = arith.constant 0 : index
    %50 = vector.load %arg2[%c4, %c0_44, %c0_45] : memref<9x4x8xbf16, #tpu.memory_space<vmem>>, vector<1x4x8xbf16>
    %51 = vector.shape_cast %50 : vector<1x4x8xbf16> to vector<4x8xbf16>
    %cst_46 = arith.constant dense<0.000000e+00> : vector<64x8xf32>
    %52 = tpu.matmul %49, %51, %cst_46 {dimension_numbers = #tpu.dot_dimension_numbers<[1], [0], [0], [1], [0, 0, 1, 1], [], []>} : vector<64x4xbf16>, vector<4x8xbf16>, vector<64x8xf32> -> vector<64x8xf32>
    %53 = arith.addf %46, %52 : vector<64x8xf32>
    %c1_47 = arith.constant 1 : index
    %c2_48 = arith.constant 2 : index
    %c0_49 = arith.constant 0 : index
    %54 = tpu.strided_load %arg10[%c1_47, %c2_48, %c0_49] {strides = array<i32: 2, 2, 1>} : memref<18x18x4xf32, #tpu.memory_space<vmem>>, vector<8x8x4xf32>
    %55 = vector.shape_cast %54 : vector<8x8x4xf32> to vector<64x4xf32>
    %56 = arith.truncf %55 : vector<64x4xf32> to vector<64x4xbf16>
    %c5 = arith.constant 5 : index
    %c0_50 = arith.constant 0 : index
    %c0_51 = arith.constant 0 : index
    %57 = vector.load %arg2[%c5, %c0_50, %c0_51] : memref<9x4x8xbf16, #tpu.memory_space<vmem>>, vector<1x4x8xbf16>
    %58 = vector.shape_cast %57 : vector<1x4x8xbf16> to vector<4x8xbf16>
    %cst_52 = arith.constant dense<0.000000e+00> : vector<64x8xf32>
    %59 = tpu.matmul %56, %58, %cst_52 {dimension_numbers = #tpu.dot_dimension_numbers<[1], [0], [0], [1], [0, 0, 1, 1], [], []>} : vector<64x4xbf16>, vector<4x8xbf16>, vector<64x8xf32> -> vector<64x8xf32>
    %60 = arith.addf %53, %59 : vector<64x8xf32>
    %c2_53 = arith.constant 2 : index
    %c0_54 = arith.constant 0 : index
    %c0_55 = arith.constant 0 : index
    %61 = tpu.strided_load %arg10[%c2_53, %c0_54, %c0_55] {strides = array<i32: 2, 2, 1>} : memref<18x18x4xf32, #tpu.memory_space<vmem>>, vector<8x8x4xf32>
    %62 = vector.shape_cast %61 : vector<8x8x4xf32> to vector<64x4xf32>
    %63 = arith.truncf %62 : vector<64x4xf32> to vector<64x4xbf16>
    %c6 = arith.constant 6 : index
    %c0_56 = arith.constant 0 : index
    %c0_57 = arith.constant 0 : index
    %64 = vector.load %arg2[%c6, %c0_56, %c0_57] : memref<9x4x8xbf16, #tpu.memory_space<vmem>>, vector<1x4x8xbf16>
    %65 = vector.shape_cast %64 : vector<1x4x8xbf16> to vector<4x8xbf16>
    %cst_58 = arith.constant dense<0.000000e+00> : vector<64x8xf32>
    %66 = tpu.matmul %63, %65, %cst_58 {dimension_numbers = #tpu.dot_dimension_numbers<[1], [0], [0], [1], [0, 0, 1, 1], [], []>} : vector<64x4xbf16>, vector<4x8xbf16>, vector<64x8xf32> -> vector<64x8xf32>
    %67 = arith.addf %60, %66 : vector<64x8xf32>
    %c2_59 = arith.constant 2 : index
    %c1_60 = arith.constant 1 : index
    %c0_61 = arith.constant 0 : index
    %68 = tpu.strided_load %arg10[%c2_59, %c1_60, %c0_61] {strides = array<i32: 2, 2, 1>} : memref<18x18x4xf32, #tpu.memory_space<vmem>>, vector<8x8x4xf32>
    %69 = vector.shape_cast %68 : vector<8x8x4xf32> to vector<64x4xf32>
    %70 = arith.truncf %69 : vector<64x4xf32> to vector<64x4xbf16>
    %c7 = arith.constant 7 : index
    %c0_62 = arith.constant 0 : index
    %c0_63 = arith.constant 0 : index
    %71 = vector.load %arg2[%c7, %c0_62, %c0_63] : memref<9x4x8xbf16, #tpu.memory_space<vmem>>, vector<1x4x8xbf16>
    %72 = vector.shape_cast %71 : vector<1x4x8xbf16> to vector<4x8xbf16>
    %cst_64 = arith.constant dense<0.000000e+00> : vector<64x8xf32>
    %73 = tpu.matmul %70, %72, %cst_64 {dimension_numbers = #tpu.dot_dimension_numbers<[1], [0], [0], [1], [0, 0, 1, 1], [], []>} : vector<64x4xbf16>, vector<4x8xbf16>, vector<64x8xf32> -> vector<64x8xf32>
    %74 = arith.addf %67, %73 : vector<64x8xf32>
    %c2_65 = arith.constant 2 : index
    %c2_66 = arith.constant 2 : index
    %c0_67 = arith.constant 0 : index
    %75 = tpu.strided_load %arg10[%c2_65, %c2_66, %c0_67] {strides = array<i32: 2, 2, 1>} : memref<18x18x4xf32, #tpu.memory_space<vmem>>, vector<8x8x4xf32>
    %76 = vector.shape_cast %75 : vector<8x8x4xf32> to vector<64x4xf32>
    %77 = arith.truncf %76 : vector<64x4xf32> to vector<64x4xbf16>
    %c8 = arith.constant 8 : index
    %c0_68 = arith.constant 0 : index
    %c0_69 = arith.constant 0 : index
    %78 = vector.load %arg2[%c8, %c0_68, %c0_69] : memref<9x4x8xbf16, #tpu.memory_space<vmem>>, vector<1x4x8xbf16>
    %79 = vector.shape_cast %78 : vector<1x4x8xbf16> to vector<4x8xbf16>
    %cst_70 = arith.constant dense<0.000000e+00> : vector<64x8xf32>
    %80 = tpu.matmul %77, %79, %cst_70 {dimension_numbers = #tpu.dot_dimension_numbers<[1], [0], [0], [1], [0, 0, 1, 1], [], []>} : vector<64x4xbf16>, vector<4x8xbf16>, vector<64x8xf32> -> vector<64x8xf32>
    %81 = arith.addf %74, %80 : vector<64x8xf32>
    %c0_71 = arith.constant 0 : index
    %c0_72 = arith.constant 0 : index
    %82 = vector.load %arg5[%c0_71, %c0_72] : memref<1x8xf32, #tpu.memory_space<vmem>>, vector<1x8xf32>
    %83 = vector.broadcast %82 : vector<1x8xf32> to vector<64x8xf32>
    %84 = arith.mulf %81, %83 : vector<64x8xf32>
    %c0_73 = arith.constant 0 : index
    %c0_74 = arith.constant 0 : index
    %85 = vector.load %arg6[%c0_73, %c0_74] : memref<1x8xf32, #tpu.memory_space<vmem>>, vector<1x8xf32>
    %86 = vector.broadcast %85 : vector<1x8xf32> to vector<64x8xf32>
    %87 = arith.addf %84, %86 : vector<64x8xf32>
    %cst_75 = arith.constant 0.000000e+00 : f32
    %88 = vector.broadcast %cst_75 : f32 to vector<64x8xf32>
    %89 = arith.cmpf oge, %87, %88 : vector<64x8xf32>
    %cst_76 = arith.constant 1.000000e-01 : f32
    %90 = vector.broadcast %cst_76 : f32 to vector<64x8xf32>
    %91 = arith.mulf %90, %87 : vector<64x8xf32>
    %92 = arith.select %89, %87, %91 : vector<64x8xi1>, vector<64x8xf32>
    %93 = vector.shape_cast %92 : vector<64x8xf32> to vector<8x8x8xf32>
    %c0_77 = arith.constant 0 : index
    %c0_78 = arith.constant 0 : index
    %c0_79 = arith.constant 0 : index
    %c0_80 = arith.constant 0 : index
    %94 = vector.load %arg8[%c0_77, %c0_78, %c0_79, %c0_80] : memref<1x8x8x8xf32, #tpu.memory_space<vmem>>, vector<1x8x8x8xf32>
    %95 = vector.shape_cast %94 : vector<1x8x8x8xf32> to vector<8x8x8xf32>
    %96 = vector.shape_cast %93 : vector<8x8x8xf32> to vector<1x8x8x8xf32>
    tpu.vector_store %arg8[%c0_77, %c0_78, %c0_79, %c0_80], %96 {strides = array<i32>} : memref<1x8x8x8xf32, #tpu.memory_space<vmem>>, vector<1x8x8x8xf32>,
    %c1_81 = arith.constant 1 : index
    %c1_82 = arith.constant 1 : index
    %c0_83 = arith.constant 0 : index
    %97 = tpu.strided_load %arg10[%c1_81, %c1_82, %c0_83] {strides = array<i32: 2, 2, 1>} : memref<18x18x4xf32, #tpu.memory_space<vmem>>, vector<8x8x4xf32>
    %98 = vector.shape_cast %97 : vector<8x8x4xf32> to vector<64x4xf32>
    %99 = arith.truncf %98 : vector<64x4xf32> to vector<64x4xbf16>
    %c0_84 = arith.constant 0 : index
    %c0_85 = arith.constant 0 : index
    %100 = vector.load %arg7[%c0_84, %c0_85] : memref<4x8xbf16, #tpu.memory_space<vmem>>, vector<4x8xbf16>
    %cst_86 = arith.constant dense<0.000000e+00> : vector<64x8xf32>
    %101 = tpu.matmul %99, %100, %cst_86 {dimension_numbers = #tpu.dot_dimension_numbers<[1], [0], [0], [1], [0, 0, 1, 1], [], []>} : vector<64x4xbf16>, vector<4x8xbf16>, vector<64x8xf32> -> vector<64x8xf32>
    %102 = vector.shape_cast %101 : vector<64x8xf32> to vector<8x8x8xf32>
    %c0_87 = arith.constant 0 : index
    %c0_88 = arith.constant 0 : index
    %c0_89 = arith.constant 0 : index
    %c0_90 = arith.constant 0 : index
    %103 = vector.load %arg9[%c0_87, %c0_88, %c0_89, %c0_90] : memref<1x8x8x8xf32, #tpu.memory_space<vmem>>, vector<1x8x8x8xf32>
    %104 = vector.shape_cast %103 : vector<1x8x8x8xf32> to vector<8x8x8xf32>
    %105 = vector.shape_cast %102 : vector<8x8x8xf32> to vector<1x8x8x8xf32>
    tpu.vector_store %arg9[%c0_87, %c0_88, %c0_89, %c0_90], %105 {strides = array<i32>} : memref<1x8x8x8xf32, #tpu.memory_space<vmem>>, vector<1x8x8x8xf32>,
    return
  }
  func.func @transform_0(%arg0: i32) -> (i32, i32, i32, i32) {
    %c0_i32 = arith.constant 0 : i32
    %c0_i32_0 = arith.constant 0 : i32
    %c0_i32_1 = arith.constant 0 : i32
    %c0_i32_2 = arith.constant 0 : i32
    return %arg0, %c0_i32, %c0_i32_0, %c0_i32_1 : i32, i32, i32, i32
  }
  func.func @transform_1(%arg0: i32) -> (i32, i32, i32) {
    %c0_i32 = arith.constant 0 : i32
    %c0_i32_0 = arith.constant 0 : i32
    %c0_i32_1 = arith.constant 0 : i32
    %c0_i32_2 = arith.constant 0 : i32
    return %c0_i32, %c0_i32_0, %c0_i32_1 : i32, i32, i32
  }
  func.func @transform_2(%arg0: i32) -> (i32, i32) {
    %c0_i32 = arith.constant 0 : i32
    %c0_i32_0 = arith.constant 0 : i32
    %c0_i32_1 = arith.constant 0 : i32
    return %c0_i32, %c0_i32_0 : i32, i32
  }
  func.func @transform_3(%arg0: i32) -> (i32, i32) {
    %c0_i32 = arith.constant 0 : i32
    %c0_i32_0 = arith.constant 0 : i32
    %c0_i32_1 = arith.constant 0 : i32
    return %c0_i32, %c0_i32_0 : i32, i32
  }
  func.func @transform_4(%arg0: i32) -> (i32, i32) {
    %c0_i32 = arith.constant 0 : i32
    %c0_i32_0 = arith.constant 0 : i32
    %c0_i32_1 = arith.constant 0 : i32
    return %c0_i32, %c0_i32_0 : i32, i32
  }
  func.func @transform_5(%arg0: i32) -> (i32, i32) {
    %c0_i32 = arith.constant 0 : i32
    %c0_i32_0 = arith.constant 0 : i32
    %c0_i32_1 = arith.constant 0 : i32
    return %c0_i32, %c0_i32_0 : i32, i32
  }
  func.func @transform_6(%arg0: i32) -> (i32, i32) {
    %c0_i32 = arith.constant 0 : i32
    %c0_i32_0 = arith.constant 0 : i32
    %c0_i32_1 = arith.constant 0 : i32
    return %c0_i32, %c0_i32_0 : i32, i32
  }
  func.func @transform_7(%arg0: i32) -> (i32, i32, i32, i32) {
    %c0_i32 = arith.constant 0 : i32
    %c0_i32_0 = arith.constant 0 : i32
    %c0_i32_1 = arith.constant 0 : i32
    %c0_i32_2 = arith.constant 0 : i32
    return %arg0, %c0_i32, %c0_i32_0, %c0_i32_1 : i32, i32, i32, i32
  }
  func.func @transform_8(%arg0: i32) -> (i32, i32, i32, i32) {
    %c0_i32 = arith.constant 0 : i32
    %c0_i32_0 = arith.constant 0 : i32
    %c0_i32_1 = arith.constant 0 : i32
    %c0_i32_2 = arith.constant 0 : i32
    return %arg0, %c0_i32, %c0_i32_0, %c0_i32_1 : i32, i32, i32, i32
  }
}

module attributes {stable_mosaic.version = 11 : i64} {
  func.func @kernel(%arg0: i32, %arg1: memref<1x8x8x8xf32, #tpu.memory_space<vmem>>, %arg2: memref<9x8x8xbf16, #tpu.memory_space<vmem>>, %arg3: memref<1x8x8x8xf32, #tpu.memory_space<vmem>>, %arg4: memref<1x8x8x8xf32, #tpu.memory_space<vmem>>, %arg5: memref<10x10x8xf32, #tpu.memory_space<vmem>>) attributes {dimension_semantics = [#tpu.dimension_semantics<parallel>], iteration_bounds = array<i64: 2>, scalar_prefetch = 0 : i64, scratch_operands = 1 : i64, tpu.core_type = #tpu.core_type<tc>, window_params = [{transform_indices = @transform_0, window_bounds = array<i64: 1, 8, 8, 8>}, {pipeline_mode = #tpu.pipeline_mode<synchronous>, transform_indices = @transform_1, window_bounds = array<i64: 9, 8, 8>}, {transform_indices = @transform_2, window_bounds = array<i64: 1, 8, 8, 8>}, {transform_indices = @transform_3, window_bounds = array<i64: 1, 8, 8, 8>}]} {
    %c0 = arith.constant 0 : index
    %c0_0 = arith.constant 0 : index
    %c0_1 = arith.constant 0 : index
    %c0_2 = arith.constant 0 : index
    %0 = vector.load %arg1[%c0, %c0_0, %c0_1, %c0_2] : memref<1x8x8x8xf32, #tpu.memory_space<vmem>>, vector<1x8x8x8xf32>
    %1 = vector.shape_cast %0 : vector<1x8x8x8xf32> to vector<8x8x8xf32>
    %cst = arith.constant 0.000000e+00 : f32
    %2 = vector.broadcast %cst : f32 to vector<10x10x8xf32>
    %c0_3 = arith.constant 0 : index
    %c0_4 = arith.constant 0 : index
    %c0_5 = arith.constant 0 : index
    %3 = vector.load %arg5[%c0_3, %c0_4, %c0_5] : memref<10x10x8xf32, #tpu.memory_space<vmem>>, vector<10x10x8xf32>
    tpu.vector_store %arg5[%c0_3, %c0_4, %c0_5], %2 {strides = array<i32>} : memref<10x10x8xf32, #tpu.memory_space<vmem>>, vector<10x10x8xf32>,
    %c1 = arith.constant 1 : index
    %c1_6 = arith.constant 1 : index
    %c0_7 = arith.constant 0 : index
    %4 = vector.load %arg5[%c1, %c1_6, %c0_7] : memref<10x10x8xf32, #tpu.memory_space<vmem>>, vector<8x8x8xf32>
    tpu.vector_store %arg5[%c1, %c1_6, %c0_7], %1 {strides = array<i32>} : memref<10x10x8xf32, #tpu.memory_space<vmem>>, vector<8x8x8xf32>,
    %cst_8 = arith.constant 0.000000e+00 : f32
    %5 = vector.broadcast %cst_8 : f32 to vector<64x8xf32>
    %c0_9 = arith.constant 0 : index
    %c0_10 = arith.constant 0 : index
    %c0_11 = arith.constant 0 : index
    %6 = vector.load %arg5[%c0_9, %c0_10, %c0_11] : memref<10x10x8xf32, #tpu.memory_space<vmem>>, vector<8x8x8xf32>
    %7 = vector.shape_cast %6 : vector<8x8x8xf32> to vector<64x8xf32>
    %8 = arith.truncf %7 : vector<64x8xf32> to vector<64x8xbf16>
    %c0_12 = arith.constant 0 : index
    %c0_13 = arith.constant 0 : index
    %c0_14 = arith.constant 0 : index
    %9 = vector.load %arg2[%c0_12, %c0_13, %c0_14] : memref<9x8x8xbf16, #tpu.memory_space<vmem>>, vector<1x8x8xbf16>
    %10 = vector.shape_cast %9 : vector<1x8x8xbf16> to vector<8x8xbf16>
    %cst_15 = arith.constant dense<0.000000e+00> : vector<64x8xf32>
    %11 = tpu.matmul %8, %10, %cst_15 {dimension_numbers = #tpu.dot_dimension_numbers<[1], [0], [0], [1], [0, 0, 1, 1], [], []>} : vector<64x8xbf16>, vector<8x8xbf16>, vector<64x8xf32> -> vector<64x8xf32>
    %12 = arith.addf %5, %11 : vector<64x8xf32>
    %c0_16 = arith.constant 0 : index
    %c1_17 = arith.constant 1 : index
    %c0_18 = arith.constant 0 : index
    %13 = vector.load %arg5[%c0_16, %c1_17, %c0_18] : memref<10x10x8xf32, #tpu.memory_space<vmem>>, vector<8x8x8xf32>
    %14 = vector.shape_cast %13 : vector<8x8x8xf32> to vector<64x8xf32>
    %15 = arith.truncf %14 : vector<64x8xf32> to vector<64x8xbf16>
    %c1_19 = arith.constant 1 : index
    %c0_20 = arith.constant 0 : index
    %c0_21 = arith.constant 0 : index
    %16 = vector.load %arg2[%c1_19, %c0_20, %c0_21] : memref<9x8x8xbf16, #tpu.memory_space<vmem>>, vector<1x8x8xbf16>
    %17 = vector.shape_cast %16 : vector<1x8x8xbf16> to vector<8x8xbf16>
    %cst_22 = arith.constant dense<0.000000e+00> : vector<64x8xf32>
    %18 = tpu.matmul %15, %17, %cst_22 {dimension_numbers = #tpu.dot_dimension_numbers<[1], [0], [0], [1], [0, 0, 1, 1], [], []>} : vector<64x8xbf16>, vector<8x8xbf16>, vector<64x8xf32> -> vector<64x8xf32>
    %19 = arith.addf %12, %18 : vector<64x8xf32>
    %c0_23 = arith.constant 0 : index
    %c2 = arith.constant 2 : index
    %c0_24 = arith.constant 0 : index
    %20 = vector.load %arg5[%c0_23, %c2, %c0_24] : memref<10x10x8xf32, #tpu.memory_space<vmem>>, vector<8x8x8xf32>
    %21 = vector.shape_cast %20 : vector<8x8x8xf32> to vector<64x8xf32>
    %22 = arith.truncf %21 : vector<64x8xf32> to vector<64x8xbf16>
    %c2_25 = arith.constant 2 : index
    %c0_26 = arith.constant 0 : index
    %c0_27 = arith.constant 0 : index
    %23 = vector.load %arg2[%c2_25, %c0_26, %c0_27] : memref<9x8x8xbf16, #tpu.memory_space<vmem>>, vector<1x8x8xbf16>
    %24 = vector.shape_cast %23 : vector<1x8x8xbf16> to vector<8x8xbf16>
    %cst_28 = arith.constant dense<0.000000e+00> : vector<64x8xf32>
    %25 = tpu.matmul %22, %24, %cst_28 {dimension_numbers = #tpu.dot_dimension_numbers<[1], [0], [0], [1], [0, 0, 1, 1], [], []>} : vector<64x8xbf16>, vector<8x8xbf16>, vector<64x8xf32> -> vector<64x8xf32>
    %26 = arith.addf %19, %25 : vector<64x8xf32>
    %c1_29 = arith.constant 1 : index
    %c0_30 = arith.constant 0 : index
    %c0_31 = arith.constant 0 : index
    %27 = vector.load %arg5[%c1_29, %c0_30, %c0_31] : memref<10x10x8xf32, #tpu.memory_space<vmem>>, vector<8x8x8xf32>
    %28 = vector.shape_cast %27 : vector<8x8x8xf32> to vector<64x8xf32>
    %29 = arith.truncf %28 : vector<64x8xf32> to vector<64x8xbf16>
    %c3 = arith.constant 3 : index
    %c0_32 = arith.constant 0 : index
    %c0_33 = arith.constant 0 : index
    %30 = vector.load %arg2[%c3, %c0_32, %c0_33] : memref<9x8x8xbf16, #tpu.memory_space<vmem>>, vector<1x8x8xbf16>
    %31 = vector.shape_cast %30 : vector<1x8x8xbf16> to vector<8x8xbf16>
    %cst_34 = arith.constant dense<0.000000e+00> : vector<64x8xf32>
    %32 = tpu.matmul %29, %31, %cst_34 {dimension_numbers = #tpu.dot_dimension_numbers<[1], [0], [0], [1], [0, 0, 1, 1], [], []>} : vector<64x8xbf16>, vector<8x8xbf16>, vector<64x8xf32> -> vector<64x8xf32>
    %33 = arith.addf %26, %32 : vector<64x8xf32>
    %c1_35 = arith.constant 1 : index
    %c1_36 = arith.constant 1 : index
    %c0_37 = arith.constant 0 : index
    %34 = vector.load %arg5[%c1_35, %c1_36, %c0_37] : memref<10x10x8xf32, #tpu.memory_space<vmem>>, vector<8x8x8xf32>
    %35 = vector.shape_cast %34 : vector<8x8x8xf32> to vector<64x8xf32>
    %36 = arith.truncf %35 : vector<64x8xf32> to vector<64x8xbf16>
    %c4 = arith.constant 4 : index
    %c0_38 = arith.constant 0 : index
    %c0_39 = arith.constant 0 : index
    %37 = vector.load %arg2[%c4, %c0_38, %c0_39] : memref<9x8x8xbf16, #tpu.memory_space<vmem>>, vector<1x8x8xbf16>
    %38 = vector.shape_cast %37 : vector<1x8x8xbf16> to vector<8x8xbf16>
    %cst_40 = arith.constant dense<0.000000e+00> : vector<64x8xf32>
    %39 = tpu.matmul %36, %38, %cst_40 {dimension_numbers = #tpu.dot_dimension_numbers<[1], [0], [0], [1], [0, 0, 1, 1], [], []>} : vector<64x8xbf16>, vector<8x8xbf16>, vector<64x8xf32> -> vector<64x8xf32>
    %40 = arith.addf %33, %39 : vector<64x8xf32>
    %c1_41 = arith.constant 1 : index
    %c2_42 = arith.constant 2 : index
    %c0_43 = arith.constant 0 : index
    %41 = vector.load %arg5[%c1_41, %c2_42, %c0_43] : memref<10x10x8xf32, #tpu.memory_space<vmem>>, vector<8x8x8xf32>
    %42 = vector.shape_cast %41 : vector<8x8x8xf32> to vector<64x8xf32>
    %43 = arith.truncf %42 : vector<64x8xf32> to vector<64x8xbf16>
    %c5 = arith.constant 5 : index
    %c0_44 = arith.constant 0 : index
    %c0_45 = arith.constant 0 : index
    %44 = vector.load %arg2[%c5, %c0_44, %c0_45] : memref<9x8x8xbf16, #tpu.memory_space<vmem>>, vector<1x8x8xbf16>
    %45 = vector.shape_cast %44 : vector<1x8x8xbf16> to vector<8x8xbf16>
    %cst_46 = arith.constant dense<0.000000e+00> : vector<64x8xf32>
    %46 = tpu.matmul %43, %45, %cst_46 {dimension_numbers = #tpu.dot_dimension_numbers<[1], [0], [0], [1], [0, 0, 1, 1], [], []>} : vector<64x8xbf16>, vector<8x8xbf16>, vector<64x8xf32> -> vector<64x8xf32>
    %47 = arith.addf %40, %46 : vector<64x8xf32>
    %c2_47 = arith.constant 2 : index
    %c0_48 = arith.constant 0 : index
    %c0_49 = arith.constant 0 : index
    %48 = vector.load %arg5[%c2_47, %c0_48, %c0_49] : memref<10x10x8xf32, #tpu.memory_space<vmem>>, vector<8x8x8xf32>
    %49 = vector.shape_cast %48 : vector<8x8x8xf32> to vector<64x8xf32>
    %50 = arith.truncf %49 : vector<64x8xf32> to vector<64x8xbf16>
    %c6 = arith.constant 6 : index
    %c0_50 = arith.constant 0 : index
    %c0_51 = arith.constant 0 : index
    %51 = vector.load %arg2[%c6, %c0_50, %c0_51] : memref<9x8x8xbf16, #tpu.memory_space<vmem>>, vector<1x8x8xbf16>
    %52 = vector.shape_cast %51 : vector<1x8x8xbf16> to vector<8x8xbf16>
    %cst_52 = arith.constant dense<0.000000e+00> : vector<64x8xf32>
    %53 = tpu.matmul %50, %52, %cst_52 {dimension_numbers = #tpu.dot_dimension_numbers<[1], [0], [0], [1], [0, 0, 1, 1], [], []>} : vector<64x8xbf16>, vector<8x8xbf16>, vector<64x8xf32> -> vector<64x8xf32>
    %54 = arith.addf %47, %53 : vector<64x8xf32>
    %c2_53 = arith.constant 2 : index
    %c1_54 = arith.constant 1 : index
    %c0_55 = arith.constant 0 : index
    %55 = vector.load %arg5[%c2_53, %c1_54, %c0_55] : memref<10x10x8xf32, #tpu.memory_space<vmem>>, vector<8x8x8xf32>
    %56 = vector.shape_cast %55 : vector<8x8x8xf32> to vector<64x8xf32>
    %57 = arith.truncf %56 : vector<64x8xf32> to vector<64x8xbf16>
    %c7 = arith.constant 7 : index
    %c0_56 = arith.constant 0 : index
    %c0_57 = arith.constant 0 : index
    %58 = vector.load %arg2[%c7, %c0_56, %c0_57] : memref<9x8x8xbf16, #tpu.memory_space<vmem>>, vector<1x8x8xbf16>
    %59 = vector.shape_cast %58 : vector<1x8x8xbf16> to vector<8x8xbf16>
    %cst_58 = arith.constant dense<0.000000e+00> : vector<64x8xf32>
    %60 = tpu.matmul %57, %59, %cst_58 {dimension_numbers = #tpu.dot_dimension_numbers<[1], [0], [0], [1], [0, 0, 1, 1], [], []>} : vector<64x8xbf16>, vector<8x8xbf16>, vector<64x8xf32> -> vector<64x8xf32>
    %61 = arith.addf %54, %60 : vector<64x8xf32>
    %c2_59 = arith.constant 2 : index
    %c2_60 = arith.constant 2 : index
    %c0_61 = arith.constant 0 : index
    %62 = vector.load %arg5[%c2_59, %c2_60, %c0_61] : memref<10x10x8xf32, #tpu.memory_space<vmem>>, vector<8x8x8xf32>
    %63 = vector.shape_cast %62 : vector<8x8x8xf32> to vector<64x8xf32>
    %64 = arith.truncf %63 : vector<64x8xf32> to vector<64x8xbf16>
    %c8 = arith.constant 8 : index
    %c0_62 = arith.constant 0 : index
    %c0_63 = arith.constant 0 : index
    %65 = vector.load %arg2[%c8, %c0_62, %c0_63] : memref<9x8x8xbf16, #tpu.memory_space<vmem>>, vector<1x8x8xbf16>
    %66 = vector.shape_cast %65 : vector<1x8x8xbf16> to vector<8x8xbf16>
    %cst_64 = arith.constant dense<0.000000e+00> : vector<64x8xf32>
    %67 = tpu.matmul %64, %66, %cst_64 {dimension_numbers = #tpu.dot_dimension_numbers<[1], [0], [0], [1], [0, 0, 1, 1], [], []>} : vector<64x8xbf16>, vector<8x8xbf16>, vector<64x8xf32> -> vector<64x8xf32>
    %68 = arith.addf %61, %67 : vector<64x8xf32>
    %69 = vector.shape_cast %68 : vector<64x8xf32> to vector<8x8x8xf32>
    %c0_65 = arith.constant 0 : index
    %c0_66 = arith.constant 0 : index
    %c0_67 = arith.constant 0 : index
    %c0_68 = arith.constant 0 : index
    %70 = vector.load %arg3[%c0_65, %c0_66, %c0_67, %c0_68] : memref<1x8x8x8xf32, #tpu.memory_space<vmem>>, vector<1x8x8x8xf32>
    %71 = vector.shape_cast %70 : vector<1x8x8x8xf32> to vector<8x8x8xf32>
    %72 = arith.addf %69, %71 : vector<8x8x8xf32>
    %c0_69 = arith.constant 0 : index
    %c0_70 = arith.constant 0 : index
    %c0_71 = arith.constant 0 : index
    %c0_72 = arith.constant 0 : index
    %73 = vector.load %arg4[%c0_69, %c0_70, %c0_71, %c0_72] : memref<1x8x8x8xf32, #tpu.memory_space<vmem>>, vector<1x8x8x8xf32>
    %74 = vector.shape_cast %73 : vector<1x8x8x8xf32> to vector<8x8x8xf32>
    %75 = vector.shape_cast %72 : vector<8x8x8xf32> to vector<1x8x8x8xf32>
    tpu.vector_store %arg4[%c0_69, %c0_70, %c0_71, %c0_72], %75 {strides = array<i32>} : memref<1x8x8x8xf32, #tpu.memory_space<vmem>>, vector<1x8x8x8xf32>,
    return
  }
  func.func @transform_0(%arg0: i32) -> (i32, i32, i32, i32) {
    %c0_i32 = arith.constant 0 : i32
    %c0_i32_0 = arith.constant 0 : i32
    %c0_i32_1 = arith.constant 0 : i32
    %c0_i32_2 = arith.constant 0 : i32
    return %arg0, %c0_i32, %c0_i32_0, %c0_i32_1 : i32, i32, i32, i32
  }
  func.func @transform_1(%arg0: i32) -> (i32, i32, i32) {
    %c0_i32 = arith.constant 0 : i32
    %c0_i32_0 = arith.constant 0 : i32
    %c0_i32_1 = arith.constant 0 : i32
    %c0_i32_2 = arith.constant 0 : i32
    return %c0_i32, %c0_i32_0, %c0_i32_1 : i32, i32, i32
  }
  func.func @transform_2(%arg0: i32) -> (i32, i32, i32, i32) {
    %c0_i32 = arith.constant 0 : i32
    %c0_i32_0 = arith.constant 0 : i32
    %c0_i32_1 = arith.constant 0 : i32
    %c0_i32_2 = arith.constant 0 : i32
    return %arg0, %c0_i32, %c0_i32_0, %c0_i32_1 : i32, i32, i32, i32
  }
  func.func @transform_3(%arg0: i32) -> (i32, i32, i32, i32) {
    %c0_i32 = arith.constant 0 : i32
    %c0_i32_0 = arith.constant 0 : i32
    %c0_i32_1 = arith.constant 0 : i32
    %c0_i32_2 = arith.constant 0 : i32
    return %arg0, %c0_i32, %c0_i32_0, %c0_i32_1 : i32, i32, i32, i32
  }
}

</mosaic_0001>

<llo_original>
// kernel: basic_block_forward.3
$region0: #{basic_block_forward.3}
  #allocation0 [shape = 'u32[]', space=smem, size = 0x4, offset = 0x4, fixed_abs, tag = 'smem constant byte address 0x4 - core index']
  #allocation1 [shape = 'u32[144,128]{1,0:T(1,128)}', space=vmem, size = 0x12000, scoped, tag = 'internal scratch']
  #allocation2 [shape = 'f32[10,10,8]{2,1,0:T(8,128)}', space=vmem, size = 0x14000, scoped, tag = 'scratch operand']
  %s0 = inlined_call_operand.vmem [shape: f32[2,8,8,8], index: 0, kind: input, shape index: {}]
  %s1 = inlined_call_operand.vmem [shape: bf16[9,8,8], index: 1, kind: input, shape index: {}]
  %s2 = inlined_call_operand.vmem [shape: f32[2,8,8,8], index: 2, kind: input, shape index: {}]
  %s3 = inlined_call_operand.vmem [shape: f32[2,8,8,8], index: 3, kind: output, shape index: {}]
  %s4 = sld [smem:[#allocation0]]
  $region45: #{basic_block_forward.3} parent=0
    _
  %s6 = ssub.s32 1, %s4
  %s7 = scalar_select 0, %s6, %s4
  loop: start=0, step=1, limit=4
  $region2: #{basic_block_forward.3} parent=0 // loop_pre_header
    _
  $region3: #{basic_block_forward.3} parent=0 // loop_header
    %s9 = sphi 0, %s13
    %p10 = scmp.ge.s32.totalorder %s9, 4
    %s19 = sphi 0, %s21
    %s22 = sphi 0, %s19
    %s23 = sphi 0, %s22
    %s39 = sphi 0, %s23
    %s43 = sphi 0, %s43
    %s45 = sphi 0, %s43
    %s46 = sphi 0, %s45
    %s60 = sphi 0, %s46
    %s66 = sphi 0, %s68
    %s69 = sphi 0, %s66
    %s70 = sphi 0, %s69
    %s86 = sphi 0, %s70
    %s92 = sphi 0, %s94
    %s95 = sphi 0, %s92
    %s96 = sphi 0, %s95
    %s112 = sphi 0, %s96
  $region4: #{basic_block_forward.3} parent=0 // loop_header_branch
    %12 = sbr.rel (%p10) target = $region8
  $region5: #{basic_block_forward.3} parent=0 // loop_body
    %s14 = ssub.s32 %s9, 1
    %s15 = ssub.s32 %s9, 2
    %s16 = sadd.s32 %s9, 1
    %s17 = ssub.s32 %s9, %s16
    %p18 = scmp.eq.s32.totalorder %s17, 0
    %s20 = sadd.s32 %s19, 1
    %s21 = scalar_select %p18, %s19, %s20
    %p24 = pneg %p18
    %p25 = scmp.eq.s32.totalorder %s9, 1
    %p26 = por %p24, %p25
    %p27 = scmp.ne.s32.totalorder %s19, %s22
    %p28 = scmp.eq.s32.totalorder %s9, 0
    %p29 = por %p27, %p28
    %p30 = scmp.ne.s32.totalorder %s19, %s22
    %p31 = scmp.eq.s32.totalorder %s14, 1
    %p32 = por %p30, %p31
    %p33 = scmp.ne.s32.totalorder %s22, %s23
    %p34 = scmp.eq.s32.totalorder %s14, 0
    %p35 = por %p33, %p34
    %p36 = scmp.ne.s32.totalorder %s22, %s23
    %p37 = scmp.eq.s32.totalorder %s15, 1
    %p38 = por %p36, %p37
    %p40 = scmp.ne.s32.totalorder %s23, %s39
    %p41 = scmp.eq.s32.totalorder %s15, 0
    %p42 = por %p40, %p41
    %s44 = sadd.s32 %s43, 1
    %p47 = scmp.eq.s32.totalorder %s9, 1
    %p48 = scmp.ne.s32.totalorder %s43, %s45
    %p49 = scmp.eq.s32.totalorder %s9, 0
    %p50 = por %p48, %p49
    %p51 = scmp.ne.s32.totalorder %s43, %s45
    %p52 = scmp.eq.s32.totalorder %s14, 1
    %p53 = por %p51, %p52
    %p54 = scmp.ne.s32.totalorder %s45, %s46
    %p55 = scmp.eq.s32.totalorder %s14, 0
    %p56 = por %p54, %p55
    %p57 = scmp.ne.s32.totalorder %s45, %s46
    %p58 = scmp.eq.s32.totalorder %s15, 1
    %p59 = por %p57, %p58
    %p61 = scmp.ne.s32.totalorder %s46, %s60
    %p62 = scmp.eq.s32.totalorder %s15, 0
    %p63 = por %p61, %p62
    %s64 = ssub.s32 %s9, %s16
    %p65 = scmp.eq.s32.totalorder %s64, 0
    %s67 = sadd.s32 %s66, 1
    %s68 = scalar_select %p65, %s66, %s67
    %p71 = pneg %p65
    %p72 = scmp.eq.s32.totalorder %s9, 1
    %p73 = por %p71, %p72
    %p74 = scmp.ne.s32.totalorder %s66, %s69
    %p75 = scmp.eq.s32.totalorder %s9, 0
    %p76 = por %p74, %p75
    %p77 = scmp.ne.s32.totalorder %s66, %s69
    %p78 = scmp.eq.s32.totalorder %s14, 1
    %p79 = por %p77, %p78
    %p80 = scmp.ne.s32.totalorder %s69, %s70
    %p81 = scmp.eq.s32.totalorder %s14, 0
    %p82 = por %p80, %p81
    %p83 = scmp.ne.s32.totalorder %s69, %s70
    %p84 = scmp.eq.s32.totalorder %s15, 1
    %p85 = por %p83, %p84
    %p87 = scmp.ne.s32.totalorder %s70, %s86
    %p88 = scmp.eq.s32.totalorder %s15, 0
    %p89 = por %p87, %p88
    %s90 = ssub.s32 %s9, %s16
    %p91 = scmp.eq.s32.totalorder %s90, 0
    %s93 = sadd.s32 %s92, 1
    %s94 = scalar_select %p91, %s92, %s93
    %p97 = pneg %p91
    %p98 = scmp.eq.s32.totalorder %s9, 1
    %p99 = por %p97, %p98
    %p100 = scmp.ne.s32.totalorder %s92, %s95
    %p101 = scmp.eq.s32.totalorder %s9, 0
    %p102 = por %p100, %p101
    %p103 = scmp.ne.s32.totalorder %s92, %s95
    %p104 = scmp.eq.s32.totalorder %s14, 1
    %p105 = por %p103, %p104
    %p106 = scmp.ne.s32.totalorder %s95, %s96
    %p107 = scmp.eq.s32.totalorder %s14, 0
    %p108 = por %p106, %p107
    %p109 = scmp.ne.s32.totalorder %s95, %s96
    %p110 = scmp.eq.s32.totalorder %s15, 1
    %p111 = por %p109, %p110
    %p113 = scmp.ne.s32.totalorder %s96, %s112
    %p114 = scmp.eq.s32.totalorder %s15, 0
    %p115 = por %p113, %p114
    %p116 = scmp.le.s32.totalorder 1, %s9
    %p117 = scmp.lt.s32.totalorder %s9, 3
    %p118 = pnand %p116, %p117
    %p119 = pneg %p118
    // Predicated region
    $region9: #{basic_block_forward.3} parent=5 // pred_check
      _
    $region10: #{basic_block_forward.3} parent=5 // pred_check_branch
      %121 = sbr.rel (%p118) target = $region12
    $region11: #{basic_block_forward.3} parent=5 // pred_region
      %s122 = ssub.s32 %s9, 1
      // Predicated region
      $region13: #{basic_block_forward.3} parent=11 // pred_check
        %p123 = pneg %p56
      $region14: #{basic_block_forward.3} parent=11 // pred_check_branch
        %125 = sbr.rel (%p123) target = $region16
      $region15: #{basic_block_forward.3} parent=11 // pred_region
        _
      $region16: #{basic_block_forward.3} parent=11 // pred_fallthru
        _
    $region12: #{basic_block_forward.3} parent=5 // pred_fallthru
      _
    %p126 = scmp.lt.s32.totalorder %s9, 2
    // Predicated region
    $region17: #{basic_block_forward.3} parent=5 // pred_check
      %p127 = pneg %p126
    $region18: #{basic_block_forward.3} parent=5 // pred_check_branch
      %129 = sbr.rel (%p127) target = $region20
    $region19: #{basic_block_forward.3} parent=5 // pred_region
      // Predicated region
      $region21: #{basic_block_forward.3} parent=19 // pred_check
        %p130 = pneg %p29
      $region22: #{basic_block_forward.3} parent=19 // pred_check_branch
        %132 = sbr.rel (%p130) target = $region24
      $region23: #{basic_block_forward.3} parent=19 // pred_region
        %p133 = scmp.lt.s32.totalorder %s9, 1
        %s134 = scalar_select %p133, %s9, 1
        %s135 = smul.addr %s134, 8
        %s136 = smul.addr %s135, 8
        %s137 = scalar_lea.vmem %s0, %s136
      $region24: #{basic_block_forward.3} parent=19 // pred_fallthru
        _
      // Predicated region
      $region25: #{basic_block_forward.3} parent=19 // pred_check
        %p138 = pneg %p76
      $region26: #{basic_block_forward.3} parent=19 // pred_check_branch
        %140 = sbr.rel (%p138) target = $region28
      $region27: #{basic_block_forward.3} parent=19 // pred_region
        %p141 = scmp.lt.s32.totalorder %s9, 1
        %s142 = scalar_select %p141, %s9, 1
        %s143 = smul.addr %s142, 8
        %s144 = smul.addr %s143, 8
        %s145 = scalar_lea.vmem %s2, %s144
      $region28: #{basic_block_forward.3} parent=19 // pred_fallthru
        _
    $region20: #{basic_block_forward.3} parent=5 // pred_fallthru
      _
    %p146 = scmp.le.s32.totalorder 1, %s9
    %p147 = scmp.lt.s32.totalorder %s9, 3
    %p148 = pnand %p146, %p147
    %p149 = pneg %p148
    // Predicated region
    $region29: #{basic_block_forward.3} parent=5 // pred_check
      _
    $region30: #{basic_block_forward.3} parent=5 // pred_check_branch
      %151 = sbr.rel (%p148) target = $region32
    $region31: #{basic_block_forward.3} parent=5 // pred_region
      %s152 = ssub.s32 %s9, 1
      %p153 = scmp.lt.s32.totalorder %s14, 1
      %s154 = scalar_select %p153, %s14, 1
      %s155 = smul.addr %s154, 8
      %s156 = smul.addr %s155, 8
      %s157 = scalar_lea.vmem %s0, %s156
      %p158 = pneg %p35
      %p159 = pneg %p32
      %p160 = pneg %p56
      %p161 = pneg %p53
      %p162 = scmp.lt.s32.totalorder %s14, 1
      %s163 = scalar_select %p162, %s14, 1
      %s164 = smul.addr %s163, 8
      %s165 = smul.addr %s164, 8
      %s166 = scalar_lea.vmem %s2, %s165
      %p167 = pneg %p82
      %p168 = pneg %p79
      %p169 = pneg %p108
      %p170 = pneg %p105
      %p171 = scmp.lt.s32.totalorder %s14, 1
      %s172 = scalar_select %p171, %s14, 1
      %s173 = smul.addr %s172, 8
      %s174 = smul.addr %s173, 8
      %s175 = scalar_lea.vmem %s3, %s174
      %p176 = scmp.lt.s32.totalorder %s14, 1
      %s177 = scalar_select %p176, %s14, 1
      %s178 = smul.addr %s177, 8
      %s179 = smul.addr %s178, 8
      %s180 = scalar_lea.vmem %s0, %s179
      %p181 = scmp.lt.s32.totalorder %s14, 1
      %s182 = scalar_select %p181, %s14, 1
      %s183 = smul.addr %s182, 8
      %s184 = smul.addr %s183, 8
      %s185 = scalar_lea.vmem %s2, %s184
      %p186 = scmp.lt.s32.totalorder %s14, 1
      %s187 = scalar_select %p186, %s14, 1
      %s188 = smul.addr %s187, 8
      %s189 = smul.addr %s188, 8
      %s190 = scalar_lea.vmem %s3, %s189
      %v192 = vld [vmem:[%s180] sm:$0xff]
      %v193 = vld [vmem:[%s180 + $0x8] sm:$0xff]
      %v194 = vld [vmem:[%s180 + $0x10] sm:$0xff]
      %v195 = vld [vmem:[%s180 + $0x18] sm:$0xff]
      %v196 = vld [vmem:[%s180 + $0x20] sm:$0xff]
      %v197 = vld [vmem:[%s180 + $0x28] sm:$0xff]
      %v198 = vld [vmem:[%s180 + $0x30] sm:$0xff]
      %v199 = vld [vmem:[%s180 + $0x38] sm:$0xff]
      %vm200 = vcmask 64512
      %201 = vst.msk [vmem:[#allocation2] sm:$0xff] %vm200, 0.0
      %vm202 = vcmask 58368
      %203 = vst.msk [vmem:[#allocation2 + $0x8] sm:$0x3] %vm202, 0.0
      %204 = vst.msk [vmem:[#allocation2 + $0x10] sm:$0xff] %vm200, 0.0
      %205 = vst.msk [vmem:[#allocation2 + $0x18] sm:$0x3] %vm202, 0.0
      %206 = vst.msk [vmem:[#allocation2 + $0x20] sm:$0xff] %vm200, 0.0
      %207 = vst.msk [vmem:[#allocation2 + $0x28] sm:$0x3] %vm202, 0.0
      %208 = vst.msk [vmem:[#allocation2 + $0x30] sm:$0xff] %vm200, 0.0
      %209 = vst.msk [vmem:[#allocation2 + $0x38] sm:$0x3] %vm202, 0.0
      %210 = vst.msk [vmem:[#allocation2 + $0x40] sm:$0xff] %vm200, 0.0
      %211 = vst.msk [vmem:[#allocation2 + $0x48] sm:$0x3] %vm202, 0.0
      %212 = vst.msk [vmem:[#allocation2 + $0x50] sm:$0xff] %vm200, 0.0
      %213 = vst.msk [vmem:[#allocation2 + $0x58] sm:$0x3] %vm202, 0.0
      %214 = vst.msk [vmem:[#allocation2 + $0x60] sm:$0xff] %vm200, 0.0
      %215 = vst.msk [vmem:[#allocation2 + $0x68] sm:$0x3] %vm202, 0.0
      %216 = vst.msk [vmem:[#allocation2 + $0x70] sm:$0xff] %vm200, 0.0
      %217 = vst.msk [vmem:[#allocation2 + $0x78] sm:$0x3] %vm202, 0.0
      %218 = vst.msk [vmem:[#allocation2 + $0x80] sm:$0xff] %vm200, 0.0
      %219 = vst.msk [vmem:[#allocation2 + $0x88] sm:$0x3] %vm202, 0.0
      %220 = vst.msk [vmem:[#allocation2 + $0x90] sm:$0xff] %vm200, 0.0
      %221 = vst.msk [vmem:[#allocation2 + $0x98] sm:$0x3] %vm202, 0.0
      %s222 = scalar_lea.vmem [#allocation2], 16
      %223 = vst.msk [vmem:[%s222 + $0x1] sm:$0xff] %vm200, %v192
      %224 = vst.msk [vmem:[%s222 + $0x11] sm:$0xff] %vm200, %v193
      %225 = vst.msk [vmem:[%s222 + $0x21] sm:$0xff] %vm200, %v194
      %226 = vst.msk [vmem:[%s222 + $0x31] sm:$0xff] %vm200, %v195
      %227 = vst.msk [vmem:[%s222 + $0x41] sm:$0xff] %vm200, %v196
      %228 = vst.msk [vmem:[%s222 + $0x51] sm:$0xff] %vm200, %v197
      %229 = vst.msk [vmem:[%s222 + $0x61] sm:$0xff] %vm200, %v198
      %230 = vst.msk [vmem:[%s222 + $0x71] sm:$0xff] %vm200, %v199
      %v231 = vld [vmem:[#allocation2] sm:$0xff]
      %v232 = vld [vmem:[#allocation2 + $0x10] sm:$0xff]
      %v233 = vld [vmem:[#allocation2 + $0x20] sm:$0xff]
      %v234 = vld [vmem:[#allocation2 + $0x30] sm:$0xff]
      %v235 = vld [vmem:[#allocation2 + $0x40] sm:$0xff]
      %v236 = vld [vmem:[#allocation2 + $0x50] sm:$0xff]
      %v237 = vld [vmem:[#allocation2 + $0x60] sm:$0xff]
      %v238 = vld [vmem:[#allocation2 + $0x70] sm:$0xff]
      %v239 = vpack.c.bf16 %v232, %v231
      %v240 = vpack.c.bf16 %v234, %v233
      %v241 = vpack.c.bf16 %v236, %v235
      %v242 = vpack.c.bf16 %v238, %v237
      %v243 = vld [vmem:[%s1] sm:$0xf]
      %v244 = vld [vmem:[#allocation2 + $0x1] sm:$0xff]
      %v245 = vld [vmem:[#allocation2 + $0x11] sm:$0xff]
      %v246 = vld [vmem:[#allocation2 + $0x21] sm:$0xff]
      %v247 = vld [vmem:[#allocation2 + $0x31] sm:$0xff]
      %v248 = vld [vmem:[#allocation2 + $0x41] sm:$0xff]
      %v249 = vld [vmem:[#allocation2 + $0x51] sm:$0xff]
      %v250 = vld [vmem:[#allocation2 + $0x61] sm:$0xff]
      %v251 = vld [vmem:[#allocation2 + $0x71] sm:$0xff]
      %v252 = vpack.c.bf16 %v245, %v244
      %v253 = vpack.c.bf16 %v247, %v246
      %v254 = vpack.c.bf16 %v249, %v248
      %v255 = vpack.c.bf16 %v251, %v250
      %s256 = scalar_lea.vmem %s1, 4
      %v257 = vld [vmem:[%s256] sm:$0xf]
      %v259 = vsel %vm200, %v252, 0
      %v262 = vsel %vm200, %v253, 0
      %v265 = vsel %vm200, %v254, 0
      %v268 = vsel %vm200, %v255, 0
      %vm270 = vcmask 1043456
      %v272 = vsel %vm270, %v257, 0
      %274 = vmatprep.subr.bf16.mxu0 0
      %275 = vmatpush1.bf16.msra.mxu0 %v272
      %276 = vmatprep.subr.bf16.mxu0 0
      %277 = vmatpush1.bf16.msra.mxu0 0
      %278 = vmatprep.subr.bf16.mxu0 0
      %279 = vmatpush1.bf16.msra.mxu0 0
      %280 = vmatprep.subr.bf16.mxu0 0
      %281 = vmatpush1.bf16.msra.mxu0 0
      %282 = vmatprep.subr.bf16.mxu0 0
      %283 = vmatpush1.bf16.msra.mxu0 0
      %284 = vmatprep.subr.bf16.mxu0 0
      %285 = vmatpush1.bf16.msra.mxu0 0
      %286 = vmatprep.subr.bf16.mxu0 0
      %287 = vmatpush1.bf16.msra.mxu0 0
      %288 = vmatprep.subr.bf16.mxu0 0
      %289 = vmatpush1.bf16.msra.mxu0 0
      %290 = vmatprep.subr.bf16.mxu0 0
      %291 = vmatpush1.bf16.msra.mxu0 0
      %292 = vmatprep.subr.bf16.mxu0 0
      %293 = vmatpush1.bf16.msra.mxu0 0
      %294 = vmatprep.subr.bf16.mxu0 0
      %295 = vmatpush1.bf16.msra.mxu0 0
      %296 = vmatprep.subr.bf16.mxu0 0
      %297 = vmatpush1.bf16.msra.mxu0 0
      %298 = vmatprep.subr.bf16.mxu0 0
      %299 = vmatpush1.bf16.msra.mxu0 0
      %300 = vmatprep.subr.bf16.mxu0 0
      %301 = vmatpush1.bf16.msra.mxu0 0
      %302 = vmatprep.subr.bf16.mxu0 0
      %303 = vmatpush1.bf16.msra.mxu0 0
      %304 = vmatprep.subr.bf16.mxu0 0
      %305 = vmatpush1.bf16.msra.mxu0 0
      %306 = vmatprep.mubr.bf16.mxu0 0
      %307 = vmatmul.mubr.bf16.gmra.mrb[0].mxu0 %v259
      %v308 = vpop.f32.mrb[0].mxu0
      %v309 = vadd.f32 0.0, %v308
      %v310 = vpop.f32.mrb[0].mxu0
      %v311 = vpop.f32.mrb[0].mxu0
      %v312 = vadd.f32 0.0, %v311
      %v313 = vpop.f32.mrb[0].mxu0
      %314 = vmatprep.mubr.bf16.mxu0 0
      %315 = vmatmul.mubr.bf16.gmra.mrb[0].mxu0 %v262
      %v316 = vpop.f32.mrb[0].mxu0
      %v317 = vadd.f32 0.0, %v316
      %v318 = vpop.f32.mrb[0].mxu0
      %v319 = vpop.f32.mrb[0].mxu0
      %v320 = vadd.f32 0.0, %v319
      %v321 = vpop.f32.mrb[0].mxu0
      %322 = vmatprep.mubr.bf16.mxu0 0
      %323 = vmatmul.mubr.bf16.gmra.mrb[0].mxu0 %v265
      %v324 = vpop.f32.mrb[0].mxu0
      %v325 = vadd.f32 0.0, %v324
      %v326 = vpop.f32.mrb[0].mxu0
      %v327 = vpop.f32.mrb[0].mxu0
      %v328 = vadd.f32 0.0, %v327
      %v329 = vpop.f32.mrb[0].mxu0
      %330 = vmatprep.mubr.bf16.mxu0 0
      %331 = vmatmul.mubr.bf16.gmra.mrb[0].mxu0 %v268
      %v332 = vpop.f32.mrb[0].mxu0
      %v333 = vadd.f32 0.0, %v332
      %v334 = vpop.f32.mrb[0].mxu0
      %v335 = vpop.f32.mrb[0].mxu0
      %v336 = vadd.f32 0.0, %v335
      %v337 = vpop.f32.mrb[0].mxu0
      %338 = vdwg.mxu0
      %v340 = vsel %vm200, %v239, 0
      %v343 = vsel %vm200, %v240, 0
      %v346 = vsel %vm200, %v241, 0
      %v349 = vsel %vm200, %v242, 0
      %v352 = vsel %vm270, %v243, 0
      %354 = vmatprep.subr.bf16.mxu0 0
      %355 = vmatpush1.bf16.msra.mxu0 %v352
      %356 = vmatprep.subr.bf16.mxu0 0
      %357 = vmatpush1.bf16.msra.mxu0 0
      %358 = vmatprep.subr.bf16.mxu0 0
      %359 = vmatpush1.bf16.msra.mxu0 0
      %360 = vmatprep.subr.bf16.mxu0 0
      %361 = vmatpush1.bf16.msra.mxu0 0
      %362 = vmatprep.subr.bf16.mxu0 0
      %363 = vmatpush1.bf16.msra.mxu0 0
      %364 = vmatprep.subr.bf16.mxu0 0
      %365 = vmatpush1.bf16.msra.mxu0 0
      %366 = vmatprep.subr.bf16.mxu0 0
      %367 = vmatpush1.bf16.msra.mxu0 0
      %368 = vmatprep.subr.bf16.mxu0 0
      %369 = vmatpush1.bf16.msra.mxu0 0
      %370 = vmatprep.subr.bf16.mxu0 0
      %371 = vmatpush1.bf16.msra.mxu0 0
      %372 = vmatprep.subr.bf16.mxu0 0
      %373 = vmatpush1.bf16.msra.mxu0 0
      %374 = vmatprep.subr.bf16.mxu0 0
      %375 = vmatpush1.bf16.msra.mxu0 0
      %376 = vmatprep.subr.bf16.mxu0 0
      %377 = vmatpush1.bf16.msra.mxu0 0
      %378 = vmatprep.subr.bf16.mxu0 0
      %379 = vmatpush1.bf16.msra.mxu0 0
      %380 = vmatprep.subr.bf16.mxu0 0
      %381 = vmatpush1.bf16.msra.mxu0 0
      %382 = vmatprep.subr.bf16.mxu0 0
      %383 = vmatpush1.bf16.msra.mxu0 0
      %384 = vmatprep.subr.bf16.mxu0 0
      %385 = vmatpush1.bf16.msra.mxu0 0
      %386 = vmatprep.mubr.bf16.mxu0 0
      %387 = vmatmul.mubr.bf16.gmra.mrb[0].mxu0 %v340
      %v388 = vpop.f32.mrb[0].mxu0
      %v389 = vadd.f32 %v309, %v388
      %v390 = vpop.f32.mrb[0].mxu0
      %v391 = vpop.f32.mrb[0].mxu0
      %v392 = vadd.f32 %v312, %v391
      %v393 = vpop.f32.mrb[0].mxu0
      %394 = vmatprep.mubr.bf16.mxu0 0
      %395 = vmatmul.mubr.bf16.gmra.mrb[0].mxu0 %v343
      %v396 = vpop.f32.mrb[0].mxu0
      %v397 = vadd.f32 %v317, %v396
      %v398 = vpop.f32.mrb[0].mxu0
      %v399 = vpop.f32.mrb[0].mxu0
      %v400 = vadd.f32 %v320, %v399
      %v401 = vpop.f32.mrb[0].mxu0
      %402 = vmatprep.mubr.bf16.mxu0 0
      %403 = vmatmul.mubr.bf16.gmra.mrb[0].mxu0 %v346
      %v404 = vpop.f32.mrb[0].mxu0
      %v405 = vadd.f32 %v325, %v404
      %v406 = vpop.f32.mrb[0].mxu0
      %v407 = vpop.f32.mrb[0].mxu0
      %v408 = vadd.f32 %v328, %v407
      %v409 = vpop.f32.mrb[0].mxu0
      %410 = vmatprep.mubr.bf16.mxu0 0
      %411 = vmatmul.mubr.bf16.gmra.mrb[0].mxu0 %v349
      %v412 = vpop.f32.mrb[0].mxu0
      %v413 = vadd.f32 %v333, %v412
      %v414 = vpop.f32.mrb[0].mxu0
      %v415 = vpop.f32.mrb[0].mxu0
      %v416 = vadd.f32 %v336, %v415
      %v417 = vpop.f32.mrb[0].mxu0
      %418 = vdwg.mxu0
      %v419 = vld [vmem:[#allocation2 + $0x2] sm:$0xff]
      %v420 = vld [vmem:[#allocation2 + $0x12] sm:$0xff]
      %v421 = vld [vmem:[#allocation2 + $0x22] sm:$0xff]
      %v422 = vld [vmem:[#allocation2 + $0x32] sm:$0xff]
      %v423 = vld [vmem:[#allocation2 + $0x42] sm:$0xff]
      %v424 = vld [vmem:[#allocation2 + $0x52] sm:$0xff]
      %v425 = vld [vmem:[#allocation2 + $0x62] sm:$0xff]
      %v426 = vld [vmem:[#allocation2 + $0x72] sm:$0xff]
      %v427 = vpack.c.bf16 %v420, %v419
      %v428 = vpack.c.bf16 %v422, %v421
      %v429 = vpack.c.bf16 %v424, %v423
      %v430 = vpack.c.bf16 %v426, %v425
      %s431 = scalar_lea.vmem %s1, 8
      %v432 = vld [vmem:[%s431] sm:$0xf]
      %v434 = vsel %vm200, %v427, 0
      %v437 = vsel %vm200, %v428, 0
      %v440 = vsel %vm200, %v429, 0
      %v443 = vsel %vm200, %v430, 0
      %v446 = vsel %vm270, %v432, 0
      %448 = vmatprep.subr.bf16.mxu0 0
      %449 = vmatpush1.bf16.msra.mxu0 %v446
      %450 = vmatprep.subr.bf16.mxu0 0
      %451 = vmatpush1.bf16.msra.mxu0 0
      %452 = vmatprep.subr.bf16.mxu0 0
      %453 = vmatpush1.bf16.msra.mxu0 0
      %454 = vmatprep.subr.bf16.mxu0 0
      %455 = vmatpush1.bf16.msra.mxu0 0
      %456 = vmatprep.subr.bf16.mxu0 0
      %457 = vmatpush1.bf16.msra.mxu0 0
      %458 = vmatprep.subr.bf16.mxu0 0
      %459 = vmatpush1.bf16.msra.mxu0 0
      %460 = vmatprep.subr.bf16.mxu0 0
      %461 = vmatpush1.bf16.msra.mxu0 0
      %462 = vmatprep.subr.bf16.mxu0 0
      %463 = vmatpush1.bf16.msra.mxu0 0
      %464 = vmatprep.subr.bf16.mxu0 0
      %465 = vmatpush1.bf16.msra.mxu0 0
      %466 = vmatprep.subr.bf16.mxu0 0
      %467 = vmatpush1.bf16.msra.mxu0 0
      %468 = vmatprep.subr.bf16.mxu0 0
      %469 = vmatpush1.bf16.msra.mxu0 0
      %470 = vmatprep.subr.bf16.mxu0 0
      %471 = vmatpush1.bf16.msra.mxu0 0
      %472 = vmatprep.subr.bf16.mxu0 0
      %473 = vmatpush1.bf16.msra.mxu0 0
      %474 = vmatprep.subr.bf16.mxu0 0
      %475 = vmatpush1.bf16.msra.mxu0 0
      %476 = vmatprep.subr.bf16.mxu0 0
      %477 = vmatpush1.bf16.msra.mxu0 0
      %478 = vmatprep.subr.bf16.mxu0 0
      %479 = vmatpush1.bf16.msra.mxu0 0
      %480 = vmatprep.mubr.bf16.mxu0 0
      %481 = vmatmul.mubr.bf16.gmra.mrb[0].mxu0 %v434
      %v482 = vpop.f32.mrb[0].mxu0
      %v483 = vadd.f32 0.0, %v482
      %v484 = vpop.f32.mrb[0].mxu0
      %v485 = vpop.f32.mrb[0].mxu0
      %v486 = vadd.f32 0.0, %v485
      %v487 = vpop.f32.mrb[0].mxu0
      %488 = vmatprep.mubr.bf16.mxu0 0
      %489 = vmatmul.mubr.bf16.gmra.mrb[0].mxu0 %v437
      %v490 = vpop.f32.mrb[0].mxu0
      %v491 = vadd.f32 0.0, %v490
      %v492 = vpop.f32.mrb[0].mxu0
      %v493 = vpop.f32.mrb[0].mxu0
      %v494 = vadd.f32 0.0, %v493
      %v495 = vpop.f32.mrb[0].mxu0
      %496 = vmatprep.mubr.bf16.mxu0 0
      %497 = vmatmul.mubr.bf16.gmra.mrb[0].mxu0 %v440
      %v498 = vpop.f32.mrb[0].mxu0
      %v499 = vadd.f32 0.0, %v498
      %v500 = vpop.f32.mrb[0].mxu0
      %v501 = vpop.f32.mrb[0].mxu0
      %v502 = vadd.f32 0.0, %v501
      %v503 = vpop.f32.mrb[0].mxu0
      %504 = vmatprep.mubr.bf16.mxu0 0
      %505 = vmatmul.mubr.bf16.gmra.mrb[0].mxu0 %v443
      %v506 = vpop.f32.mrb[0].mxu0
      %v507 = vadd.f32 0.0, %v506
      %v508 = vpop.f32.mrb[0].mxu0
      %v509 = vpop.f32.mrb[0].mxu0
      %v510 = vadd.f32 0.0, %v509
      %v511 = vpop.f32.mrb[0].mxu0
      %512 = vdwg.mxu0
      %v513 = vadd.f32 %v389, %v483
      %v514 = vadd.f32 %v392, %v486
      %v515 = vadd.f32 %v397, %v491
      %v516 = vadd.f32 %v400, %v494
      %v517 = vadd.f32 %v405, %v499
      %v518 = vadd.f32 %v408, %v502
      %v519 = vadd.f32 %v413, %v507
      %v520 = vadd.f32 %v416, %v510
      %v521 = vld [vmem:[%s222] sm:$0xff]
      %v522 = vld [vmem:[%s222 + $0x10] sm:$0xff]
      %v523 = vld [vmem:[%s222 + $0x20] sm:$0xff]
      %v524 = vld [vmem:[%s222 + $0x30] sm:$0xff]
      %v525 = vld [vmem:[%s222 + $0x40] sm:$0xff]
      %v526 = vld [vmem:[%s222 + $0x50] sm:$0xff]
      %v527 = vld [vmem:[%s222 + $0x60] sm:$0xff]
      %v528 = vld [vmem:[%s222 + $0x70] sm:$0xff]
      %v529 = vpack.c.bf16 %v522, %v521
      %v530 = vpack.c.bf16 %v524, %v523
      %v531 = vpack.c.bf16 %v526, %v525
      %v532 = vpack.c.bf16 %v528, %v527
      %s533 = scalar_lea.vmem %s1, 12
      %v534 = vld [vmem:[%s533] sm:$0xf]
      %v536 = vsel %vm200, %v529, 0
      %v539 = vsel %vm200, %v530, 0
      %v542 = vsel %vm200, %v531, 0
      %v545 = vsel %vm200, %v532, 0
      %v548 = vsel %vm270, %v534, 0
      %550 = vmatprep.subr.bf16.mxu0 0
      %551 = vmatpush1.bf16.msra.mxu0 %v548
      %552 = vmatprep.subr.bf16.mxu0 0
      %553 = vmatpush1.bf16.msra.mxu0 0
      %554 = vmatprep.subr.bf16.mxu0 0
      %555 = vmatpush1.bf16.msra.mxu0 0
      %556 = vmatprep.subr.bf16.mxu0 0
      %557 = vmatpush1.bf16.msra.mxu0 0
      %558 = vmatprep.subr.bf16.mxu0 0
      %559 = vmatpush1.bf16.msra.mxu0 0
      %560 = vmatprep.subr.bf16.mxu0 0
      %561 = vmatpush1.bf16.msra.mxu0 0
      %562 = vmatprep.subr.bf16.mxu0 0
      %563 = vmatpush1.bf16.msra.mxu0 0
      %564 = vmatprep.subr.bf16.mxu0 0
      %565 = vmatpush1.bf16.msra.mxu0 0
      %566 = vmatprep.subr.bf16.mxu0 0
      %567 = vmatpush1.bf16.msra.mxu0 0
      %568 = vmatprep.subr.bf16.mxu0 0
      %569 = vmatpush1.bf16.msra.mxu0 0
      %570 = vmatprep.subr.bf16.mxu0 0
      %571 = vmatpush1.bf16.msra.mxu0 0
      %572 = vmatprep.subr.bf16.mxu0 0
      %573 = vmatpush1.bf16.msra.mxu0 0
      %574 = vmatprep.subr.bf16.mxu0 0
      %575 = vmatpush1.bf16.msra.mxu0 0
      %576 = vmatprep.subr.bf16.mxu0 0
      %577 = vmatpush1.bf16.msra.mxu0 0
      %578 = vmatprep.subr.bf16.mxu0 0
      %579 = vmatpush1.bf16.msra.mxu0 0
      %580 = vmatprep.subr.bf16.mxu0 0
      %581 = vmatpush1.bf16.msra.mxu0 0
      %582 = vmatprep.mubr.bf16.mxu0 0
      %583 = vmatmul.mubr.bf16.gmra.mrb[0].mxu0 %v536
      %v584 = vpop.f32.mrb[0].mxu0
      %v585 = vadd.f32 0.0, %v584
      %v586 = vpop.f32.mrb[0].mxu0
      %v587 = vpop.f32.mrb[0].mxu0
      %v588 = vadd.f32 0.0, %v587
      %v589 = vpop.f32.mrb[0].mxu0
      %590 = vmatprep.mubr.bf16.mxu0 0
      %591 = vmatmul.mubr.bf16.gmra.mrb[0].mxu0 %v539
      %v592 = vpop.f32.mrb[0].mxu0
      %v593 = vadd.f32 0.0, %v592
      %v594 = vpop.f32.mrb[0].mxu0
      %v595 = vpop.f32.mrb[0].mxu0
      %v596 = vadd.f32 0.0, %v595
      %v597 = vpop.f32.mrb[0].mxu0
      %598 = vmatprep.mubr.bf16.mxu0 0
      %599 = vmatmul.mubr.bf16.gmra.mrb[0].mxu0 %v542
      %v600 = vpop.f32.mrb[0].mxu0
      %v601 = vadd.f32 0.0, %v600
      %v602 = vpop.f32.mrb[0].mxu0
      %v603 = vpop.f32.mrb[0].mxu0
      %v604 = vadd.f32 0.0, %v603
      %v605 = vpop.f32.mrb[0].mxu0
      %606 = vmatprep.mubr.bf16.mxu0 0
      %607 = vmatmul.mubr.bf16.gmra.mrb[0].mxu0 %v545
      %v608 = vpop.f32.mrb[0].mxu0
      %v609 = vadd.f32 0.0, %v608
      %v610 = vpop.f32.mrb[0].mxu0
      %v611 = vpop.f32.mrb[0].mxu0
      %v612 = vadd.f32 0.0, %v611
      %v613 = vpop.f32.mrb[0].mxu0
      %614 = vdwg.mxu0
      %v615 = vadd.f32 %v513, %v585
      %v616 = vadd.f32 %v514, %v588
      %v617 = vadd.f32 %v515, %v593
      %v618 = vadd.f32 %v516, %v596
      %v619 = vadd.f32 %v517, %v601
      %v620 = vadd.f32 %v518, %v604
      %v621 = vadd.f32 %v519, %v609
      %v622 = vadd.f32 %v520, %v612
      %v623 = vld [vmem:[%s222 + $0x1] sm:$0xff]
      %v624 = vld [vmem:[%s222 + $0x11] sm:$0xff]
      %v625 = vld [vmem:[%s222 + $0x21] sm:$0xff]
      %v626 = vld [vmem:[%s222 + $0x31] sm:$0xff]
      %v627 = vld [vmem:[%s222 + $0x41] sm:$0xff]
      %v628 = vld [vmem:[%s222 + $0x51] sm:$0xff]
      %v629 = vld [vmem:[%s222 + $0x61] sm:$0xff]
      %v630 = vld [vmem:[%s222 + $0x71] sm:$0xff]
      %v631 = vpack.c.bf16 %v624, %v623
      %v632 = vpack.c.bf16 %v626, %v625
      %v633 = vpack.c.bf16 %v628, %v627
      %v634 = vpack.c.bf16 %v630, %v629
      %s635 = scalar_lea.vmem %s1, 16
      %v636 = vld [vmem:[%s635] sm:$0xf]
      %v638 = vsel %vm200, %v631, 0
      %v641 = vsel %vm200, %v632, 0
      %v644 = vsel %vm200, %v633, 0
      %v647 = vsel %vm200, %v634, 0
      %v650 = vsel %vm270, %v636, 0
      %652 = vmatprep.subr.bf16.mxu0 0
      %653 = vmatpush1.bf16.msra.mxu0 %v650
      %654 = vmatprep.subr.bf16.mxu0 0
      %655 = vmatpush1.bf16.msra.mxu0 0
      %656 = vmatprep.subr.bf16.mxu0 0
      %657 = vmatpush1.bf16.msra.mxu0 0
      %658 = vmatprep.subr.bf16.mxu0 0
      %659 = vmatpush1.bf16.msra.mxu0 0
      %660 = vmatprep.subr.bf16.mxu0 0
      %661 = vmatpush1.bf16.msra.mxu0 0
      %662 = vmatprep.subr.bf16.mxu0 0
      %663 = vmatpush1.bf16.msra.mxu0 0
      %664 = vmatprep.subr.bf16.mxu0 0
      %665 = vmatpush1.bf16.msra.mxu0 0
      %666 = vmatprep.subr.bf16.mxu0 0
      %667 = vmatpush1.bf16.msra.mxu0 0
      %668 = vmatprep.subr.bf16.mxu0 0
      %669 = vmatpush1.bf16.msra.mxu0 0
      %670 = vmatprep.subr.bf16.mxu0 0
      %671 = vmatpush1.bf16.msra.mxu0 0
      %672 = vmatprep.subr.bf16.mxu0 0
      %673 = vmatpush1.bf16.msra.mxu0 0
      %674 = vmatprep.subr.bf16.mxu0 0
      %675 = vmatpush1.bf16.msra.mxu0 0
      %676 = vmatprep.subr.bf16.mxu0 0
      %677 = vmatpush1.bf16.msra.mxu0 0
      %678 = vmatprep.subr.bf16.mxu0 0
      %679 = vmatpush1.bf16.msra.mxu0 0
      %680 = vmatprep.subr.bf16.mxu0 0
      %681 = vmatpush1.bf16.msra.mxu0 0
      %682 = vmatprep.subr.bf16.mxu0 0
      %683 = vmatpush1.bf16.msra.mxu0 0
      %684 = vmatprep.mubr.bf16.mxu0 0
      %685 = vmatmul.mubr.bf16.gmra.mrb[0].mxu0 %v638
      %v686 = vpop.f32.mrb[0].mxu0
      %v687 = vadd.f32 0.0, %v686
      %v688 = vpop.f32.mrb[0].mxu0
      %v689 = vpop.f32.mrb[0].mxu0
      %v690 = vadd.f32 0.0, %v689
      %v691 = vpop.f32.mrb[0].mxu0
      %692 = vmatprep.mubr.bf16.mxu0 0
      %693 = vmatmul.mubr.bf16.gmra.mrb[0].mxu0 %v641
      %v694 = vpop.f32.mrb[0].mxu0
      %v695 = vadd.f32 0.0, %v694
      %v696 = vpop.f32.mrb[0].mxu0
      %v697 = vpop.f32.mrb[0].mxu0
      %v698 = vadd.f32 0.0, %v697
      %v699 = vpop.f32.mrb[0].mxu0
      %700 = vmatprep.mubr.bf16.mxu0 0
      %701 = vmatmul.mubr.bf16.gmra.mrb[0].mxu0 %v644
      %v702 = vpop.f32.mrb[0].mxu0
      %v703 = vadd.f32 0.0, %v702
      %v704 = vpop.f32.mrb[0].mxu0
      %v705 = vpop.f32.mrb[0].mxu0
      %v706 = vadd.f32 0.0, %v705
      %v707 = vpop.f32.mrb[0].mxu0
      %708 = vmatprep.mubr.bf16.mxu0 0
      %709 = vmatmul.mubr.bf16.gmra.mrb[0].mxu0 %v647
      %v710 = vpop.f32.mrb[0].mxu0
      %v711 = vadd.f32 0.0, %v710
      %v712 = vpop.f32.mrb[0].mxu0
      %v713 = vpop.f32.mrb[0].mxu0
      %v714 = vadd.f32 0.0, %v713
      %v715 = vpop.f32.mrb[0].mxu0
      %716 = vdwg.mxu0
      %v717 = vadd.f32 %v615, %v687
      %v718 = vadd.f32 %v616, %v690
      %v719 = vadd.f32 %v617, %v695
      %v720 = vadd.f32 %v618, %v698
      %v721 = vadd.f32 %v619, %v703
      %v722 = vadd.f32 %v620, %v706
      %v723 = vadd.f32 %v621, %v711
      %v724 = vadd.f32 %v622, %v714
      %v725 = vld [vmem:[%s222 + $0x2] sm:$0xff]
      %v726 = vld [vmem:[%s222 + $0x12] sm:$0xff]
      %v727 = vld [vmem:[%s222 + $0x22] sm:$0xff]
      %v728 = vld [vmem:[%s222 + $0x32] sm:$0xff]
      %v729 = vld [vmem:[%s222 + $0x42] sm:$0xff]
      %v730 = vld [vmem:[%s222 + $0x52] sm:$0xff]
      %v731 = vld [vmem:[%s222 + $0x62] sm:$0xff]
      %v732 = vld [vmem:[%s222 + $0x72] sm:$0xff]
      %v733 = vpack.c.bf16 %v726, %v725
      %v734 = vpack.c.bf16 %v728, %v727
      %v735 = vpack.c.bf16 %v730, %v729
      %v736 = vpack.c.bf16 %v732, %v731
      %s737 = scalar_lea.vmem %s1, 20
      %v738 = vld [vmem:[%s737] sm:$0xf]
      %v740 = vsel %vm200, %v733, 0
      %v743 = vsel %vm200, %v734, 0
      %v746 = vsel %vm200, %v735, 0
      %v749 = vsel %vm200, %v736, 0
      %v752 = vsel %vm270, %v738, 0
      %754 = vmatprep.subr.bf16.mxu0 0
      %755 = vmatpush1.bf16.msra.mxu0 %v752
      %756 = vmatprep.subr.bf16.mxu0 0
      %757 = vmatpush1.bf16.msra.mxu0 0
      %758 = vmatprep.subr.bf16.mxu0 0
      %759 = vmatpush1.bf16.msra.mxu0 0
      %760 = vmatprep.subr.bf16.mxu0 0
      %761 = vmatpush1.bf16.msra.mxu0 0
      %762 = vmatprep.subr.bf16.mxu0 0
      %763 = vmatpush1.bf16.msra.mxu0 0
      %764 = vmatprep.subr.bf16.mxu0 0
      %765 = vmatpush1.bf16.msra.mxu0 0
      %766 = vmatprep.subr.bf16.mxu0 0
      %767 = vmatpush1.bf16.msra.mxu0 0
      %768 = vmatprep.subr.bf16.mxu0 0
      %769 = vmatpush1.bf16.msra.mxu0 0
      %770 = vmatprep.subr.bf16.mxu0 0
      %771 = vmatpush1.bf16.msra.mxu0 0
      %772 = vmatprep.subr.bf16.mxu0 0
      %773 = vmatpush1.bf16.msra.mxu0 0
      %774 = vmatprep.subr.bf16.mxu0 0
      %775 = vmatpush1.bf16.msra.mxu0 0
      %776 = vmatprep.subr.bf16.mxu0 0
      %777 = vmatpush1.bf16.msra.mxu0 0
      %778 = vmatprep.subr.bf16.mxu0 0
      %779 = vmatpush1.bf16.msra.mxu0 0
      %780 = vmatprep.subr.bf16.mxu0 0
      %781 = vmatpush1.bf16.msra.mxu0 0
      %782 = vmatprep.subr.bf16.mxu0 0
      %783 = vmatpush1.bf16.msra.mxu0 0
      %784 = vmatprep.subr.bf16.mxu0 0
      %785 = vmatpush1.bf16.msra.mxu0 0
      %786 = vmatprep.mubr.bf16.mxu0 0
      %787 = vmatmul.mubr.bf16.gmra.mrb[0].mxu0 %v740
      %v788 = vpop.f32.mrb[0].mxu0
      %v789 = vadd.f32 0.0, %v788
      %v790 = vpop.f32.mrb[0].mxu0
      %v791 = vpop.f32.mrb[0].mxu0
      %v792 = vadd.f32 0.0, %v791
      %v793 = vpop.f32.mrb[0].mxu0
      %794 = vmatprep.mubr.bf16.mxu0 0
      %795 = vmatmul.mubr.bf16.gmra.mrb[0].mxu0 %v743
      %v796 = vpop.f32.mrb[0].mxu0
      %v797 = vadd.f32 0.0, %v796
      %v798 = vpop.f32.mrb[0].mxu0
      %v799 = vpop.f32.mrb[0].mxu0
      %v800 = vadd.f32 0.0, %v799
      %v801 = vpop.f32.mrb[0].mxu0
      %802 = vmatprep.mubr.bf16.mxu0 0
      %803 = vmatmul.mubr.bf16.gmra.mrb[0].mxu0 %v746
      %v804 = vpop.f32.mrb[0].mxu0
      %v805 = vadd.f32 0.0, %v804
      %v806 = vpop.f32.mrb[0].mxu0
      %v807 = vpop.f32.mrb[0].mxu0
      %v808 = vadd.f32 0.0, %v807
      %v809 = vpop.f32.mrb[0].mxu0
      %810 = vmatprep.mubr.bf16.mxu0 0
      %811 = vmatmul.mubr.bf16.gmra.mrb[0].mxu0 %v749
      %v812 = vpop.f32.mrb[0].mxu0
      %v813 = vadd.f32 0.0, %v812
      %v814 = vpop.f32.mrb[0].mxu0
      %v815 = vpop.f32.mrb[0].mxu0
      %v816 = vadd.f32 0.0, %v815
      %v817 = vpop.f32.mrb[0].mxu0
      %818 = vdwg.mxu0
      %v819 = vadd.f32 %v717, %v789
      %v820 = vadd.f32 %v718, %v792
      %v821 = vadd.f32 %v719, %v797
      %v822 = vadd.f32 %v720, %v800
      %v823 = vadd.f32 %v721, %v805
      %v824 = vadd.f32 %v722, %v808
      %v825 = vadd.f32 %v723, %v813
      %v826 = vadd.f32 %v724, %v816
      %s827 = scalar_lea.vmem [#allocation2], 32
      %v828 = vld [vmem:[%s827] sm:$0xff]
      %v829 = vld [vmem:[%s827 + $0x10] sm:$0xff]
      %v830 = vld [vmem:[%s827 + $0x20] sm:$0xff]
      %v831 = vld [vmem:[%s827 + $0x30] sm:$0xff]
      %v832 = vld [vmem:[%s827 + $0x40] sm:$0xff]
      %v833 = vld [vmem:[%s827 + $0x50] sm:$0xff]
      %v834 = vld [vmem:[%s827 + $0x60] sm:$0xff]
      %v835 = vld [vmem:[%s827 + $0x70] sm:$0xff]
      %v836 = vpack.c.bf16 %v829, %v828
      %v837 = vpack.c.bf16 %v831, %v830
      %v838 = vpack.c.bf16 %v833, %v832
      %v839 = vpack.c.bf16 %v835, %v834
      %s840 = scalar_lea.vmem %s1, 24
      %v841 = vld [vmem:[%s840] sm:$0xf]
      %v843 = vsel %vm200, %v836, 0
      %v846 = vsel %vm200, %v837, 0
      %v849 = vsel %vm200, %v838, 0
      %v852 = vsel %vm200, %v839, 0
      %v855 = vsel %vm270, %v841, 0
      %857 = vmatprep.subr.bf16.mxu0 0
      %858 = vmatpush1.bf16.msra.mxu0 %v855
      %859 = vmatprep.subr.bf16.mxu0 0
      %860 = vmatpush1.bf16.msra.mxu0 0
      %861 = vmatprep.subr.bf16.mxu0 0
      %862 = vmatpush1.bf16.msra.mxu0 0
      %863 = vmatprep.subr.bf16.mxu0 0
      %864 = vmatpush1.bf16.msra.mxu0 0
      %865 = vmatprep.subr.bf16.mxu0 0
      %866 = vmatpush1.bf16.msra.mxu0 0
      %867 = vmatprep.subr.bf16.mxu0 0
      %868 = vmatpush1.bf16.msra.mxu0 0
      %869 = vmatprep.subr.bf16.mxu0 0
      %870 = vmatpush1.bf16.msra.mxu0 0
      %871 = vmatprep.subr.bf16.mxu0 0
      %872 = vmatpush1.bf16.msra.mxu0 0
      %873 = vmatprep.subr.bf16.mxu0 0
      %874 = vmatpush1.bf16.msra.mxu0 0
      %875 = vmatprep.subr.bf16.mxu0 0
      %876 = vmatpush1.bf16.msra.mxu0 0
      %877 = vmatprep.subr.bf16.mxu0 0
      %878 = vmatpush1.bf16.msra.mxu0 0
      %879 = vmatprep.subr.bf16.mxu0 0
      %880 = vmatpush1.bf16.msra.mxu0 0
      %881 = vmatprep.subr.bf16.mxu0 0
      %882 = vmatpush1.bf16.msra.mxu0 0
      %883 = vmatprep.subr.bf16.mxu0 0
      %884 = vmatpush1.bf16.msra.mxu0 0
      %885 = vmatprep.subr.bf16.mxu0 0
      %886 = vmatpush1.bf16.msra.mxu0 0
      %887 = vmatprep.subr.bf16.mxu0 0
      %888 = vmatpush1.bf16.msra.mxu0 0
      %889 = vmatprep.mubr.bf16.mxu0 0
      %890 = vmatmul.mubr.bf16.gmra.mrb[0].mxu0 %v843
      %v891 = vpop.f32.mrb[0].mxu0
      %v892 = vadd.f32 0.0, %v891
      %v893 = vpop.f32.mrb[0].mxu0
      %v894 = vpop.f32.mrb[0].mxu0
      %v895 = vadd.f32 0.0, %v894
      %v896 = vpop.f32.mrb[0].mxu0
      %897 = vmatprep.mubr.bf16.mxu0 0
      %898 = vmatmul.mubr.bf16.gmra.mrb[0].mxu0 %v846
      %v899 = vpop.f32.mrb[0].mxu0
      %v900 = vadd.f32 0.0, %v899
      %v901 = vpop.f32.mrb[0].mxu0
      %v902 = vpop.f32.mrb[0].mxu0
      %v903 = vadd.f32 0.0, %v902
      %v904 = vpop.f32.mrb[0].mxu0
      %905 = vmatprep.mubr.bf16.mxu0 0
      %906 = vmatmul.mubr.bf16.gmra.mrb[0].mxu0 %v849
      %v907 = vpop.f32.mrb[0].mxu0
      %v908 = vadd.f32 0.0, %v907
      %v909 = vpop.f32.mrb[0].mxu0
      %v910 = vpop.f32.mrb[0].mxu0
      %v911 = vadd.f32 0.0, %v910
      %v912 = vpop.f32.mrb[0].mxu0
      %913 = vmatprep.mubr.bf16.mxu0 0
      %914 = vmatmul.mubr.bf16.gmra.mrb[0].mxu0 %v852
      %v915 = vpop.f32.mrb[0].mxu0
      %v916 = vadd.f32 0.0, %v915
      %v917 = vpop.f32.mrb[0].mxu0
      %v918 = vpop.f32.mrb[0].mxu0
      %v919 = vadd.f32 0.0, %v918
      %v920 = vpop.f32.mrb[0].mxu0
      %921 = vdwg.mxu0
      %v922 = vadd.f32 %v819, %v892
      %v923 = vadd.f32 %v820, %v895
      %v924 = vadd.f32 %v821, %v900
      %v925 = vadd.f32 %v822, %v903
      %v926 = vadd.f32 %v823, %v908
      %v927 = vadd.f32 %v824, %v911
      %v928 = vadd.f32 %v825, %v916
      %v929 = vadd.f32 %v826, %v919
      %v930 = vld [vmem:[%s827 + $0x1] sm:$0xff]
      %v931 = vld [vmem:[%s827 + $0x11] sm:$0xff]
      %v932 = vld [vmem:[%s827 + $0x21] sm:$0xff]
      %v933 = vld [vmem:[%s827 + $0x31] sm:$0xff]
      %v934 = vld [vmem:[%s827 + $0x41] sm:$0xff]
      %v935 = vld [vmem:[%s827 + $0x51] sm:$0xff]
      %v936 = vld [vmem:[%s827 + $0x61] sm:$0xff]
      %v937 = vld [vmem:[%s827 + $0x71] sm:$0xff]
      %v938 = vpack.c.bf16 %v931, %v930
      %v939 = vpack.c.bf16 %v933, %v932
      %v940 = vpack.c.bf16 %v935, %v934
      %v941 = vpack.c.bf16 %v937, %v936
      %s942 = scalar_lea.vmem %s1, 28
      %v943 = vld [vmem:[%s942] sm:$0xf]
      %v945 = vsel %vm200, %v938, 0
      %v948 = vsel %vm200, %v939, 0
      %v951 = vsel %vm200, %v940, 0
      %v954 = vsel %vm200, %v941, 0
      %v957 = vsel %vm270, %v943, 0
      %959 = vmatprep.subr.bf16.mxu0 0
      %960 = vmatpush1.bf16.msra.mxu0 %v957
      %961 = vmatprep.subr.bf16.mxu0 0
      %962 = vmatpush1.bf16.msra.mxu0 0
      %963 = vmatprep.subr.bf16.mxu0 0
      %964 = vmatpush1.bf16.msra.mxu0 0
      %965 = vmatprep.subr.bf16.mxu0 0
      %966 = vmatpush1.bf16.msra.mxu0 0
      %967 = vmatprep.subr.bf16.mxu0 0
      %968 = vmatpush1.bf16.msra.mxu0 0
      %969 = vmatprep.subr.bf16.mxu0 0
      %970 = vmatpush1.bf16.msra.mxu0 0
      %971 = vmatprep.subr.bf16.mxu0 0
      %972 = vmatpush1.bf16.msra.mxu0 0
      %973 = vmatprep.subr.bf16.mxu0 0
      %974 = vmatpush1.bf16.msra.mxu0 0
      %975 = vmatprep.subr.bf16.mxu0 0
      %976 = vmatpush1.bf16.msra.mxu0 0
      %977 = vmatprep.subr.bf16.mxu0 0
      %978 = vmatpush1.bf16.msra.mxu0 0
      %979 = vmatprep.subr.bf16.mxu0 0
      %980 = vmatpush1.bf16.msra.mxu0 0
      %981 = vmatprep.subr.bf16.mxu0 0
      %982 = vmatpush1.bf16.msra.mxu0 0
      %983 = vmatprep.subr.bf16.mxu0 0
      %984 = vmatpush1.bf16.msra.mxu0 0
      %985 = vmatprep.subr.bf16.mxu0 0
      %986 = vmatpush1.bf16.msra.mxu0 0
      %987 = vmatprep.subr.bf16.mxu0 0
      %988 = vmatpush1.bf16.msra.mxu0 0
      %989 = vmatprep.subr.bf16.mxu0 0
      %990 = vmatpush1.bf16.msra.mxu0 0
      %991 = vmatprep.mubr.bf16.mxu0 0
      %992 = vmatmul.mubr.bf16.gmra.mrb[0].mxu0 %v945
      %v993 = vpop.f32.mrb[0].mxu0
      %v994 = vadd.f32 0.0, %v993
      %v995 = vpop.f32.mrb[0].mxu0
      %v996 = vpop.f32.mrb[0].mxu0
      %v997 = vadd.f32 0.0, %v996
      %v998 = vpop.f32.mrb[0].mxu0
      %999 = vmatprep.mubr.bf16.mxu0 0
      %1000 = vmatmul.mubr.bf16.gmra.mrb[0].mxu0 %v948
      %v1001 = vpop.f32.mrb[0].mxu0
      %v1002 = vadd.f32 0.0, %v1001
      %v1003 = vpop.f32.mrb[0].mxu0
      %v1004 = vpop.f32.mrb[0].mxu0
      %v1005 = vadd.f32 0.0, %v1004
      %v1006 = vpop.f32.mrb[0].mxu0
      %1007 = vmatprep.mubr.bf16.mxu0 0
      %1008 = vmatmul.mubr.bf16.gmra.mrb[0].mxu0 %v951
      %v1009 = vpop.f32.mrb[0].mxu0
      %v1010 = vadd.f32 0.0, %v1009
      %v1011 = vpop.f32.mrb[0].mxu0
      %v1012 = vpop.f32.mrb[0].mxu0
      %v1013 = vadd.f32 0.0, %v1012
      %v1014 = vpop.f32.mrb[0].mxu0
      %1015 = vmatprep.mubr.bf16.mxu0 0
      %1016 = vmatmul.mubr.bf16.gmra.mrb[0].mxu0 %v954
      %v1017 = vpop.f32.mrb[0].mxu0
      %v1018 = vadd.f32 0.0, %v1017
      %v1019 = vpop.f32.mrb[0].mxu0
      %v1020 = vpop.f32.mrb[0].mxu0
      %v1021 = vadd.f32 0.0, %v1020
      %v1022 = vpop.f32.mrb[0].mxu0
      %1023 = vdwg.mxu0
      %v1024 = vadd.f32 %v922, %v994
      %v1025 = vadd.f32 %v923, %v997
      %v1026 = vadd.f32 %v924, %v1002
      %v1027 = vadd.f32 %v925, %v1005
      %v1028 = vadd.f32 %v926, %v1010
      %v1029 = vadd.f32 %v927, %v1013
      %v1030 = vadd.f32 %v928, %v1018
      %v1031 = vadd.f32 %v929, %v1021
      %v1032 = vld [vmem:[%s827 + $0x2] sm:$0xff]
      %v1033 = vld [vmem:[%s827 + $0x12] sm:$0xff]
      %v1034 = vld [vmem:[%s827 + $0x22] sm:$0xff]
      %v1035 = vld [vmem:[%s827 + $0x32] sm:$0xff]
      %v1036 = vld [vmem:[%s827 + $0x42] sm:$0xff]
      %v1037 = vld [vmem:[%s827 + $0x52] sm:$0xff]
      %v1038 = vld [vmem:[%s827 + $0x62] sm:$0xff]
      %v1039 = vld [vmem:[%s827 + $0x72] sm:$0xff]
      %v1040 = vpack.c.bf16 %v1033, %v1032
      %v1041 = vpack.c.bf16 %v1035, %v1034
      %v1042 = vpack.c.bf16 %v1037, %v1036
      %v1043 = vpack.c.bf16 %v1039, %v1038
      %s1044 = scalar_lea.vmem %s1, 32
      %v1045 = vld [vmem:[%s1044] sm:$0xf]
      %v1047 = vsel %vm200, %v1040, 0
      %v1050 = vsel %vm200, %v1041, 0
      %v1053 = vsel %vm200, %v1042, 0
      %v1056 = vsel %vm200, %v1043, 0
      %v1059 = vsel %vm270, %v1045, 0
      %1061 = vmatprep.subr.bf16.mxu0 0
      %1062 = vmatpush1.bf16.msra.mxu0 %v1059
      %1063 = vmatprep.subr.bf16.mxu0 0
      %1064 = vmatpush1.bf16.msra.mxu0 0
      %1065 = vmatprep.subr.bf16.mxu0 0
      %1066 = vmatpush1.bf16.msra.mxu0 0
      %1067 = vmatprep.subr.bf16.mxu0 0
      %1068 = vmatpush1.bf16.msra.mxu0 0
      %1069 = vmatprep.subr.bf16.mxu0 0
      %1070 = vmatpush1.bf16.msra.mxu0 0
      %1071 = vmatprep.subr.bf16.mxu0 0
      %1072 = vmatpush1.bf16.msra.mxu0 0
      %1073 = vmatprep.subr.bf16.mxu0 0
      %1074 = vmatpush1.bf16.msra.mxu0 0
      %1075 = vmatprep.subr.bf16.mxu0 0
      %1076 = vmatpush1.bf16.msra.mxu0 0
      %1077 = vmatprep.subr.bf16.mxu0 0
      %1078 = vmatpush1.bf16.msra.mxu0 0
      %1079 = vmatprep.subr.bf16.mxu0 0
      %1080 = vmatpush1.bf16.msra.mxu0 0
      %1081 = vmatprep.subr.bf16.mxu0 0
      %1082 = vmatpush1.bf16.msra.mxu0 0
      %1083 = vmatprep.subr.bf16.mxu0 0
      %1084 = vmatpush1.bf16.msra.mxu0 0
      %1085 = vmatprep.subr.bf16.mxu0 0
      %1086 = vmatpush1.bf16.msra.mxu0 0
      %1087 = vmatprep.subr.bf16.mxu0 0
      %1088 = vmatpush1.bf16.msra.mxu0 0
      %1089 = vmatprep.subr.bf16.mxu0 0
      %1090 = vmatpush1.bf16.msra.mxu0 0
      %1091 = vmatprep.subr.bf16.mxu0 0
      %1092 = vmatpush1.bf16.msra.mxu0 0
      %1093 = vmatprep.mubr.bf16.mxu0 0
      %1094 = vmatmul.mubr.bf16.gmra.mrb[0].mxu0 %v1047
      %v1095 = vpop.f32.mrb[0].mxu0
      %v1096 = vadd.f32 0.0, %v1095
      %v1097 = vpop.f32.mrb[0].mxu0
      %v1098 = vpop.f32.mrb[0].mxu0
      %v1099 = vadd.f32 0.0, %v1098
      %v1100 = vpop.f32.mrb[0].mxu0
      %1101 = vmatprep.mubr.bf16.mxu0 0
      %1102 = vmatmul.mubr.bf16.gmra.mrb[0].mxu0 %v1050
      %v1103 = vpop.f32.mrb[0].mxu0
      %v1104 = vadd.f32 0.0, %v1103
      %v1105 = vpop.f32.mrb[0].mxu0
      %v1106 = vpop.f32.mrb[0].mxu0
      %v1107 = vadd.f32 0.0, %v1106
      %v1108 = vpop.f32.mrb[0].mxu0
      %1109 = vmatprep.mubr.bf16.mxu0 0
      %1110 = vmatmul.mubr.bf16.gmra.mrb[0].mxu0 %v1053
      %v1111 = vpop.f32.mrb[0].mxu0
      %v1112 = vadd.f32 0.0, %v1111
      %v1113 = vpop.f32.mrb[0].mxu0
      %v1114 = vpop.f32.mrb[0].mxu0
      %v1115 = vadd.f32 0.0, %v1114
      %v1116 = vpop.f32.mrb[0].mxu0
      %1117 = vmatprep.mubr.bf16.mxu0 0
      %1118 = vmatmul.mubr.bf16.gmra.mrb[0].mxu0 %v1056
      %v1119 = vpop.f32.mrb[0].mxu0
      %v1120 = vadd.f32 0.0, %v1119
      %v1121 = vpop.f32.mrb[0].mxu0
      %v1122 = vpop.f32.mrb[0].mxu0
      %v1123 = vadd.f32 0.0, %v1122
      %v1124 = vpop.f32.mrb[0].mxu0
      %1125 = vdwg.mxu0
      %v1126 = vadd.f32 %v1024, %v1096
      %v1127 = vadd.f32 %v1025, %v1099
      %v1128 = vadd.f32 %v1026, %v1104
      %v1129 = vadd.f32 %v1027, %v1107
      %v1130 = vadd.f32 %v1028, %v1112
      %v1131 = vadd.f32 %v1029, %v1115
      %v1132 = vadd.f32 %v1030, %v1120
      %v1133 = vadd.f32 %v1031, %v1123
      %v1134 = vld [vmem:[%s185] sm:$0xff]
      %v1135 = vld [vmem:[%s185 + $0x8] sm:$0xff]
      %v1136 = vld [vmem:[%s185 + $0x10] sm:$0xff]
      %v1137 = vld [vmem:[%s185 + $0x18] sm:$0xff]
      %v1138 = vld [vmem:[%s185 + $0x20] sm:$0xff]
      %v1139 = vld [vmem:[%s185 + $0x28] sm:$0xff]
      %v1140 = vld [vmem:[%s185 + $0x30] sm:$0xff]
      %v1141 = vld [vmem:[%s185 + $0x38] sm:$0xff]
      %v1142 = vadd.f32 %v1126, %v1134
      %v1143 = vadd.f32 %v1127, %v1135
      %v1144 = vadd.f32 %v1128, %v1136
      %v1145 = vadd.f32 %v1129, %v1137
      %v1146 = vadd.f32 %v1130, %v1138
      %v1147 = vadd.f32 %v1131, %v1139
      %v1148 = vadd.f32 %v1132, %v1140
      %v1149 = vadd.f32 %v1133, %v1141
      %1150 = vst.msk [vmem:[%s190] sm:$0xff] %vm200, %v1142
      %1151 = vst.msk [vmem:[%s190 + $0x8] sm:$0xff] %vm200, %v1143
      %1152 = vst.msk [vmem:[%s190 + $0x10] sm:$0xff] %vm200, %v1144
      %1153 = vst.msk [vmem:[%s190 + $0x18] sm:$0xff] %vm200, %v1145
      %1154 = vst.msk [vmem:[%s190 + $0x20] sm:$0xff] %vm200, %v1146
      %1155 = vst.msk [vmem:[%s190 + $0x28] sm:$0xff] %vm200, %v1147
      %1156 = vst.msk [vmem:[%s190 + $0x30] sm:$0xff] %vm200, %v1148
      %1157 = vst.msk [vmem:[%s190 + $0x38] sm:$0xff] %vm200, %v1149
      %p1158 = scmp.lt.s32.totalorder %s14, 1
      %s1159 = scalar_select %p1158, %s14, 1
      %s1160 = smul.addr %s1159, 8
      %s1161 = smul.addr %s1160, 8
      %s1162 = scalar_lea.vmem %s3, %s1161
      // Predicated region
      $region33: #{basic_block_forward.3} parent=31 // pred_check
        %p1163 = pneg %p105
      $region34: #{basic_block_forward.3} parent=31 // pred_check_branch
        %1165 = sbr.rel (%p1163) target = $region36
      $region35: #{basic_block_forward.3} parent=31 // pred_region
        _
      $region36: #{basic_block_forward.3} parent=31 // pred_fallthru
        _
    $region32: #{basic_block_forward.3} parent=5 // pred_fallthru
      _
    %p1166 = scmp.le.s32.totalorder 2, %s9
    // Predicated region
    $region37: #{basic_block_forward.3} parent=5 // pred_check
      %p1167 = pneg %p1166
    $region38: #{basic_block_forward.3} parent=5 // pred_check_branch
      %1169 = sbr.rel (%p1167) target = $region40
    $region39: #{basic_block_forward.3} parent=5 // pred_region
      %s1170 = ssub.s32 %s9, 2
      // Predicated region
      $region41: #{basic_block_forward.3} parent=39 // pred_check
        %p1171 = pneg %p111
      $region42: #{basic_block_forward.3} parent=39 // pred_check_branch
        %1173 = sbr.rel (%p1171) target = $region44
      $region43: #{basic_block_forward.3} parent=39 // pred_region
        %p1174 = scmp.lt.s32.totalorder %s15, 1
        %s1175 = scalar_select %p1174, %s15, 1
        %s1176 = smul.addr %s1175, 8
        %s1177 = smul.addr %s1176, 8
        %s1178 = scalar_lea.vmem %s3, %s1177
      $region44: #{basic_block_forward.3} parent=39 // pred_fallthru
        _
    $region40: #{basic_block_forward.3} parent=5 // pred_fallthru
      _
  $region6: #{basic_block_forward.3} parent=0 // loop_footer
    %s13 = sadd.s32 1, %s9
  $region7: #{basic_block_forward.3} parent=0 // loop_footer_branch
    %8 = sbr.rel target = $region3
  $region8: #{basic_block_forward.3} parent=0 // loop_exit
    _

// kernel: basic_block_forward.2
$region0: #{basic_block_forward.2}
  #allocation0 [shape = 'u32[]', space=smem, size = 0x4, offset = 0x4, fixed_abs, tag = 'smem constant byte address 0x4 - core index']
  #allocation1 [shape = 'u32[144,128]{1,0:T(1,128)}', space=vmem, size = 0x12000, scoped, tag = 'internal scratch']
  #allocation2 [shape = 'f32[18,18,4]{2,1,0:T(8,128)}', space=vmem, size = 0x36000, scoped, tag = 'scratch operand']
  %s0 = inlined_call_operand.vmem [shape: f32[2,16,16,4], index: 0, kind: input, shape index: {}]
  %s1 = inlined_call_operand.vmem [shape: bf16[9,4,8], index: 1, kind: input, shape index: {}]
  %s2 = inlined_call_operand.vmem [shape: f32[1,4], index: 2, kind: input, shape index: {}]
  %s3 = inlined_call_operand.vmem [shape: f32[1,4], index: 3, kind: input, shape index: {}]
  %s4 = inlined_call_operand.vmem [shape: f32[1,8], index: 4, kind: input, shape index: {}]
  %s5 = inlined_call_operand.vmem [shape: f32[1,8], index: 5, kind: input, shape index: {}]
  %s6 = inlined_call_operand.vmem [shape: bf16[4,8], index: 6, kind: input, shape index: {}]
  %s7 = inlined_call_operand.vmem [shape: f32[2,8,8,8], index: 7, kind: output, shape index: {0}]
  %s8 = inlined_call_operand.vmem [shape: f32[2,8,8,8], index: 8, kind: output, shape index: {1}]
  %9 = xla_tuple %s7, %s8
  %s10 = sld [smem:[#allocation0]]
  $region69: #{basic_block_forward.2} parent=0
    _
  %s12 = ssub.s32 1, %s10
  %s13 = scalar_select 0, %s12, %s10
  loop: start=0, step=1, limit=4
  $region2: #{basic_block_forward.2} parent=0 // loop_pre_header
    _
  $region3: #{basic_block_forward.2} parent=0 // loop_header
    %s15 = sphi 0, %s19
    %p16 = scmp.ge.s32.totalorder %s15, 4
    %s25 = sphi 0, %s27
    %s28 = sphi 0, %s25
    %s29 = sphi 0, %s28
    %s45 = sphi 0, %s29
    %s49 = sphi 0, %s49
    %s51 = sphi 0, %s49
    %s52 = sphi 0, %s51
    %s66 = sphi 0, %s52
    %s70 = sphi 0, %s70
    %s72 = sphi 0, %s70
    %s73 = sphi 0, %s72
    %s87 = sphi 0, %s73
    %s91 = sphi 0, %s91
    %s93 = sphi 0, %s91
    %s94 = sphi 0, %s93
    %s108 = sphi 0, %s94
    %s112 = sphi 0, %s112
    %s114 = sphi 0, %s112
    %s115 = sphi 0, %s114
    %s129 = sphi 0, %s115
    %s133 = sphi 0, %s133
    %s135 = sphi 0, %s133
    %s136 = sphi 0, %s135
    %s150 = sphi 0, %s136
    %s154 = sphi 0, %s154
    %s156 = sphi 0, %s154
    %s157 = sphi 0, %s156
    %s171 = sphi 0, %s157
    %s177 = sphi 0, %s179
    %s180 = sphi 0, %s177
    %s181 = sphi 0, %s180
    %s197 = sphi 0, %s181
    %s203 = sphi 0, %s205
    %s206 = sphi 0, %s203
    %s207 = sphi 0, %s206
    %s223 = sphi 0, %s207
  $region4: #{basic_block_forward.2} parent=0 // loop_header_branch
    %18 = sbr.rel (%p16) target = $region8
  $region5: #{basic_block_forward.2} parent=0 // loop_body
    %s20 = ssub.s32 %s15, 1
    %s21 = ssub.s32 %s15, 2
    %s22 = sadd.s32 %s15, 1
    %s23 = ssub.s32 %s15, %s22
    %p24 = scmp.eq.s32.totalorder %s23, 0
    %s26 = sadd.s32 %s25, 1
    %s27 = scalar_select %p24, %s25, %s26
    %p30 = pneg %p24
    %p31 = scmp.eq.s32.totalorder %s15, 1
    %p32 = por %p30, %p31
    %p33 = scmp.ne.s32.totalorder %s25, %s28
    %p34 = scmp.eq.s32.totalorder %s15, 0
    %p35 = por %p33, %p34
    %p36 = scmp.ne.s32.totalorder %s25, %s28
    %p37 = scmp.eq.s32.totalorder %s20, 1
    %p38 = por %p36, %p37
    %p39 = scmp.ne.s32.totalorder %s28, %s29
    %p40 = scmp.eq.s32.totalorder %s20, 0
    %p41 = por %p39, %p40
    %p42 = scmp.ne.s32.totalorder %s28, %s29
    %p43 = scmp.eq.s32.totalorder %s21, 1
    %p44 = por %p42, %p43
    %p46 = scmp.ne.s32.totalorder %s29, %s45
    %p47 = scmp.eq.s32.totalorder %s21, 0
    %p48 = por %p46, %p47
    %s50 = sadd.s32 %s49, 1
    %p53 = scmp.eq.s32.totalorder %s15, 1
    %p54 = scmp.ne.s32.totalorder %s49, %s51
    %p55 = scmp.eq.s32.totalorder %s15, 0
    %p56 = por %p54, %p55
    %p57 = scmp.ne.s32.totalorder %s49, %s51
    %p58 = scmp.eq.s32.totalorder %s20, 1
    %p59 = por %p57, %p58
    %p60 = scmp.ne.s32.totalorder %s51, %s52
    %p61 = scmp.eq.s32.totalorder %s20, 0
    %p62 = por %p60, %p61
    %p63 = scmp.ne.s32.totalorder %s51, %s52
    %p64 = scmp.eq.s32.totalorder %s21, 1
    %p65 = por %p63, %p64
    %p67 = scmp.ne.s32.totalorder %s52, %s66
    %p68 = scmp.eq.s32.totalorder %s21, 0
    %p69 = por %p67, %p68
    %s71 = sadd.s32 %s70, 1
    %p74 = scmp.eq.s32.totalorder %s15, 1
    %p75 = scmp.ne.s32.totalorder %s70, %s72
    %p76 = scmp.eq.s32.totalorder %s15, 0
    %p77 = por %p75, %p76
    %p78 = scmp.ne.s32.totalorder %s70, %s72
    %p79 = scmp.eq.s32.totalorder %s20, 1
    %p80 = por %p78, %p79
    %p81 = scmp.ne.s32.totalorder %s72, %s73
    %p82 = scmp.eq.s32.totalorder %s20, 0
    %p83 = por %p81, %p82
    %p84 = scmp.ne.s32.totalorder %s72, %s73
    %p85 = scmp.eq.s32.totalorder %s21, 1
    %p86 = por %p84, %p85
    %p88 = scmp.ne.s32.totalorder %s73, %s87
    %p89 = scmp.eq.s32.totalorder %s21, 0
    %p90 = por %p88, %p89
    %s92 = sadd.s32 %s91, 1
    %p95 = scmp.eq.s32.totalorder %s15, 1
    %p96 = scmp.ne.s32.totalorder %s91, %s93
    %p97 = scmp.eq.s32.totalorder %s15, 0
    %p98 = por %p96, %p97
    %p99 = scmp.ne.s32.totalorder %s91, %s93
    %p100 = scmp.eq.s32.totalorder %s20, 1
    %p101 = por %p99, %p100
    %p102 = scmp.ne.s32.totalorder %s93, %s94
    %p103 = scmp.eq.s32.totalorder %s20, 0
    %p104 = por %p102, %p103
    %p105 = scmp.ne.s32.totalorder %s93, %s94
    %p106 = scmp.eq.s32.totalorder %s21, 1
    %p107 = por %p105, %p106
    %p109 = scmp.ne.s32.totalorder %s94, %s108
    %p110 = scmp.eq.s32.totalorder %s21, 0
    %p111 = por %p109, %p110
    %s113 = sadd.s32 %s112, 1
    %p116 = scmp.eq.s32.totalorder %s15, 1
    %p117 = scmp.ne.s32.totalorder %s112, %s114
    %p118 = scmp.eq.s32.totalorder %s15, 0
    %p119 = por %p117, %p118
    %p120 = scmp.ne.s32.totalorder %s112, %s114
    %p121 = scmp.eq.s32.totalorder %s20, 1
    %p122 = por %p120, %p121
    %p123 = scmp.ne.s32.totalorder %s114, %s115
    %p124 = scmp.eq.s32.totalorder %s20, 0
    %p125 = por %p123, %p124
    %p126 = scmp.ne.s32.totalorder %s114, %s115
    %p127 = scmp.eq.s32.totalorder %s21, 1
    %p128 = por %p126, %p127
    %p130 = scmp.ne.s32.totalorder %s115, %s129
    %p131 = scmp.eq.s32.totalorder %s21, 0
    %p132 = por %p130, %p131
    %s134 = sadd.s32 %s133, 1
    %p137 = scmp.eq.s32.totalorder %s15, 1
    %p138 = scmp.ne.s32.totalorder %s133, %s135
    %p139 = scmp.eq.s32.totalorder %s15, 0
    %p140 = por %p138, %p139
    %p141 = scmp.ne.s32.totalorder %s133, %s135
    %p142 = scmp.eq.s32.totalorder %s20, 1
    %p143 = por %p141, %p142
    %p144 = scmp.ne.s32.totalorder %s135, %s136
    %p145 = scmp.eq.s32.totalorder %s20, 0
    %p146 = por %p144, %p145
    %p147 = scmp.ne.s32.totalorder %s135, %s136
    %p148 = scmp.eq.s32.totalorder %s21, 1
    %p149 = por %p147, %p148
    %p151 = scmp.ne.s32.totalorder %s136, %s150
    %p152 = scmp.eq.s32.totalorder %s21, 0
    %p153 = por %p151, %p152
    %s155 = sadd.s32 %s154, 1
    %p158 = scmp.eq.s32.totalorder %s15, 1
    %p159 = scmp.ne.s32.totalorder %s154, %s156
    %p160 = scmp.eq.s32.totalorder %s15, 0
    %p161 = por %p159, %p160
    %p162 = scmp.ne.s32.totalorder %s154, %s156
    %p163 = scmp.eq.s32.totalorder %s20, 1
    %p164 = por %p162, %p163
    %p165 = scmp.ne.s32.totalorder %s156, %s157
    %p166 = scmp.eq.s32.totalorder %s20, 0
    %p167 = por %p165, %p166
    %p168 = scmp.ne.s32.totalorder %s156, %s157
    %p169 = scmp.eq.s32.totalorder %s21, 1
    %p170 = por %p168, %p169
    %p172 = scmp.ne.s32.totalorder %s157, %s171
    %p173 = scmp.eq.s32.totalorder %s21, 0
    %p174 = por %p172, %p173
    %s175 = ssub.s32 %s15, %s22
    %p176 = scmp.eq.s32.totalorder %s175, 0
    %s178 = sadd.s32 %s177, 1
    %s179 = scalar_select %p176, %s177, %s178
    %p182 = pneg %p176
    %p183 = scmp.eq.s32.totalorder %s15, 1
    %p184 = por %p182, %p183
    %p185 = scmp.ne.s32.totalorder %s177, %s180
    %p186 = scmp.eq.s32.totalorder %s15, 0
    %p187 = por %p185, %p186
    %p188 = scmp.ne.s32.totalorder %s177, %s180
    %p189 = scmp.eq.s32.totalorder %s20, 1
    %p190 = por %p188, %p189
    %p191 = scmp.ne.s32.totalorder %s180, %s181
    %p192 = scmp.eq.s32.totalorder %s20, 0
    %p193 = por %p191, %p192
    %p194 = scmp.ne.s32.totalorder %s180, %s181
    %p195 = scmp.eq.s32.totalorder %s21, 1
    %p196 = por %p194, %p195
    %p198 = scmp.ne.s32.totalorder %s181, %s197
    %p199 = scmp.eq.s32.totalorder %s21, 0
    %p200 = por %p198, %p199
    %s201 = ssub.s32 %s15, %s22
    %p202 = scmp.eq.s32.totalorder %s201, 0
    %s204 = sadd.s32 %s203, 1
    %s205 = scalar_select %p202, %s203, %s204
    %p208 = pneg %p202
    %p209 = scmp.eq.s32.totalorder %s15, 1
    %p210 = por %p208, %p209
    %p211 = scmp.ne.s32.totalorder %s203, %s206
    %p212 = scmp.eq.s32.totalorder %s15, 0
    %p213 = por %p211, %p212
    %p214 = scmp.ne.s32.totalorder %s203, %s206
    %p215 = scmp.eq.s32.totalorder %s20, 1
    %p216 = por %p214, %p215
    %p217 = scmp.ne.s32.totalorder %s206, %s207
    %p218 = scmp.eq.s32.totalorder %s20, 0
    %p219 = por %p217, %p218
    %p220 = scmp.ne.s32.totalorder %s206, %s207
    %p221 = scmp.eq.s32.totalorder %s21, 1
    %p222 = por %p220, %p221
    %p224 = scmp.ne.s32.totalorder %s207, %s223
    %p225 = scmp.eq.s32.totalorder %s21, 0
    %p226 = por %p224, %p225
    %p227 = scmp.le.s32.totalorder 1, %s15
    %p228 = scmp.lt.s32.totalorder %s15, 3
    %p229 = pnand %p227, %p228
    %p230 = pneg %p229
    // Predicated region
    $region9: #{basic_block_forward.2} parent=5 // pred_check
      _
    $region10: #{basic_block_forward.2} parent=5 // pred_check_branch
      %232 = sbr.rel (%p229) target = $region12
    $region11: #{basic_block_forward.2} parent=5 // pred_region
      %s233 = ssub.s32 %s15, 1
      // Predicated region
      $region13: #{basic_block_forward.2} parent=11 // pred_check
        %p234 = pneg %p62
      $region14: #{basic_block_forward.2} parent=11 // pred_check_branch
        %236 = sbr.rel (%p234) target = $region16
      $region15: #{basic_block_forward.2} parent=11 // pred_region
        _
      $region16: #{basic_block_forward.2} parent=11 // pred_fallthru
        _
      // Predicated region
      $region17: #{basic_block_forward.2} parent=11 // pred_check
        %p237 = pneg %p83
      $region18: #{basic_block_forward.2} parent=11 // pred_check_branch
        %239 = sbr.rel (%p237) target = $region20
      $region19: #{basic_block_forward.2} parent=11 // pred_region
        _
      $region20: #{basic_block_forward.2} parent=11 // pred_fallthru
        _
      // Predicated region
      $region21: #{basic_block_forward.2} parent=11 // pred_check
        %p240 = pneg %p104
      $region22: #{basic_block_forward.2} parent=11 // pred_check_branch
        %242 = sbr.rel (%p240) target = $region24
      $region23: #{basic_block_forward.2} parent=11 // pred_region
        _
      $region24: #{basic_block_forward.2} parent=11 // pred_fallthru
        _
      // Predicated region
      $region25: #{basic_block_forward.2} parent=11 // pred_check
        %p243 = pneg %p125
      $region26: #{basic_block_forward.2} parent=11 // pred_check_branch
        %245 = sbr.rel (%p243) target = $region28
      $region27: #{basic_block_forward.2} parent=11 // pred_region
        _
      $region28: #{basic_block_forward.2} parent=11 // pred_fallthru
        _
      // Predicated region
      $region29: #{basic_block_forward.2} parent=11 // pred_check
        %p246 = pneg %p146
      $region30: #{basic_block_forward.2} parent=11 // pred_check_branch
        %248 = sbr.rel (%p246) target = $region32
      $region31: #{basic_block_forward.2} parent=11 // pred_region
        _
      $region32: #{basic_block_forward.2} parent=11 // pred_fallthru
        _
      // Predicated region
      $region33: #{basic_block_forward.2} parent=11 // pred_check
        %p249 = pneg %p167
      $region34: #{basic_block_forward.2} parent=11 // pred_check_branch
        %251 = sbr.rel (%p249) target = $region36
      $region35: #{basic_block_forward.2} parent=11 // pred_region
        _
      $region36: #{basic_block_forward.2} parent=11 // pred_fallthru
        _
    $region12: #{basic_block_forward.2} parent=5 // pred_fallthru
      _
    %p252 = scmp.lt.s32.totalorder %s15, 2
    // Predicated region
    $region37: #{basic_block_forward.2} parent=5 // pred_check
      %p253 = pneg %p252
    $region38: #{basic_block_forward.2} parent=5 // pred_check_branch
      %255 = sbr.rel (%p253) target = $region40
    $region39: #{basic_block_forward.2} parent=5 // pred_region
      // Predicated region
      $region41: #{basic_block_forward.2} parent=39 // pred_check
        %p256 = pneg %p35
      $region42: #{basic_block_forward.2} parent=39 // pred_check_branch
        %258 = sbr.rel (%p256) target = $region44
      $region43: #{basic_block_forward.2} parent=39 // pred_region
        %p259 = scmp.lt.s32.totalorder %s15, 1
        %s260 = scalar_select %p259, %s15, 1
        %s261 = smul.addr %s260, 32
        %s262 = smul.addr %s261, 8
        %s263 = scalar_lea.vmem %s0, %s262
      $region44: #{basic_block_forward.2} parent=39 // pred_fallthru
        _
    $region40: #{basic_block_forward.2} parent=5 // pred_fallthru
      _
    %p264 = scmp.le.s32.totalorder 1, %s15
    %p265 = scmp.lt.s32.totalorder %s15, 3
    %p266 = pnand %p264, %p265
    %p267 = pneg %p266
    // Predicated region
    $region45: #{basic_block_forward.2} parent=5 // pred_check
      _
    $region46: #{basic_block_forward.2} parent=5 // pred_check_branch
      %269 = sbr.rel (%p266) target = $region48
    $region47: #{basic_block_forward.2} parent=5 // pred_region
      %s270 = ssub.s32 %s15, 1
      %p271 = scmp.lt.s32.totalorder %s20, 1
      %s272 = scalar_select %p271, %s20, 1
      %s273 = smul.addr %s272, 32
      %s274 = smul.addr %s273, 8
      %s275 = scalar_lea.vmem %s0, %s274
      %p276 = pneg %p41
      %p277 = pneg %p38
      %p278 = pneg %p62
      %p279 = pneg %p59
      %p280 = pneg %p83
      %p281 = pneg %p80
      %p282 = pneg %p104
      %p283 = pneg %p101
      %p284 = pneg %p125
      %p285 = pneg %p122
      %p286 = pneg %p146
      %p287 = pneg %p143
      %p288 = pneg %p167
      %p289 = pneg %p164
      %p290 = pneg %p193
      %p291 = pneg %p190
      %p292 = scmp.lt.s32.totalorder %s20, 1
      %s293 = scalar_select %p292, %s20, 1
      %s294 = smul.addr %s293, 8
      %s295 = smul.addr %s294, 8
      %s296 = scalar_lea.vmem %s7, %s295
      %p297 = pneg %p219
      %p298 = pneg %p216
      %p299 = scmp.lt.s32.totalorder %s20, 1
      %s300 = scalar_select %p299, %s20, 1
      %s301 = smul.addr %s300, 8
      %s302 = smul.addr %s301, 8
      %s303 = scalar_lea.vmem %s8, %s302
      %p304 = scmp.lt.s32.totalorder %s20, 1
      %s305 = scalar_select %p304, %s20, 1
      %s306 = smul.addr %s305, 32
      %s307 = smul.addr %s306, 8
      %s308 = scalar_lea.vmem %s0, %s307
      %p309 = scmp.lt.s32.totalorder %s20, 1
      %s310 = scalar_select %p309, %s20, 1
      %s311 = smul.addr %s310, 8
      %s312 = smul.addr %s311, 8
      %s313 = scalar_lea.vmem %s7, %s312
      %p314 = scmp.lt.s32.totalorder %s20, 1
      %s315 = scalar_select %p314, %s20, 1
      %s316 = smul.addr %s315, 8
      %s317 = smul.addr %s316, 8
      %s318 = scalar_lea.vmem %s8, %s317
      %v320 = vld [vmem:[%s308] sm:$0xff]
      %v321 = vld [vmem:[%s308 + $0x8] sm:$0xff]
      %v322 = vld [vmem:[%s308 + $0x10] sm:$0xff]
      %v323 = vld [vmem:[%s308 + $0x18] sm:$0xff]
      %v324 = vld [vmem:[%s308 + $0x20] sm:$0xff]
      %v325 = vld [vmem:[%s308 + $0x28] sm:$0xff]
      %v326 = vld [vmem:[%s308 + $0x30] sm:$0xff]
      %v327 = vld [vmem:[%s308 + $0x38] sm:$0xff]
      %v328 = vld [vmem:[%s308 + $0x40] sm:$0xff]
      %v329 = vld [vmem:[%s308 + $0x48] sm:$0xff]
      %v330 = vld [vmem:[%s308 + $0x50] sm:$0xff]
      %v331 = vld [vmem:[%s308 + $0x58] sm:$0xff]
      %v332 = vld [vmem:[%s308 + $0x60] sm:$0xff]
      %v333 = vld [vmem:[%s308 + $0x68] sm:$0xff]
      %v334 = vld [vmem:[%s308 + $0x70] sm:$0xff]
      %v335 = vld [vmem:[%s308 + $0x78] sm:$0xff]
      %v336 = vld [vmem:[%s308 + $0x80] sm:$0xff]
      %v337 = vld [vmem:[%s308 + $0x88] sm:$0xff]
      %v338 = vld [vmem:[%s308 + $0x90] sm:$0xff]
      %v339 = vld [vmem:[%s308 + $0x98] sm:$0xff]
      %v340 = vld [vmem:[%s308 + $0xa0] sm:$0xff]
      %v341 = vld [vmem:[%s308 + $0xa8] sm:$0xff]
      %v342 = vld [vmem:[%s308 + $0xb0] sm:$0xff]
      %v343 = vld [vmem:[%s308 + $0xb8] sm:$0xff]
      %v344 = vld [vmem:[%s308 + $0xc0] sm:$0xff]
      %v345 = vld [vmem:[%s308 + $0xc8] sm:$0xff]
      %v346 = vld [vmem:[%s308 + $0xd0] sm:$0xff]
      %v347 = vld [vmem:[%s308 + $0xd8] sm:$0xff]
      %v348 = vld [vmem:[%s308 + $0xe0] sm:$0xff]
      %v349 = vld [vmem:[%s308 + $0xe8] sm:$0xff]
      %v350 = vld [vmem:[%s308 + $0xf0] sm:$0xff]
      %v351 = vld [vmem:[%s308 + $0xf8] sm:$0xff]
      %v352 = vld [vmem:[%s2] sm:$0x1]
      %v354 = vlaneseq
      %v355 = vshrl.u32 %v354, 7
      %v356 = vsub.s32 0, %v355
      %v357 = vrot.slane %v352, %v356
      %v359 = vmul.f32 %v320, %v357
      %v360 = vmul.f32 %v321, %v357
      %v361 = vmul.f32 %v322, %v357
      %v362 = vmul.f32 %v323, %v357
      %v363 = vmul.f32 %v324, %v357
      %v364 = vmul.f32 %v325, %v357
      %v365 = vmul.f32 %v326, %v357
      %v366 = vmul.f32 %v327, %v357
      %v367 = vmul.f32 %v328, %v357
      %v368 = vmul.f32 %v329, %v357
      %v369 = vmul.f32 %v330, %v357
      %v370 = vmul.f32 %v331, %v357
      %v371 = vmul.f32 %v332, %v357
      %v372 = vmul.f32 %v333, %v357
      %v373 = vmul.f32 %v334, %v357
      %v374 = vmul.f32 %v335, %v357
      %v375 = vmul.f32 %v336, %v357
      %v376 = vmul.f32 %v337, %v357
      %v377 = vmul.f32 %v338, %v357
      %v378 = vmul.f32 %v339, %v357
      %v379 = vmul.f32 %v340, %v357
      %v380 = vmul.f32 %v341, %v357
      %v381 = vmul.f32 %v342, %v357
      %v382 = vmul.f32 %v343, %v357
      %v383 = vmul.f32 %v344, %v357
      %v384 = vmul.f32 %v345, %v357
      %v385 = vmul.f32 %v346, %v357
      %v386 = vmul.f32 %v347, %v357
      %v387 = vmul.f32 %v348, %v357
      %v388 = vmul.f32 %v349, %v357
      %v389 = vmul.f32 %v350, %v357
      %v390 = vmul.f32 %v351, %v357
      %v391 = vld [vmem:[%s3] sm:$0x1]
      %v393 = vlaneseq
      %v394 = vshrl.u32 %v393, 7
      %v395 = vsub.s32 0, %v394
      %v396 = vrot.slane %v391, %v395
      %v398 = vadd.f32 %v359, %v396
      %v399 = vadd.f32 %v360, %v396
      %v400 = vadd.f32 %v361, %v396
      %v401 = vadd.f32 %v362, %v396
      %v402 = vadd.f32 %v363, %v396
      %v403 = vadd.f32 %v364, %v396
      %v404 = vadd.f32 %v365, %v396
      %v405 = vadd.f32 %v366, %v396
      %v406 = vadd.f32 %v367, %v396
      %v407 = vadd.f32 %v368, %v396
      %v408 = vadd.f32 %v369, %v396
      %v409 = vadd.f32 %v370, %v396
      %v410 = vadd.f32 %v371, %v396
      %v411 = vadd.f32 %v372, %v396
      %v412 = vadd.f32 %v373, %v396
      %v413 = vadd.f32 %v374, %v396
      %v414 = vadd.f32 %v375, %v396
      %v415 = vadd.f32 %v376, %v396
      %v416 = vadd.f32 %v377, %v396
      %v417 = vadd.f32 %v378, %v396
      %v418 = vadd.f32 %v379, %v396
      %v419 = vadd.f32 %v380, %v396
      %v420 = vadd.f32 %v381, %v396
      %v421 = vadd.f32 %v382, %v396
      %v422 = vadd.f32 %v383, %v396
      %v423 = vadd.f32 %v384, %v396
      %v424 = vadd.f32 %v385, %v396
      %v425 = vadd.f32 %v386, %v396
      %v426 = vadd.f32 %v387, %v396
      %v427 = vadd.f32 %v388, %v396
      %v428 = vadd.f32 %v389, %v396
      %v429 = vadd.f32 %v390, %v396
      %vm430 = vcmp.ge.f32.partialorder %v398, 0.0
      %vm431 = vcmp.ge.f32.partialorder %v399, 0.0
      %vm432 = vcmp.ge.f32.partialorder %v400, 0.0
      %vm433 = vcmp.ge.f32.partialorder %v401, 0.0
      %vm434 = vcmp.ge.f32.partialorder %v402, 0.0
      %vm435 = vcmp.ge.f32.partialorder %v403, 0.0
      %vm436 = vcmp.ge.f32.partialorder %v404, 0.0
      %vm437 = vcmp.ge.f32.partialorder %v405, 0.0
      %vm438 = vcmp.ge.f32.partialorder %v406, 0.0
      %vm439 = vcmp.ge.f32.partialorder %v407, 0.0
      %vm440 = vcmp.ge.f32.partialorder %v408, 0.0
      %vm441 = vcmp.ge.f32.partialorder %v409, 0.0
      %vm442 = vcmp.ge.f32.partialorder %v410, 0.0
      %vm443 = vcmp.ge.f32.partialorder %v411, 0.0
      %vm444 = vcmp.ge.f32.partialorder %v412, 0.0
      %vm445 = vcmp.ge.f32.partialorder %v413, 0.0
      %vm446 = vcmp.ge.f32.partialorder %v414, 0.0
      %vm447 = vcmp.ge.f32.partialorder %v415, 0.0
      %vm448 = vcmp.ge.f32.partialorder %v416, 0.0
      %vm449 = vcmp.ge.f32.partialorder %v417, 0.0
      %vm450 = vcmp.ge.f32.partialorder %v418, 0.0
      %vm451 = vcmp.ge.f32.partialorder %v419, 0.0
      %vm452 = vcmp.ge.f32.partialorder %v420, 0.0
      %vm453 = vcmp.ge.f32.partialorder %v421, 0.0
      %vm454 = vcmp.ge.f32.partialorder %v422, 0.0
      %vm455 = vcmp.ge.f32.partialorder %v423, 0.0
      %vm456 = vcmp.ge.f32.partialorder %v424, 0.0
      %vm457 = vcmp.ge.f32.partialorder %v425, 0.0
      %vm458 = vcmp.ge.f32.partialorder %v426, 0.0
      %vm459 = vcmp.ge.f32.partialorder %v427, 0.0
      %vm460 = vcmp.ge.f32.partialorder %v428, 0.0
      %vm461 = vcmp.ge.f32.partialorder %v429, 0.0
      %v462 = vmul.f32 %v398, 0.1
      %v463 = vmul.f32 %v399, 0.1
      %v464 = vmul.f32 %v400, 0.1
      %v465 = vmul.f32 %v401, 0.1
      %v466 = vmul.f32 %v402, 0.1
      %v467 = vmul.f32 %v403, 0.1
      %v468 = vmul.f32 %v404, 0.1
      %v469 = vmul.f32 %v405, 0.1
      %v470 = vmul.f32 %v406, 0.1
      %v471 = vmul.f32 %v407, 0.1
      %v472 = vmul.f32 %v408, 0.1
      %v473 = vmul.f32 %v409, 0.1
      %v474 = vmul.f32 %v410, 0.1
      %v475 = vmul.f32 %v411, 0.1
      %v476 = vmul.f32 %v412, 0.1
      %v477 = vmul.f32 %v413, 0.1
      %v478 = vmul.f32 %v414, 0.1
      %v479 = vmul.f32 %v415, 0.1
      %v480 = vmul.f32 %v416, 0.1
      %v481 = vmul.f32 %v417, 0.1
      %v482 = vmul.f32 %v418, 0.1
      %v483 = vmul.f32 %v419, 0.1
      %v484 = vmul.f32 %v420, 0.1
      %v485 = vmul.f32 %v421, 0.1
      %v486 = vmul.f32 %v422, 0.1
      %v487 = vmul.f32 %v423, 0.1
      %v488 = vmul.f32 %v424, 0.1
      %v489 = vmul.f32 %v425, 0.1
      %v490 = vmul.f32 %v426, 0.1
      %v491 = vmul.f32 %v427, 0.1
      %v492 = vmul.f32 %v428, 0.1
      %v493 = vmul.f32 %v429, 0.1
      %v494 = vsel %vm430, %v398, %v462
      %v495 = vsel %vm431, %v399, %v463
      %v496 = vsel %vm432, %v400, %v464
      %v497 = vsel %vm433, %v401, %v465
      %v498 = vsel %vm434, %v402, %v466
      %v499 = vsel %vm435, %v403, %v467
      %v500 = vsel %vm436, %v404, %v468
      %v501 = vsel %vm437, %v405, %v469
      %v502 = vsel %vm438, %v406, %v470
      %v503 = vsel %vm439, %v407, %v471
      %v504 = vsel %vm440, %v408, %v472
      %v505 = vsel %vm441, %v409, %v473
      %v506 = vsel %vm442, %v410, %v474
      %v507 = vsel %vm443, %v411, %v475
      %v508 = vsel %vm444, %v412, %v476
      %v509 = vsel %vm445, %v413, %v477
      %v510 = vsel %vm446, %v414, %v478
      %v511 = vsel %vm447, %v415, %v479
      %v512 = vsel %vm448, %v416, %v480
      %v513 = vsel %vm449, %v417, %v481
      %v514 = vsel %vm450, %v418, %v482
      %v515 = vsel %vm451, %v419, %v483
      %v516 = vsel %vm452, %v420, %v484
      %v517 = vsel %vm453, %v421, %v485
      %v518 = vsel %vm454, %v422, %v486
      %v519 = vsel %vm455, %v423, %v487
      %v520 = vsel %vm456, %v424, %v488
      %v521 = vsel %vm457, %v425, %v489
      %v522 = vsel %vm458, %v426, %v490
      %v523 = vsel %vm459, %v427, %v491
      %v524 = vsel %vm460, %v428, %v492
      %v525 = vsel %vm461, %v429, %v493
      %vm526 = vcmask 31744
      %527 = vst.msk [vmem:[#allocation2] sm:$0xff] %vm526, 0.0
      %528 = vst.msk [vmem:[#allocation2 + $0x8] sm:$0xff] %vm526, 0.0
      %vm529 = vcmask 25600
      %530 = vst.msk [vmem:[#allocation2 + $0x10] sm:$0x3] %vm529, 0.0
      %531 = vst.msk [vmem:[#allocation2 + $0x18] sm:$0xff] %vm526, 0.0
      %532 = vst.msk [vmem:[#allocation2 + $0x20] sm:$0xff] %vm526, 0.0
      %533 = vst.msk [vmem:[#allocation2 + $0x28] sm:$0x3] %vm529, 0.0
      %534 = vst.msk [vmem:[#allocation2 + $0x30] sm:$0xff] %vm526, 0.0
      %535 = vst.msk [vmem:[#allocation2 + $0x38] sm:$0xff] %vm526, 0.0
      %536 = vst.msk [vmem:[#allocation2 + $0x40] sm:$0x3] %vm529, 0.0
      %537 = vst.msk [vmem:[#allocation2 + $0x48] sm:$0xff] %vm526, 0.0
      %538 = vst.msk [vmem:[#allocation2 + $0x50] sm:$0xff] %vm526, 0.0
      %539 = vst.msk [vmem:[#allocation2 + $0x58] sm:$0x3] %vm529, 0.0
      %540 = vst.msk [vmem:[#allocation2 + $0x60] sm:$0xff] %vm526, 0.0
      %541 = vst.msk [vmem:[#allocation2 + $0x68] sm:$0xff] %vm526, 0.0
      %542 = vst.msk [vmem:[#allocation2 + $0x70] sm:$0x3] %vm529, 0.0
      %543 = vst.msk [vmem:[#allocation2 + $0x78] sm:$0xff] %vm526, 0.0
      %544 = vst.msk [vmem:[#allocation2 + $0x80] sm:$0xff] %vm526, 0.0
      %545 = vst.msk [vmem:[#allocation2 + $0x88] sm:$0x3] %vm529, 0.0
      %546 = vst.msk [vmem:[#allocation2 + $0x90] sm:$0xff] %vm526, 0.0
      %547 = vst.msk [vmem:[#allocation2 + $0x98] sm:$0xff] %vm526, 0.0
      %548 = vst.msk [vmem:[#allocation2 + $0xa0] sm:$0x3] %vm529, 0.0
      %549 = vst.msk [vmem:[#allocation2 + $0xa8] sm:$0xff] %vm526, 0.0
      %550 = vst.msk [vmem:[#allocation2 + $0xb0] sm:$0xff] %vm526, 0.0
      %551 = vst.msk [vmem:[#allocation2 + $0xb8] sm:$0x3] %vm529, 0.0
      %552 = vst.msk [vmem:[#allocation2 + $0xc0] sm:$0xff] %vm526, 0.0
      %553 = vst.msk [vmem:[#allocation2 + $0xc8] sm:$0xff] %vm526, 0.0
      %554 = vst.msk [vmem:[#allocation2 + $0xd0] sm:$0x3] %vm529, 0.0
      %555 = vst.msk [vmem:[#allocation2 + $0xd8] sm:$0xff] %vm526, 0.0
      %556 = vst.msk [vmem:[#allocation2 + $0xe0] sm:$0xff] %vm526, 0.0
      %557 = vst.msk [vmem:[#allocation2 + $0xe8] sm:$0x3] %vm529, 0.0
      %558 = vst.msk [vmem:[#allocation2 + $0xf0] sm:$0xff] %vm526, 0.0
      %559 = vst.msk [vmem:[#allocation2 + $0xf8] sm:$0xff] %vm526, 0.0
      %560 = vst.msk [vmem:[#allocation2 + $0x100] sm:$0x3] %vm529, 0.0
      %561 = vst.msk [vmem:[#allocation2 + $0x108] sm:$0xff] %vm526, 0.0
      %562 = vst.msk [vmem:[#allocation2 + $0x110] sm:$0xff] %vm526, 0.0
      %563 = vst.msk [vmem:[#allocation2 + $0x118] sm:$0x3] %vm529, 0.0
      %564 = vst.msk [vmem:[#allocation2 + $0x120] sm:$0xff] %vm526, 0.0
      %565 = vst.msk [vmem:[#allocation2 + $0x128] sm:$0xff] %vm526, 0.0
      %566 = vst.msk [vmem:[#allocation2 + $0x130] sm:$0x3] %vm529, 0.0
      %567 = vst.msk [vmem:[#allocation2 + $0x138] sm:$0xff] %vm526, 0.0
      %568 = vst.msk [vmem:[#allocation2 + $0x140] sm:$0xff] %vm526, 0.0
      %569 = vst.msk [vmem:[#allocation2 + $0x148] sm:$0x3] %vm529, 0.0
      %570 = vst.msk [vmem:[#allocation2 + $0x150] sm:$0xff] %vm526, 0.0
      %571 = vst.msk [vmem:[#allocation2 + $0x158] sm:$0xff] %vm526, 0.0
      %572 = vst.msk [vmem:[#allocation2 + $0x160] sm:$0x3] %vm529, 0.0
      %573 = vst.msk [vmem:[#allocation2 + $0x168] sm:$0xff] %vm526, 0.0
      %574 = vst.msk [vmem:[#allocation2 + $0x170] sm:$0xff] %vm526, 0.0
      %575 = vst.msk [vmem:[#allocation2 + $0x178] sm:$0x3] %vm529, 0.0
      %576 = vst.msk [vmem:[#allocation2 + $0x180] sm:$0xff] %vm526, 0.0
      %577 = vst.msk [vmem:[#allocation2 + $0x188] sm:$0xff] %vm526, 0.0
      %578 = vst.msk [vmem:[#allocation2 + $0x190] sm:$0x3] %vm529, 0.0
      %579 = vst.msk [vmem:[#allocation2 + $0x198] sm:$0xff] %vm526, 0.0
      %580 = vst.msk [vmem:[#allocation2 + $0x1a0] sm:$0xff] %vm526, 0.0
      %581 = vst.msk [vmem:[#allocation2 + $0x1a8] sm:$0x3] %vm529, 0.0
      %s582 = scalar_lea.vmem [#allocation2], 24
      %583 = vst.msk [vmem:[%s582 + $0x1] sm:$0xff] %vm526, %v494
      %584 = vst.msk [vmem:[%s582 + $0x9] sm:$0xff] %vm526, %v495
      %585 = vst.msk [vmem:[%s582 + $0x19] sm:$0xff] %vm526, %v496
      %586 = vst.msk [vmem:[%s582 + $0x21] sm:$0xff] %vm526, %v497
      %587 = vst.msk [vmem:[%s582 + $0x31] sm:$0xff] %vm526, %v498
      %588 = vst.msk [vmem:[%s582 + $0x39] sm:$0xff] %vm526, %v499
      %589 = vst.msk [vmem:[%s582 + $0x49] sm:$0xff] %vm526, %v500
      %590 = vst.msk [vmem:[%s582 + $0x51] sm:$0xff] %vm526, %v501
      %591 = vst.msk [vmem:[%s582 + $0x61] sm:$0xff] %vm526, %v502
      %592 = vst.msk [vmem:[%s582 + $0x69] sm:$0xff] %vm526, %v503
      %593 = vst.msk [vmem:[%s582 + $0x79] sm:$0xff] %vm526, %v504
      %594 = vst.msk [vmem:[%s582 + $0x81] sm:$0xff] %vm526, %v505
      %595 = vst.msk [vmem:[%s582 + $0x91] sm:$0xff] %vm526, %v506
      %596 = vst.msk [vmem:[%s582 + $0x99] sm:$0xff] %vm526, %v507
      %597 = vst.msk [vmem:[%s582 + $0xa9] sm:$0xff] %vm526, %v508
      %598 = vst.msk [vmem:[%s582 + $0xb1] sm:$0xff] %vm526, %v509
      %599 = vst.msk [vmem:[%s582 + $0xc1] sm:$0xff] %vm526, %v510
      %600 = vst.msk [vmem:[%s582 + $0xc9] sm:$0xff] %vm526, %v511
      %601 = vst.msk [vmem:[%s582 + $0xd9] sm:$0xff] %vm526, %v512
      %602 = vst.msk [vmem:[%s582 + $0xe1] sm:$0xff] %vm526, %v513
      %603 = vst.msk [vmem:[%s582 + $0xf1] sm:$0xff] %vm526, %v514
      %604 = vst.msk [vmem:[%s582 + $0xf9] sm:$0xff] %vm526, %v515
      %605 = vst.msk [vmem:[%s582 + $0x109] sm:$0xff] %vm526, %v516
      %606 = vst.msk [vmem:[%s582 + $0x111] sm:$0xff] %vm526, %v517
      %607 = vst.msk [vmem:[%s582 + $0x121] sm:$0xff] %vm526, %v518
      %608 = vst.msk [vmem:[%s582 + $0x129] sm:$0xff] %vm526, %v519
      %609 = vst.msk [vmem:[%s582 + $0x139] sm:$0xff] %vm526, %v520
      %610 = vst.msk [vmem:[%s582 + $0x141] sm:$0xff] %vm526, %v521
      %611 = vst.msk [vmem:[%s582 + $0x151] sm:$0xff] %vm526, %v522
      %612 = vst.msk [vmem:[%s582 + $0x159] sm:$0xff] %vm526, %v523
      %613 = vst.msk [vmem:[%s582 + $0x169] sm:$0xff] %vm526, %v524
      %614 = vst.msk [vmem:[%s582 + $0x171] sm:$0xff] %vm526, %v525
      %v615 = vld [vmem:[#allocation2] ss:$2 sm:$0xff]
      %s616 = scalar_lea.vmem [#allocation2], 48
      %v617 = vld [vmem:[%s616] ss:$2 sm:$0xff]
      %s618 = scalar_lea.vmem [#allocation2], 96
      %v619 = vld [vmem:[%s618] ss:$2 sm:$0xff]
      %s620 = scalar_lea.vmem [#allocation2], 144
      %v621 = vld [vmem:[%s620] ss:$2 sm:$0xff]
      %s622 = scalar_lea.vmem [#allocation2], 192
      %v623 = vld [vmem:[%s622] ss:$2 sm:$0xff]
      %s624 = scalar_lea.vmem [#allocation2], 240
      %v625 = vld [vmem:[%s624] ss:$2 sm:$0xff]
      %s626 = scalar_lea.vmem [#allocation2], 288
      %v627 = vld [vmem:[%s626] ss:$2 sm:$0xff]
      %s628 = scalar_lea.vmem [#allocation2], 336
      %v629 = vld [vmem:[%s628] ss:$2 sm:$0xff]
      %v630 = vpack.c.bf16 %v617, %v615
      %v631 = vpack.c.bf16 %v621, %v619
      %v632 = vpack.c.bf16 %v625, %v623
      %v633 = vpack.c.bf16 %v629, %v627
      %v634 = vld [vmem:[%s1] sm:$0x3]
      %s635 = scalar_lea.vmem [#allocation2], 1
      %v636 = vld [vmem:[%s635] ss:$2 sm:$0xff]
      %s637 = scalar_lea.vmem [#allocation2], 49
      %v638 = vld [vmem:[%s637] ss:$2 sm:$0xff]
      %s639 = scalar_lea.vmem [#allocation2], 97
      %v640 = vld [vmem:[%s639] ss:$2 sm:$0xff]
      %s641 = scalar_lea.vmem [#allocation2], 145
      %v642 = vld [vmem:[%s641] ss:$2 sm:$0xff]
      %s643 = scalar_lea.vmem [#allocation2], 193
      %v644 = vld [vmem:[%s643] ss:$2 sm:$0xff]
      %s645 = scalar_lea.vmem [#allocation2], 241
      %v646 = vld [vmem:[%s645] ss:$2 sm:$0xff]
      %s647 = scalar_lea.vmem [#allocation2], 289
      %v648 = vld [vmem:[%s647] ss:$2 sm:$0xff]
      %s649 = scalar_lea.vmem [#allocation2], 337
      %v650 = vld [vmem:[%s649] ss:$2 sm:$0xff]
      %v651 = vpack.c.bf16 %v638, %v636
      %v652 = vpack.c.bf16 %v642, %v640
      %v653 = vpack.c.bf16 %v646, %v644
      %v654 = vpack.c.bf16 %v650, %v648
      %s655 = scalar_lea.vmem %s1, 2
      %v656 = vld [vmem:[%s655] sm:$0x3]
      %v658 = vsel %vm526, %v651, 0
      %v661 = vsel %vm526, %v652, 0
      %v664 = vsel %vm526, %v653, 0
      %v667 = vsel %vm526, %v654, 0
      %vm669 = vcmask 1041408
      %v671 = vsel %vm669, %v656, 0
      %673 = vmatprep.subr.bf16.mxu0 0
      %674 = vmatpush1.bf16.msra.mxu0 %v671
      %675 = vmatprep.subr.bf16.mxu0 0
      %676 = vmatpush1.bf16.msra.mxu0 0
      %677 = vmatprep.subr.bf16.mxu0 0
      %678 = vmatpush1.bf16.msra.mxu0 0
      %679 = vmatprep.subr.bf16.mxu0 0
      %680 = vmatpush1.bf16.msra.mxu0 0
      %681 = vmatprep.subr.bf16.mxu0 0
      %682 = vmatpush1.bf16.msra.mxu0 0
      %683 = vmatprep.subr.bf16.mxu0 0
      %684 = vmatpush1.bf16.msra.mxu0 0
      %685 = vmatprep.subr.bf16.mxu0 0
      %686 = vmatpush1.bf16.msra.mxu0 0
      %687 = vmatprep.subr.bf16.mxu0 0
      %688 = vmatpush1.bf16.msra.mxu0 0
      %689 = vmatprep.subr.bf16.mxu0 0
      %690 = vmatpush1.bf16.msra.mxu0 0
      %691 = vmatprep.subr.bf16.mxu0 0
      %692 = vmatpush1.bf16.msra.mxu0 0
      %693 = vmatprep.subr.bf16.mxu0 0
      %694 = vmatpush1.bf16.msra.mxu0 0
      %695 = vmatprep.subr.bf16.mxu0 0
      %696 = vmatpush1.bf16.msra.mxu0 0
      %697 = vmatprep.subr.bf16.mxu0 0
      %698 = vmatpush1.bf16.msra.mxu0 0
      %699 = vmatprep.subr.bf16.mxu0 0
      %700 = vmatpush1.bf16.msra.mxu0 0
      %701 = vmatprep.subr.bf16.mxu0 0
      %702 = vmatpush1.bf16.msra.mxu0 0
      %703 = vmatprep.subr.bf16.mxu0 0
      %704 = vmatpush1.bf16.msra.mxu0 0
      %705 = vmatprep.mubr.bf16.mxu0 0
      %706 = vmatmul.mubr.bf16.gmra.mrb[0].mxu0 %v658
      %v707 = vpop.f32.mrb[0].mxu0
      %v708 = vadd.f32 0.0, %v707
      %v709 = vpop.f32.mrb[0].mxu0
      %v710 = vpop.f32.mrb[0].mxu0
      %v711 = vadd.f32 0.0, %v710
      %v712 = vpop.f32.mrb[0].mxu0
      %713 = vmatprep.mubr.bf16.mxu0 0
      %714 = vmatmul.mubr.bf16.gmra.mrb[0].mxu0 %v661
      %v715 = vpop.f32.mrb[0].mxu0
      %v716 = vadd.f32 0.0, %v715
      %v717 = vpop.f32.mrb[0].mxu0
      %v718 = vpop.f32.mrb[0].mxu0
      %v719 = vadd.f32 0.0, %v718
      %v720 = vpop.f32.mrb[0].mxu0
      %721 = vmatprep.mubr.bf16.mxu0 0
      %722 = vmatmul.mubr.bf16.gmra.mrb[0].mxu0 %v664
      %v723 = vpop.f32.mrb[0].mxu0
      %v724 = vadd.f32 0.0, %v723
      %v725 = vpop.f32.mrb[0].mxu0
      %v726 = vpop.f32.mrb[0].mxu0
      %v727 = vadd.f32 0.0, %v726
      %v728 = vpop.f32.mrb[0].mxu0
      %729 = vmatprep.mubr.bf16.mxu0 0
      %730 = vmatmul.mubr.bf16.gmra.mrb[0].mxu0 %v667
      %v731 = vpop.f32.mrb[0].mxu0
      %v732 = vadd.f32 0.0, %v731
      %v733 = vpop.f32.mrb[0].mxu0
      %v734 = vpop.f32.mrb[0].mxu0
      %v735 = vadd.f32 0.0, %v734
      %v736 = vpop.f32.mrb[0].mxu0
      %737 = vdwg.mxu0
      %v739 = vsel %vm526, %v630, 0
      %v742 = vsel %vm526, %v631, 0
      %v745 = vsel %vm526, %v632, 0
      %v748 = vsel %vm526, %v633, 0
      %v751 = vsel %vm669, %v634, 0
      %753 = vmatprep.subr.bf16.mxu0 0
      %754 = vmatpush1.bf16.msra.mxu0 %v751
      %755 = vmatprep.subr.bf16.mxu0 0
      %756 = vmatpush1.bf16.msra.mxu0 0
      %757 = vmatprep.subr.bf16.mxu0 0
      %758 = vmatpush1.bf16.msra.mxu0 0
      %759 = vmatprep.subr.bf16.mxu0 0
      %760 = vmatpush1.bf16.msra.mxu0 0
      %761 = vmatprep.subr.bf16.mxu0 0
      %762 = vmatpush1.bf16.msra.mxu0 0
      %763 = vmatprep.subr.bf16.mxu0 0
      %764 = vmatpush1.bf16.msra.mxu0 0
      %765 = vmatprep.subr.bf16.mxu0 0
      %766 = vmatpush1.bf16.msra.mxu0 0
      %767 = vmatprep.subr.bf16.mxu0 0
      %768 = vmatpush1.bf16.msra.mxu0 0
      %769 = vmatprep.subr.bf16.mxu0 0
      %770 = vmatpush1.bf16.msra.mxu0 0
      %771 = vmatprep.subr.bf16.mxu0 0
      %772 = vmatpush1.bf16.msra.mxu0 0
      %773 = vmatprep.subr.bf16.mxu0 0
      %774 = vmatpush1.bf16.msra.mxu0 0
      %775 = vmatprep.subr.bf16.mxu0 0
      %776 = vmatpush1.bf16.msra.mxu0 0
      %777 = vmatprep.subr.bf16.mxu0 0
      %778 = vmatpush1.bf16.msra.mxu0 0
      %779 = vmatprep.subr.bf16.mxu0 0
      %780 = vmatpush1.bf16.msra.mxu0 0
      %781 = vmatprep.subr.bf16.mxu0 0
      %782 = vmatpush1.bf16.msra.mxu0 0
      %783 = vmatprep.subr.bf16.mxu0 0
      %784 = vmatpush1.bf16.msra.mxu0 0
      %785 = vmatprep.mubr.bf16.mxu0 0
      %786 = vmatmul.mubr.bf16.gmra.mrb[0].mxu0 %v739
      %v787 = vpop.f32.mrb[0].mxu0
      %v788 = vadd.f32 %v708, %v787
      %v789 = vpop.f32.mrb[0].mxu0
      %v790 = vpop.f32.mrb[0].mxu0
      %v791 = vadd.f32 %v711, %v790
      %v792 = vpop.f32.mrb[0].mxu0
      %793 = vmatprep.mubr.bf16.mxu0 0
      %794 = vmatmul.mubr.bf16.gmra.mrb[0].mxu0 %v742
      %v795 = vpop.f32.mrb[0].mxu0
      %v796 = vadd.f32 %v716, %v795
      %v797 = vpop.f32.mrb[0].mxu0
      %v798 = vpop.f32.mrb[0].mxu0
      %v799 = vadd.f32 %v719, %v798
      %v800 = vpop.f32.mrb[0].mxu0
      %801 = vmatprep.mubr.bf16.mxu0 0
      %802 = vmatmul.mubr.bf16.gmra.mrb[0].mxu0 %v745
      %v803 = vpop.f32.mrb[0].mxu0
      %v804 = vadd.f32 %v724, %v803
      %v805 = vpop.f32.mrb[0].mxu0
      %v806 = vpop.f32.mrb[0].mxu0
      %v807 = vadd.f32 %v727, %v806
      %v808 = vpop.f32.mrb[0].mxu0
      %809 = vmatprep.mubr.bf16.mxu0 0
      %810 = vmatmul.mubr.bf16.gmra.mrb[0].mxu0 %v748
      %v811 = vpop.f32.mrb[0].mxu0
      %v812 = vadd.f32 %v732, %v811
      %v813 = vpop.f32.mrb[0].mxu0
      %v814 = vpop.f32.mrb[0].mxu0
      %v815 = vadd.f32 %v735, %v814
      %v816 = vpop.f32.mrb[0].mxu0
      %817 = vdwg.mxu0
      %s818 = scalar_lea.vmem [#allocation2], 2
      %v819 = vld [vmem:[%s818] ss:$2 sm:$0xff]
      %s820 = scalar_lea.vmem [#allocation2], 50
      %v821 = vld [vmem:[%s820] ss:$2 sm:$0xff]
      %s822 = scalar_lea.vmem [#allocation2], 98
      %v823 = vld [vmem:[%s822] ss:$2 sm:$0xff]
      %s824 = scalar_lea.vmem [#allocation2], 146
      %v825 = vld [vmem:[%s824] ss:$2 sm:$0xff]
      %s826 = scalar_lea.vmem [#allocation2], 194
      %v827 = vld [vmem:[%s826] ss:$2 sm:$0xff]
      %s828 = scalar_lea.vmem [#allocation2], 242
      %v829 = vld [vmem:[%s828] ss:$2 sm:$0xff]
      %s830 = scalar_lea.vmem [#allocation2], 290
      %v831 = vld [vmem:[%s830] ss:$2 sm:$0xff]
      %s832 = scalar_lea.vmem [#allocation2], 338
      %v833 = vld [vmem:[%s832] ss:$2 sm:$0xff]
      %v834 = vpack.c.bf16 %v821, %v819
      %v835 = vpack.c.bf16 %v825, %v823
      %v836 = vpack.c.bf16 %v829, %v827
      %v837 = vpack.c.bf16 %v833, %v831
      %s838 = scalar_lea.vmem %s1, 4
      %v839 = vld [vmem:[%s838] sm:$0x3]
      %v841 = vsel %vm526, %v834, 0
      %v844 = vsel %vm526, %v835, 0
      %v847 = vsel %vm526, %v836, 0
      %v850 = vsel %vm526, %v837, 0
      %v853 = vsel %vm669, %v839, 0
      %855 = vmatprep.subr.bf16.mxu0 0
      %856 = vmatpush1.bf16.msra.mxu0 %v853
      %857 = vmatprep.subr.bf16.mxu0 0
      %858 = vmatpush1.bf16.msra.mxu0 0
      %859 = vmatprep.subr.bf16.mxu0 0
      %860 = vmatpush1.bf16.msra.mxu0 0
      %861 = vmatprep.subr.bf16.mxu0 0
      %862 = vmatpush1.bf16.msra.mxu0 0
      %863 = vmatprep.subr.bf16.mxu0 0
      %864 = vmatpush1.bf16.msra.mxu0 0
      %865 = vmatprep.subr.bf16.mxu0 0
      %866 = vmatpush1.bf16.msra.mxu0 0
      %867 = vmatprep.subr.bf16.mxu0 0
      %868 = vmatpush1.bf16.msra.mxu0 0
      %869 = vmatprep.subr.bf16.mxu0 0
      %870 = vmatpush1.bf16.msra.mxu0 0
      %871 = vmatprep.subr.bf16.mxu0 0
      %872 = vmatpush1.bf16.msra.mxu0 0
      %873 = vmatprep.subr.bf16.mxu0 0
      %874 = vmatpush1.bf16.msra.mxu0 0
      %875 = vmatprep.subr.bf16.mxu0 0
      %876 = vmatpush1.bf16.msra.mxu0 0
      %877 = vmatprep.subr.bf16.mxu0 0
      %878 = vmatpush1.bf16.msra.mxu0 0
      %879 = vmatprep.subr.bf16.mxu0 0
      %880 = vmatpush1.bf16.msra.mxu0 0
      %881 = vmatprep.subr.bf16.mxu0 0
      %882 = vmatpush1.bf16.msra.mxu0 0
      %883 = vmatprep.subr.bf16.mxu0 0
      %884 = vmatpush1.bf16.msra.mxu0 0
      %885 = vmatprep.subr.bf16.mxu0 0
      %886 = vmatpush1.bf16.msra.mxu0 0
      %887 = vmatprep.mubr.bf16.mxu0 0
      %888 = vmatmul.mubr.bf16.gmra.mrb[0].mxu0 %v841
      %v889 = vpop.f32.mrb[0].mxu0
      %v890 = vadd.f32 0.0, %v889
      %v891 = vpop.f32.mrb[0].mxu0
      %v892 = vpop.f32.mrb[0].mxu0
      %v893 = vadd.f32 0.0, %v892
      %v894 = vpop.f32.mrb[0].mxu0
      %895 = vmatprep.mubr.bf16.mxu0 0
      %896 = vmatmul.mubr.bf16.gmra.mrb[0].mxu0 %v844
      %v897 = vpop.f32.mrb[0].mxu0
      %v898 = vadd.f32 0.0, %v897
      %v899 = vpop.f32.mrb[0].mxu0
      %v900 = vpop.f32.mrb[0].mxu0
      %v901 = vadd.f32 0.0, %v900
      %v902 = vpop.f32.mrb[0].mxu0
      %903 = vmatprep.mubr.bf16.mxu0 0
      %904 = vmatmul.mubr.bf16.gmra.mrb[0].mxu0 %v847
      %v905 = vpop.f32.mrb[0].mxu0
      %v906 = vadd.f32 0.0, %v905
      %v907 = vpop.f32.mrb[0].mxu0
      %v908 = vpop.f32.mrb[0].mxu0
      %v909 = vadd.f32 0.0, %v908
      %v910 = vpop.f32.mrb[0].mxu0
      %911 = vmatprep.mubr.bf16.mxu0 0
      %912 = vmatmul.mubr.bf16.gmra.mrb[0].mxu0 %v850
      %v913 = vpop.f32.mrb[0].mxu0
      %v914 = vadd.f32 0.0, %v913
      %v915 = vpop.f32.mrb[0].mxu0
      %v916 = vpop.f32.mrb[0].mxu0
      %v917 = vadd.f32 0.0, %v916
      %v918 = vpop.f32.mrb[0].mxu0
      %919 = vdwg.mxu0
      %v920 = vadd.f32 %v788, %v890
      %v921 = vadd.f32 %v791, %v893
      %v922 = vadd.f32 %v796, %v898
      %v923 = vadd.f32 %v799, %v901
      %v924 = vadd.f32 %v804, %v906
      %v925 = vadd.f32 %v807, %v909
      %v926 = vadd.f32 %v812, %v914
      %v927 = vadd.f32 %v815, %v917
      %v928 = vld [vmem:[%s582] ss:$2 sm:$0xff]
      %s929 = scalar_lea.vmem %s582, 48 [#allocation2]
      %v930 = vld [vmem:[%s929] ss:$2 sm:$0xff]
      %s931 = scalar_lea.vmem %s582, 96 [#allocation2]
      %v932 = vld [vmem:[%s931] ss:$2 sm:$0xff]
      %s933 = scalar_lea.vmem %s582, 144 [#allocation2]
      %v934 = vld [vmem:[%s933] ss:$2 sm:$0xff]
      %s935 = scalar_lea.vmem %s582, 192 [#allocation2]
      %v936 = vld [vmem:[%s935] ss:$2 sm:$0xff]
      %s937 = scalar_lea.vmem %s582, 240 [#allocation2]
      %v938 = vld [vmem:[%s937] ss:$2 sm:$0xff]
      %s939 = scalar_lea.vmem %s582, 288 [#allocation2]
      %v940 = vld [vmem:[%s939] ss:$2 sm:$0xff]
      %s941 = scalar_lea.vmem %s582, 336 [#allocation2]
      %v942 = vld [vmem:[%s941] ss:$2 sm:$0xff]
      %v943 = vpack.c.bf16 %v930, %v928
      %v944 = vpack.c.bf16 %v934, %v932
      %v945 = vpack.c.bf16 %v938, %v936
      %v946 = vpack.c.bf16 %v942, %v940
      %s947 = scalar_lea.vmem %s1, 6
      %v948 = vld [vmem:[%s947] sm:$0x3]
      %v950 = vsel %vm526, %v943, 0
      %v953 = vsel %vm526, %v944, 0
      %v956 = vsel %vm526, %v945, 0
      %v959 = vsel %vm526, %v946, 0
      %v962 = vsel %vm669, %v948, 0
      %964 = vmatprep.subr.bf16.mxu0 0
      %965 = vmatpush1.bf16.msra.mxu0 %v962
      %966 = vmatprep.subr.bf16.mxu0 0
      %967 = vmatpush1.bf16.msra.mxu0 0
      %968 = vmatprep.subr.bf16.mxu0 0
      %969 = vmatpush1.bf16.msra.mxu0 0
      %970 = vmatprep.subr.bf16.mxu0 0
      %971 = vmatpush1.bf16.msra.mxu0 0
      %972 = vmatprep.subr.bf16.mxu0 0
      %973 = vmatpush1.bf16.msra.mxu0 0
      %974 = vmatprep.subr.bf16.mxu0 0
      %975 = vmatpush1.bf16.msra.mxu0 0
      %976 = vmatprep.subr.bf16.mxu0 0
      %977 = vmatpush1.bf16.msra.mxu0 0
      %978 = vmatprep.subr.bf16.mxu0 0
      %979 = vmatpush1.bf16.msra.mxu0 0
      %980 = vmatprep.subr.bf16.mxu0 0
      %981 = vmatpush1.bf16.msra.mxu0 0
      %982 = vmatprep.subr.bf16.mxu0 0
      %983 = vmatpush1.bf16.msra.mxu0 0
      %984 = vmatprep.subr.bf16.mxu0 0
      %985 = vmatpush1.bf16.msra.mxu0 0
      %986 = vmatprep.subr.bf16.mxu0 0
      %987 = vmatpush1.bf16.msra.mxu0 0
      %988 = vmatprep.subr.bf16.mxu0 0
      %989 = vmatpush1.bf16.msra.mxu0 0
      %990 = vmatprep.subr.bf16.mxu0 0
      %991 = vmatpush1.bf16.msra.mxu0 0
      %992 = vmatprep.subr.bf16.mxu0 0
      %993 = vmatpush1.bf16.msra.mxu0 0
      %994 = vmatprep.subr.bf16.mxu0 0
      %995 = vmatpush1.bf16.msra.mxu0 0
      %996 = vmatprep.mubr.bf16.mxu0 0
      %997 = vmatmul.mubr.bf16.gmra.mrb[0].mxu0 %v950
      %v998 = vpop.f32.mrb[0].mxu0
      %v999 = vadd.f32 0.0, %v998
      %v1000 = vpop.f32.mrb[0].mxu0
      %v1001 = vpop.f32.mrb[0].mxu0
      %v1002 = vadd.f32 0.0, %v1001
      %v1003 = vpop.f32.mrb[0].mxu0
      %1004 = vmatprep.mubr.bf16.mxu0 0
      %1005 = vmatmul.mubr.bf16.gmra.mrb[0].mxu0 %v953
      %v1006 = vpop.f32.mrb[0].mxu0
      %v1007 = vadd.f32 0.0, %v1006
      %v1008 = vpop.f32.mrb[0].mxu0
      %v1009 = vpop.f32.mrb[0].mxu0
      %v1010 = vadd.f32 0.0, %v1009
      %v1011 = vpop.f32.mrb[0].mxu0
      %1012 = vmatprep.mubr.bf16.mxu0 0
      %1013 = vmatmul.mubr.bf16.gmra.mrb[0].mxu0 %v956
      %v1014 = vpop.f32.mrb[0].mxu0
      %v1015 = vadd.f32 0.0, %v1014
      %v1016 = vpop.f32.mrb[0].mxu0
      %v1017 = vpop.f32.mrb[0].mxu0
      %v1018 = vadd.f32 0.0, %v1017
      %v1019 = vpop.f32.mrb[0].mxu0
      %1020 = vmatprep.mubr.bf16.mxu0 0
      %1021 = vmatmul.mubr.bf16.gmra.mrb[0].mxu0 %v959
      %v1022 = vpop.f32.mrb[0].mxu0
      %v1023 = vadd.f32 0.0, %v1022
      %v1024 = vpop.f32.mrb[0].mxu0
      %v1025 = vpop.f32.mrb[0].mxu0
      %v1026 = vadd.f32 0.0, %v1025
      %v1027 = vpop.f32.mrb[0].mxu0
      %1028 = vdwg.mxu0
      %v1029 = vadd.f32 %v920, %v999
      %v1030 = vadd.f32 %v921, %v1002
      %v1031 = vadd.f32 %v922, %v1007
      %v1032 = vadd.f32 %v923, %v1010
      %v1033 = vadd.f32 %v924, %v1015
      %v1034 = vadd.f32 %v925, %v1018
      %v1035 = vadd.f32 %v926, %v1023
      %v1036 = vadd.f32 %v927, %v1026
      %s1037 = scalar_lea.vmem %s582, 1 [#allocation2]
      %v1038 = vld [vmem:[%s1037] ss:$2 sm:$0xff]
      %s1039 = scalar_lea.vmem %s582, 49 [#allocation2]
      %v1040 = vld [vmem:[%s1039] ss:$2 sm:$0xff]
      %s1041 = scalar_lea.vmem %s582, 97 [#allocation2]
      %v1042 = vld [vmem:[%s1041] ss:$2 sm:$0xff]
      %s1043 = scalar_lea.vmem %s582, 145 [#allocation2]
      %v1044 = vld [vmem:[%s1043] ss:$2 sm:$0xff]
      %s1045 = scalar_lea.vmem %s582, 193 [#allocation2]
      %v1046 = vld [vmem:[%s1045] ss:$2 sm:$0xff]
      %s1047 = scalar_lea.vmem %s582, 241 [#allocation2]
      %v1048 = vld [vmem:[%s1047] ss:$2 sm:$0xff]
      %s1049 = scalar_lea.vmem %s582, 289 [#allocation2]
      %v1050 = vld [vmem:[%s1049] ss:$2 sm:$0xff]
      %s1051 = scalar_lea.vmem %s582, 337 [#allocation2]
      %v1052 = vld [vmem:[%s1051] ss:$2 sm:$0xff]
      %v1053 = vpack.c.bf16 %v1040, %v1038
      %v1054 = vpack.c.bf16 %v1044, %v1042
      %v1055 = vpack.c.bf16 %v1048, %v1046
      %v1056 = vpack.c.bf16 %v1052, %v1050
      %s1057 = scalar_lea.vmem %s1, 8
      %v1058 = vld [vmem:[%s1057] sm:$0x3]
      %v1060 = vsel %vm526, %v1053, 0
      %v1063 = vsel %vm526, %v1054, 0
      %v1066 = vsel %vm526, %v1055, 0
      %v1069 = vsel %vm526, %v1056, 0
      %v1072 = vsel %vm669, %v1058, 0
      %1074 = vmatprep.subr.bf16.mxu0 0
      %1075 = vmatpush1.bf16.msra.mxu0 %v1072
      %1076 = vmatprep.subr.bf16.mxu0 0
      %1077 = vmatpush1.bf16.msra.mxu0 0
      %1078 = vmatprep.subr.bf16.mxu0 0
      %1079 = vmatpush1.bf16.msra.mxu0 0
      %1080 = vmatprep.subr.bf16.mxu0 0
      %1081 = vmatpush1.bf16.msra.mxu0 0
      %1082 = vmatprep.subr.bf16.mxu0 0
      %1083 = vmatpush1.bf16.msra.mxu0 0
      %1084 = vmatprep.subr.bf16.mxu0 0
      %1085 = vmatpush1.bf16.msra.mxu0 0
      %1086 = vmatprep.subr.bf16.mxu0 0
      %1087 = vmatpush1.bf16.msra.mxu0 0
      %1088 = vmatprep.subr.bf16.mxu0 0
      %1089 = vmatpush1.bf16.msra.mxu0 0
      %1090 = vmatprep.subr.bf16.mxu0 0
      %1091 = vmatpush1.bf16.msra.mxu0 0
      %1092 = vmatprep.subr.bf16.mxu0 0
      %1093 = vmatpush1.bf16.msra.mxu0 0
      %1094 = vmatprep.subr.bf16.mxu0 0
      %1095 = vmatpush1.bf16.msra.mxu0 0
      %1096 = vmatprep.subr.bf16.mxu0 0
      %1097 = vmatpush1.bf16.msra.mxu0 0
      %1098 = vmatprep.subr.bf16.mxu0 0
      %1099 = vmatpush1.bf16.msra.mxu0 0
      %1100 = vmatprep.subr.bf16.mxu0 0
      %1101 = vmatpush1.bf16.msra.mxu0 0
      %1102 = vmatprep.subr.bf16.mxu0 0
      %1103 = vmatpush1.bf16.msra.mxu0 0
      %1104 = vmatprep.subr.bf16.mxu0 0
      %1105 = vmatpush1.bf16.msra.mxu0 0
      %1106 = vmatprep.mubr.bf16.mxu0 0
      %1107 = vmatmul.mubr.bf16.gmra.mrb[0].mxu0 %v1060
      %v1108 = vpop.f32.mrb[0].mxu0
      %v1109 = vadd.f32 0.0, %v1108
      %v1110 = vpop.f32.mrb[0].mxu0
      %v1111 = vpop.f32.mrb[0].mxu0
      %v1112 = vadd.f32 0.0, %v1111
      %v1113 = vpop.f32.mrb[0].mxu0
      %1114 = vmatprep.mubr.bf16.mxu0 0
      %1115 = vmatmul.mubr.bf16.gmra.mrb[0].mxu0 %v1063
      %v1116 = vpop.f32.mrb[0].mxu0
      %v1117 = vadd.f32 0.0, %v1116
      %v1118 = vpop.f32.mrb[0].mxu0
      %v1119 = vpop.f32.mrb[0].mxu0
      %v1120 = vadd.f32 0.0, %v1119
      %v1121 = vpop.f32.mrb[0].mxu0
      %1122 = vmatprep.mubr.bf16.mxu0 0
      %1123 = vmatmul.mubr.bf16.gmra.mrb[0].mxu0 %v1066
      %v1124 = vpop.f32.mrb[0].mxu0
      %v1125 = vadd.f32 0.0, %v1124
      %v1126 = vpop.f32.mrb[0].mxu0
      %v1127 = vpop.f32.mrb[0].mxu0
      %v1128 = vadd.f32 0.0, %v1127
      %v1129 = vpop.f32.mrb[0].mxu0
      %1130 = vmatprep.mubr.bf16.mxu0 0
      %1131 = vmatmul.mubr.bf16.gmra.mrb[0].mxu0 %v1069
      %v1132 = vpop.f32.mrb[0].mxu0
      %v1133 = vadd.f32 0.0, %v1132
      %v1134 = vpop.f32.mrb[0].mxu0
      %v1135 = vpop.f32.mrb[0].mxu0
      %v1136 = vadd.f32 0.0, %v1135
      %v1137 = vpop.f32.mrb[0].mxu0
      %1138 = vdwg.mxu0
      %v1139 = vadd.f32 %v1029, %v1109
      %v1140 = vadd.f32 %v1030, %v1112
      %v1141 = vadd.f32 %v1031, %v1117
      %v1142 = vadd.f32 %v1032, %v1120
      %v1143 = vadd.f32 %v1033, %v1125
      %v1144 = vadd.f32 %v1034, %v1128
      %v1145 = vadd.f32 %v1035, %v1133
      %v1146 = vadd.f32 %v1036, %v1136
      %s1147 = scalar_lea.vmem %s582, 2 [#allocation2]
      %v1148 = vld [vmem:[%s1147] ss:$2 sm:$0xff]
      %s1149 = scalar_lea.vmem %s582, 50 [#allocation2]
      %v1150 = vld [vmem:[%s1149] ss:$2 sm:$0xff]
      %s1151 = scalar_lea.vmem %s582, 98 [#allocation2]
      %v1152 = vld [vmem:[%s1151] ss:$2 sm:$0xff]
      %s1153 = scalar_lea.vmem %s582, 146 [#allocation2]
      %v1154 = vld [vmem:[%s1153] ss:$2 sm:$0xff]
      %s1155 = scalar_lea.vmem %s582, 194 [#allocation2]
      %v1156 = vld [vmem:[%s1155] ss:$2 sm:$0xff]
      %s1157 = scalar_lea.vmem %s582, 242 [#allocation2]
      %v1158 = vld [vmem:[%s1157] ss:$2 sm:$0xff]
      %s1159 = scalar_lea.vmem %s582, 290 [#allocation2]
      %v1160 = vld [vmem:[%s1159] ss:$2 sm:$0xff]
      %s1161 = scalar_lea.vmem %s582, 338 [#allocation2]
      %v1162 = vld [vmem:[%s1161] ss:$2 sm:$0xff]
      %v1163 = vpack.c.bf16 %v1150, %v1148
      %v1164 = vpack.c.bf16 %v1154, %v1152
      %v1165 = vpack.c.bf16 %v1158, %v1156
      %v1166 = vpack.c.bf16 %v1162, %v1160
      %s1167 = scalar_lea.vmem %s1, 10
      %v1168 = vld [vmem:[%s1167] sm:$0x3]
      %v1170 = vsel %vm526, %v1163, 0
      %v1173 = vsel %vm526, %v1164, 0
      %v1176 = vsel %vm526, %v1165, 0
      %v1179 = vsel %vm526, %v1166, 0
      %v1182 = vsel %vm669, %v1168, 0
      %1184 = vmatprep.subr.bf16.mxu0 0
      %1185 = vmatpush1.bf16.msra.mxu0 %v1182
      %1186 = vmatprep.subr.bf16.mxu0 0
      %1187 = vmatpush1.bf16.msra.mxu0 0
      %1188 = vmatprep.subr.bf16.mxu0 0
      %1189 = vmatpush1.bf16.msra.mxu0 0
      %1190 = vmatprep.subr.bf16.mxu0 0
      %1191 = vmatpush1.bf16.msra.mxu0 0
      %1192 = vmatprep.subr.bf16.mxu0 0
      %1193 = vmatpush1.bf16.msra.mxu0 0
      %1194 = vmatprep.subr.bf16.mxu0 0
      %1195 = vmatpush1.bf16.msra.mxu0 0
      %1196 = vmatprep.subr.bf16.mxu0 0
      %1197 = vmatpush1.bf16.msra.mxu0 0
      %1198 = vmatprep.subr.bf16.mxu0 0
      %1199 = vmatpush1.bf16.msra.mxu0 0
      %1200 = vmatprep.subr.bf16.mxu0 0
      %1201 = vmatpush1.bf16.msra.mxu0 0
      %1202 = vmatprep.subr.bf16.mxu0 0
      %1203 = vmatpush1.bf16.msra.mxu0 0
      %1204 = vmatprep.subr.bf16.mxu0 0
      %1205 = vmatpush1.bf16.msra.mxu0 0
      %1206 = vmatprep.subr.bf16.mxu0 0
      %1207 = vmatpush1.bf16.msra.mxu0 0
      %1208 = vmatprep.subr.bf16.mxu0 0
      %1209 = vmatpush1.bf16.msra.mxu0 0
      %1210 = vmatprep.subr.bf16.mxu0 0
      %1211 = vmatpush1.bf16.msra.mxu0 0
      %1212 = vmatprep.subr.bf16.mxu0 0
      %1213 = vmatpush1.bf16.msra.mxu0 0
      %1214 = vmatprep.subr.bf16.mxu0 0
      %1215 = vmatpush1.bf16.msra.mxu0 0
      %1216 = vmatprep.mubr.bf16.mxu0 0
      %1217 = vmatmul.mubr.bf16.gmra.mrb[0].mxu0 %v1170
      %v1218 = vpop.f32.mrb[0].mxu0
      %v1219 = vadd.f32 0.0, %v1218
      %v1220 = vpop.f32.mrb[0].mxu0
      %v1221 = vpop.f32.mrb[0].mxu0
      %v1222 = vadd.f32 0.0, %v1221
      %v1223 = vpop.f32.mrb[0].mxu0
      %1224 = vmatprep.mubr.bf16.mxu0 0
      %1225 = vmatmul.mubr.bf16.gmra.mrb[0].mxu0 %v1173
      %v1226 = vpop.f32.mrb[0].mxu0
      %v1227 = vadd.f32 0.0, %v1226
      %v1228 = vpop.f32.mrb[0].mxu0
      %v1229 = vpop.f32.mrb[0].mxu0
      %v1230 = vadd.f32 0.0, %v1229
      %v1231 = vpop.f32.mrb[0].mxu0
      %1232 = vmatprep.mubr.bf16.mxu0 0
      %1233 = vmatmul.mubr.bf16.gmra.mrb[0].mxu0 %v1176
      %v1234 = vpop.f32.mrb[0].mxu0
      %v1235 = vadd.f32 0.0, %v1234
      %v1236 = vpop.f32.mrb[0].mxu0
      %v1237 = vpop.f32.mrb[0].mxu0
      %v1238 = vadd.f32 0.0, %v1237
      %v1239 = vpop.f32.mrb[0].mxu0
      %1240 = vmatprep.mubr.bf16.mxu0 0
      %1241 = vmatmul.mubr.bf16.gmra.mrb[0].mxu0 %v1179
      %v1242 = vpop.f32.mrb[0].mxu0
      %v1243 = vadd.f32 0.0, %v1242
      %v1244 = vpop.f32.mrb[0].mxu0
      %v1245 = vpop.f32.mrb[0].mxu0
      %v1246 = vadd.f32 0.0, %v1245
      %v1247 = vpop.f32.mrb[0].mxu0
      %1248 = vdwg.mxu0
      %v1249 = vadd.f32 %v1139, %v1219
      %v1250 = vadd.f32 %v1140, %v1222
      %v1251 = vadd.f32 %v1141, %v1227
      %v1252 = vadd.f32 %v1142, %v1230
      %v1253 = vadd.f32 %v1143, %v1235
      %v1254 = vadd.f32 %v1144, %v1238
      %v1255 = vadd.f32 %v1145, %v1243
      %v1256 = vadd.f32 %v1146, %v1246
      %s1257 = scalar_lea.vmem [#allocation2], 48
      %v1258 = vld [vmem:[%s1257] ss:$2 sm:$0xff]
      %s1259 = scalar_lea.vmem %s1257, 48 [#allocation2]
      %v1260 = vld [vmem:[%s1259] ss:$2 sm:$0xff]
      %s1261 = scalar_lea.vmem %s1257, 96 [#allocation2]
      %v1262 = vld [vmem:[%s1261] ss:$2 sm:$0xff]
      %s1263 = scalar_lea.vmem %s1257, 144 [#allocation2]
      %v1264 = vld [vmem:[%s1263] ss:$2 sm:$0xff]
      %s1265 = scalar_lea.vmem %s1257, 192 [#allocation2]
      %v1266 = vld [vmem:[%s1265] ss:$2 sm:$0xff]
      %s1267 = scalar_lea.vmem %s1257, 240 [#allocation2]
      %v1268 = vld [vmem:[%s1267] ss:$2 sm:$0xff]
      %s1269 = scalar_lea.vmem %s1257, 288 [#allocation2]
      %v1270 = vld [vmem:[%s1269] ss:$2 sm:$0xff]
      %s1271 = scalar_lea.vmem %s1257, 336 [#allocation2]
      %v1272 = vld [vmem:[%s1271] ss:$2 sm:$0xff]
      %v1273 = vpack.c.bf16 %v1260, %v1258
      %v1274 = vpack.c.bf16 %v1264, %v1262
      %v1275 = vpack.c.bf16 %v1268, %v1266
      %v1276 = vpack.c.bf16 %v1272, %v1270
      %s1277 = scalar_lea.vmem %s1, 12
      %v1278 = vld [vmem:[%s1277] sm:$0x3]
      %v1280 = vsel %vm526, %v1273, 0
      %v1283 = vsel %vm526, %v1274, 0
      %v1286 = vsel %vm526, %v1275, 0
      %v1289 = vsel %vm526, %v1276, 0
      %v1292 = vsel %vm669, %v1278, 0
      %1294 = vmatprep.subr.bf16.mxu0 0
      %1295 = vmatpush1.bf16.msra.mxu0 %v1292
      %1296 = vmatprep.subr.bf16.mxu0 0
      %1297 = vmatpush1.bf16.msra.mxu0 0
      %1298 = vmatprep.subr.bf16.mxu0 0
      %1299 = vmatpush1.bf16.msra.mxu0 0
      %1300 = vmatprep.subr.bf16.mxu0 0
      %1301 = vmatpush1.bf16.msra.mxu0 0
      %1302 = vmatprep.subr.bf16.mxu0 0
      %1303 = vmatpush1.bf16.msra.mxu0 0
      %1304 = vmatprep.subr.bf16.mxu0 0
      %1305 = vmatpush1.bf16.msra.mxu0 0
      %1306 = vmatprep.subr.bf16.mxu0 0
      %1307 = vmatpush1.bf16.msra.mxu0 0
      %1308 = vmatprep.subr.bf16.mxu0 0
      %1309 = vmatpush1.bf16.msra.mxu0 0
      %1310 = vmatprep.subr.bf16.mxu0 0
      %1311 = vmatpush1.bf16.msra.mxu0 0
      %1312 = vmatprep.subr.bf16.mxu0 0
      %1313 = vmatpush1.bf16.msra.mxu0 0
      %1314 = vmatprep.subr.bf16.mxu0 0
      %1315 = vmatpush1.bf16.msra.mxu0 0
      %1316 = vmatprep.subr.bf16.mxu0 0
      %1317 = vmatpush1.bf16.msra.mxu0 0
      %1318 = vmatprep.subr.bf16.mxu0 0
      %1319 = vmatpush1.bf16.msra.mxu0 0
      %1320 = vmatprep.subr.bf16.mxu0 0
      %1321 = vmatpush1.bf16.msra.mxu0 0
      %1322 = vmatprep.subr.bf16.mxu0 0
      %1323 = vmatpush1.bf16.msra.mxu0 0
      %1324 = vmatprep.subr.bf16.mxu0 0
      %1325 = vmatpush1.bf16.msra.mxu0 0
      %1326 = vmatprep.mubr.bf16.mxu0 0
      %1327 = vmatmul.mubr.bf16.gmra.mrb[0].mxu0 %v1280
      %v1328 = vpop.f32.mrb[0].mxu0
      %v1329 = vadd.f32 0.0, %v1328
      %v1330 = vpop.f32.mrb[0].mxu0
      %v1331 = vpop.f32.mrb[0].mxu0
      %v1332 = vadd.f32 0.0, %v1331
      %v1333 = vpop.f32.mrb[0].mxu0
      %1334 = vmatprep.mubr.bf16.mxu0 0
      %1335 = vmatmul.mubr.bf16.gmra.mrb[0].mxu0 %v1283
      %v1336 = vpop.f32.mrb[0].mxu0
      %v1337 = vadd.f32 0.0, %v1336
      %v1338 = vpop.f32.mrb[0].mxu0
      %v1339 = vpop.f32.mrb[0].mxu0
      %v1340 = vadd.f32 0.0, %v1339
      %v1341 = vpop.f32.mrb[0].mxu0
      %1342 = vmatprep.mubr.bf16.mxu0 0
      %1343 = vmatmul.mubr.bf16.gmra.mrb[0].mxu0 %v1286
      %v1344 = vpop.f32.mrb[0].mxu0
      %v1345 = vadd.f32 0.0, %v1344
      %v1346 = vpop.f32.mrb[0].mxu0
      %v1347 = vpop.f32.mrb[0].mxu0
      %v1348 = vadd.f32 0.0, %v1347
      %v1349 = vpop.f32.mrb[0].mxu0
      %1350 = vmatprep.mubr.bf16.mxu0 0
      %1351 = vmatmul.mubr.bf16.gmra.mrb[0].mxu0 %v1289
      %v1352 = vpop.f32.mrb[0].mxu0
      %v1353 = vadd.f32 0.0, %v1352
      %v1354 = vpop.f32.mrb[0].mxu0
      %v1355 = vpop.f32.mrb[0].mxu0
      %v1356 = vadd.f32 0.0, %v1355
      %v1357 = vpop.f32.mrb[0].mxu0
      %1358 = vdwg.mxu0
      %v1359 = vadd.f32 %v1249, %v1329
      %v1360 = vadd.f32 %v1250, %v1332
      %v1361 = vadd.f32 %v1251, %v1337
      %v1362 = vadd.f32 %v1252, %v1340
      %v1363 = vadd.f32 %v1253, %v1345
      %v1364 = vadd.f32 %v1254, %v1348
      %v1365 = vadd.f32 %v1255, %v1353
      %v1366 = vadd.f32 %v1256, %v1356
      %s1367 = scalar_lea.vmem %s1257, 1 [#allocation2]
      %v1368 = vld [vmem:[%s1367] ss:$2 sm:$0xff]
      %s1369 = scalar_lea.vmem %s1257, 49 [#allocation2]
      %v1370 = vld [vmem:[%s1369] ss:$2 sm:$0xff]
      %s1371 = scalar_lea.vmem %s1257, 97 [#allocation2]
      %v1372 = vld [vmem:[%s1371] ss:$2 sm:$0xff]
      %s1373 = scalar_lea.vmem %s1257, 145 [#allocation2]
      %v1374 = vld [vmem:[%s1373] ss:$2 sm:$0xff]
      %s1375 = scalar_lea.vmem %s1257, 193 [#allocation2]
      %v1376 = vld [vmem:[%s1375] ss:$2 sm:$0xff]
      %s1377 = scalar_lea.vmem %s1257, 241 [#allocation2]
      %v1378 = vld [vmem:[%s1377] ss:$2 sm:$0xff]
      %s1379 = scalar_lea.vmem %s1257, 289 [#allocation2]
      %v1380 = vld [vmem:[%s1379] ss:$2 sm:$0xff]
      %s1381 = scalar_lea.vmem %s1257, 337 [#allocation2]
      %v1382 = vld [vmem:[%s1381] ss:$2 sm:$0xff]
      %v1383 = vpack.c.bf16 %v1370, %v1368
      %v1384 = vpack.c.bf16 %v1374, %v1372
      %v1385 = vpack.c.bf16 %v1378, %v1376
      %v1386 = vpack.c.bf16 %v1382, %v1380
      %s1387 = scalar_lea.vmem %s1, 14
      %v1388 = vld [vmem:[%s1387] sm:$0x3]
      %v1390 = vsel %vm526, %v1383, 0
      %v1393 = vsel %vm526, %v1384, 0
      %v1396 = vsel %vm526, %v1385, 0
      %v1399 = vsel %vm526, %v1386, 0
      %v1402 = vsel %vm669, %v1388, 0
      %1404 = vmatprep.subr.bf16.mxu0 0
      %1405 = vmatpush1.bf16.msra.mxu0 %v1402
      %1406 = vmatprep.subr.bf16.mxu0 0
      %1407 = vmatpush1.bf16.msra.mxu0 0
      %1408 = vmatprep.subr.bf16.mxu0 0
      %1409 = vmatpush1.bf16.msra.mxu0 0
      %1410 = vmatprep.subr.bf16.mxu0 0
      %1411 = vmatpush1.bf16.msra.mxu0 0
      %1412 = vmatprep.subr.bf16.mxu0 0
      %1413 = vmatpush1.bf16.msra.mxu0 0
      %1414 = vmatprep.subr.bf16.mxu0 0
      %1415 = vmatpush1.bf16.msra.mxu0 0
      %1416 = vmatprep.subr.bf16.mxu0 0
      %1417 = vmatpush1.bf16.msra.mxu0 0
      %1418 = vmatprep.subr.bf16.mxu0 0
      %1419 = vmatpush1.bf16.msra.mxu0 0
      %1420 = vmatprep.subr.bf16.mxu0 0
      %1421 = vmatpush1.bf16.msra.mxu0 0
      %1422 = vmatprep.subr.bf16.mxu0 0
      %1423 = vmatpush1.bf16.msra.mxu0 0
      %1424 = vmatprep.subr.bf16.mxu0 0
      %1425 = vmatpush1.bf16.msra.mxu0 0
      %1426 = vmatprep.subr.bf16.mxu0 0
      %1427 = vmatpush1.bf16.msra.mxu0 0
      %1428 = vmatprep.subr.bf16.mxu0 0
      %1429 = vmatpush1.bf16.msra.mxu0 0
      %1430 = vmatprep.subr.bf16.mxu0 0
      %1431 = vmatpush1.bf16.msra.mxu0 0
      %1432 = vmatprep.subr.bf16.mxu0 0
      %1433 = vmatpush1.bf16.msra.mxu0 0
      %1434 = vmatprep.subr.bf16.mxu0 0
      %1435 = vmatpush1.bf16.msra.mxu0 0
      %1436 = vmatprep.mubr.bf16.mxu0 0
      %1437 = vmatmul.mubr.bf16.gmra.mrb[0].mxu0 %v1390
      %v1438 = vpop.f32.mrb[0].mxu0
      %v1439 = vadd.f32 0.0, %v1438
      %v1440 = vpop.f32.mrb[0].mxu0
      %v1441 = vpop.f32.mrb[0].mxu0
      %v1442 = vadd.f32 0.0, %v1441
      %v1443 = vpop.f32.mrb[0].mxu0
      %1444 = vmatprep.mubr.bf16.mxu0 0
      %1445 = vmatmul.mubr.bf16.gmra.mrb[0].mxu0 %v1393
      %v1446 = vpop.f32.mrb[0].mxu0
      %v1447 = vadd.f32 0.0, %v1446
      %v1448 = vpop.f32.mrb[0].mxu0
      %v1449 = vpop.f32.mrb[0].mxu0
      %v1450 = vadd.f32 0.0, %v1449
      %v1451 = vpop.f32.mrb[0].mxu0
      %1452 = vmatprep.mubr.bf16.mxu0 0
      %1453 = vmatmul.mubr.bf16.gmra.mrb[0].mxu0 %v1396
      %v1454 = vpop.f32.mrb[0].mxu0
      %v1455 = vadd.f32 0.0, %v1454
      %v1456 = vpop.f32.mrb[0].mxu0
      %v1457 = vpop.f32.mrb[0].mxu0
      %v1458 = vadd.f32 0.0, %v1457
      %v1459 = vpop.f32.mrb[0].mxu0
      %1460 = vmatprep.mubr.bf16.mxu0 0
      %1461 = vmatmul.mubr.bf16.gmra.mrb[0].mxu0 %v1399
      %v1462 = vpop.f32.mrb[0].mxu0
      %v1463 = vadd.f32 0.0, %v1462
      %v1464 = vpop.f32.mrb[0].mxu0
      %v1465 = vpop.f32.mrb[0].mxu0
      %v1466 = vadd.f32 0.0, %v1465
      %v1467 = vpop.f32.mrb[0].mxu0
      %1468 = vdwg.mxu0
      %v1469 = vadd.f32 %v1359, %v1439
      %v1470 = vadd.f32 %v1360, %v1442
      %v1471 = vadd.f32 %v1361, %v1447
      %v1472 = vadd.f32 %v1362, %v1450
      %v1473 = vadd.f32 %v1363, %v1455
      %v1474 = vadd.f32 %v1364, %v1458
      %v1475 = vadd.f32 %v1365, %v1463
      %v1476 = vadd.f32 %v1366, %v1466
      %s1477 = scalar_lea.vmem %s1257, 2 [#allocation2]
      %v1478 = vld [vmem:[%s1477] ss:$2 sm:$0xff]
      %s1479 = scalar_lea.vmem %s1257, 50 [#allocation2]
      %v1480 = vld [vmem:[%s1479] ss:$2 sm:$0xff]
      %s1481 = scalar_lea.vmem %s1257, 98 [#allocation2]
      %v1482 = vld [vmem:[%s1481] ss:$2 sm:$0xff]
      %s1483 = scalar_lea.vmem %s1257, 146 [#allocation2]
      %v1484 = vld [vmem:[%s1483] ss:$2 sm:$0xff]
      %s1485 = scalar_lea.vmem %s1257, 194 [#allocation2]
      %v1486 = vld [vmem:[%s1485] ss:$2 sm:$0xff]
      %s1487 = scalar_lea.vmem %s1257, 242 [#allocation2]
      %v1488 = vld [vmem:[%s1487] ss:$2 sm:$0xff]
      %s1489 = scalar_lea.vmem %s1257, 290 [#allocation2]
      %v1490 = vld [vmem:[%s1489] ss:$2 sm:$0xff]
      %s1491 = scalar_lea.vmem %s1257, 338 [#allocation2]
      %v1492 = vld [vmem:[%s1491] ss:$2 sm:$0xff]
      %v1493 = vpack.c.bf16 %v1480, %v1478
      %v1494 = vpack.c.bf16 %v1484, %v1482
      %v1495 = vpack.c.bf16 %v1488, %v1486
      %v1496 = vpack.c.bf16 %v1492, %v1490
      %s1497 = scalar_lea.vmem %s1, 16
      %v1498 = vld [vmem:[%s1497] sm:$0x3]
      %v1500 = vsel %vm526, %v1493, 0
      %v1503 = vsel %vm526, %v1494, 0
      %v1506 = vsel %vm526, %v1495, 0
      %v1509 = vsel %vm526, %v1496, 0
      %v1512 = vsel %vm669, %v1498, 0
      %1514 = vmatprep.subr.bf16.mxu0 0
      %1515 = vmatpush1.bf16.msra.mxu0 %v1512
      %1516 = vmatprep.subr.bf16.mxu0 0
      %1517 = vmatpush1.bf16.msra.mxu0 0
      %1518 = vmatprep.subr.bf16.mxu0 0
      %1519 = vmatpush1.bf16.msra.mxu0 0
      %1520 = vmatprep.subr.bf16.mxu0 0
      %1521 = vmatpush1.bf16.msra.mxu0 0
      %1522 = vmatprep.subr.bf16.mxu0 0
      %1523 = vmatpush1.bf16.msra.mxu0 0
      %1524 = vmatprep.subr.bf16.mxu0 0
      %1525 = vmatpush1.bf16.msra.mxu0 0
      %1526 = vmatprep.subr.bf16.mxu0 0
      %1527 = vmatpush1.bf16.msra.mxu0 0
      %1528 = vmatprep.subr.bf16.mxu0 0
      %1529 = vmatpush1.bf16.msra.mxu0 0
      %1530 = vmatprep.subr.bf16.mxu0 0
      %1531 = vmatpush1.bf16.msra.mxu0 0
      %1532 = vmatprep.subr.bf16.mxu0 0
      %1533 = vmatpush1.bf16.msra.mxu0 0
      %1534 = vmatprep.subr.bf16.mxu0 0
      %1535 = vmatpush1.bf16.msra.mxu0 0
      %1536 = vmatprep.subr.bf16.mxu0 0
      %1537 = vmatpush1.bf16.msra.mxu0 0
      %1538 = vmatprep.subr.bf16.mxu0 0
      %1539 = vmatpush1.bf16.msra.mxu0 0
      %1540 = vmatprep.subr.bf16.mxu0 0
      %1541 = vmatpush1.bf16.msra.mxu0 0
      %1542 = vmatprep.subr.bf16.mxu0 0
      %1543 = vmatpush1.bf16.msra.mxu0 0
      %1544 = vmatprep.subr.bf16.mxu0 0
      %1545 = vmatpush1.bf16.msra.mxu0 0
      %1546 = vmatprep.mubr.bf16.mxu0 0
      %1547 = vmatmul.mubr.bf16.gmra.mrb[0].mxu0 %v1500
      %v1548 = vpop.f32.mrb[0].mxu0
      %v1549 = vadd.f32 0.0, %v1548
      %v1550 = vpop.f32.mrb[0].mxu0
      %v1551 = vpop.f32.mrb[0].mxu0
      %v1552 = vadd.f32 0.0, %v1551
      %v1553 = vpop.f32.mrb[0].mxu0
      %1554 = vmatprep.mubr.bf16.mxu0 0
      %1555 = vmatmul.mubr.bf16.gmra.mrb[0].mxu0 %v1503
      %v1556 = vpop.f32.mrb[0].mxu0
      %v1557 = vadd.f32 0.0, %v1556
      %v1558 = vpop.f32.mrb[0].mxu0
      %v1559 = vpop.f32.mrb[0].mxu0
      %v1560 = vadd.f32 0.0, %v1559
      %v1561 = vpop.f32.mrb[0].mxu0
      %1562 = vmatprep.mubr.bf16.mxu0 0
      %1563 = vmatmul.mubr.bf16.gmra.mrb[0].mxu0 %v1506
      %v1564 = vpop.f32.mrb[0].mxu0
      %v1565 = vadd.f32 0.0, %v1564
      %v1566 = vpop.f32.mrb[0].mxu0
      %v1567 = vpop.f32.mrb[0].mxu0
      %v1568 = vadd.f32 0.0, %v1567
      %v1569 = vpop.f32.mrb[0].mxu0
      %1570 = vmatprep.mubr.bf16.mxu0 0
      %1571 = vmatmul.mubr.bf16.gmra.mrb[0].mxu0 %v1509
      %v1572 = vpop.f32.mrb[0].mxu0
      %v1573 = vadd.f32 0.0, %v1572
      %v1574 = vpop.f32.mrb[0].mxu0
      %v1575 = vpop.f32.mrb[0].mxu0
      %v1576 = vadd.f32 0.0, %v1575
      %v1577 = vpop.f32.mrb[0].mxu0
      %1578 = vdwg.mxu0
      %v1579 = vadd.f32 %v1469, %v1549
      %v1580 = vadd.f32 %v1470, %v1552
      %v1581 = vadd.f32 %v1471, %v1557
      %v1582 = vadd.f32 %v1472, %v1560
      %v1583 = vadd.f32 %v1473, %v1565
      %v1584 = vadd.f32 %v1474, %v1568
      %v1585 = vadd.f32 %v1475, %v1573
      %v1586 = vadd.f32 %v1476, %v1576
      %v1587 = vld [vmem:[%s4] sm:$0x1]
      %v1589 = vlaneseq
      %v1590 = vshrl.u32 %v1589, 7
      %v1591 = vsub.s32 0, %v1590
      %v1592 = vrot.slane %v1587, %v1591
      %v1594 = vmul.f32 %v1579, %v1592
      %v1595 = vmul.f32 %v1580, %v1592
      %v1596 = vmul.f32 %v1581, %v1592
      %v1597 = vmul.f32 %v1582, %v1592
      %v1598 = vmul.f32 %v1583, %v1592
      %v1599 = vmul.f32 %v1584, %v1592
      %v1600 = vmul.f32 %v1585, %v1592
      %v1601 = vmul.f32 %v1586, %v1592
      %v1602 = vld [vmem:[%s5] sm:$0x1]
      %v1604 = vlaneseq
      %v1605 = vshrl.u32 %v1604, 7
      %v1606 = vsub.s32 0, %v1605
      %v1607 = vrot.slane %v1602, %v1606
      %v1609 = vadd.f32 %v1594, %v1607
      %v1610 = vadd.f32 %v1595, %v1607
      %v1611 = vadd.f32 %v1596, %v1607
      %v1612 = vadd.f32 %v1597, %v1607
      %v1613 = vadd.f32 %v1598, %v1607
      %v1614 = vadd.f32 %v1599, %v1607
      %v1615 = vadd.f32 %v1600, %v1607
      %v1616 = vadd.f32 %v1601, %v1607
      %vm1617 = vcmp.ge.f32.partialorder %v1609, 0.0
      %vm1618 = vcmp.ge.f32.partialorder %v1610, 0.0
      %vm1619 = vcmp.ge.f32.partialorder %v1611, 0.0
      %vm1620 = vcmp.ge.f32.partialorder %v1612, 0.0
      %vm1621 = vcmp.ge.f32.partialorder %v1613, 0.0
      %vm1622 = vcmp.ge.f32.partialorder %v1614, 0.0
      %vm1623 = vcmp.ge.f32.partialorder %v1615, 0.0
      %vm1624 = vcmp.ge.f32.partialorder %v1616, 0.0
      %v1625 = vmul.f32 %v1609, 0.1
      %v1626 = vmul.f32 %v1610, 0.1
      %v1627 = vmul.f32 %v1611, 0.1
      %v1628 = vmul.f32 %v1612, 0.1
      %v1629 = vmul.f32 %v1613, 0.1
      %v1630 = vmul.f32 %v1614, 0.1
      %v1631 = vmul.f32 %v1615, 0.1
      %v1632 = vmul.f32 %v1616, 0.1
      %v1633 = vsel %vm1617, %v1609, %v1625
      %v1634 = vsel %vm1618, %v1610, %v1626
      %v1635 = vsel %vm1619, %v1611, %v1627
      %v1636 = vsel %vm1620, %v1612, %v1628
      %v1637 = vsel %vm1621, %v1613, %v1629
      %v1638 = vsel %vm1622, %v1614, %v1630
      %v1639 = vsel %vm1623, %v1615, %v1631
      %v1640 = vsel %vm1624, %v1616, %v1632
      %vm1641 = vcmask 64512
      %1642 = vst.msk [vmem:[%s313] sm:$0xff] %vm1641, %v1633
      %1643 = vst.msk [vmem:[%s313 + $0x8] sm:$0xff] %vm1641, %v1634
      %1644 = vst.msk [vmem:[%s313 + $0x10] sm:$0xff] %vm1641, %v1635
      %1645 = vst.msk [vmem:[%s313 + $0x18] sm:$0xff] %vm1641, %v1636
      %1646 = vst.msk [vmem:[%s313 + $0x20] sm:$0xff] %vm1641, %v1637
      %1647 = vst.msk [vmem:[%s313 + $0x28] sm:$0xff] %vm1641, %v1638
      %1648 = vst.msk [vmem:[%s313 + $0x30] sm:$0xff] %vm1641, %v1639
      %1649 = vst.msk [vmem:[%s313 + $0x38] sm:$0xff] %vm1641, %v1640
      %v1650 = vld [vmem:[%s1037] ss:$2 sm:$0xff]
      %v1651 = vld [vmem:[%s1039] ss:$2 sm:$0xff]
      %v1652 = vld [vmem:[%s1041] ss:$2 sm:$0xff]
      %v1653 = vld [vmem:[%s1043] ss:$2 sm:$0xff]
      %v1654 = vld [vmem:[%s1045] ss:$2 sm:$0xff]
      %v1655 = vld [vmem:[%s1047] ss:$2 sm:$0xff]
      %v1656 = vld [vmem:[%s1049] ss:$2 sm:$0xff]
      %v1657 = vld [vmem:[%s1051] ss:$2 sm:$0xff]
      %v1658 = vpack.c.bf16 %v1651, %v1650
      %v1659 = vpack.c.bf16 %v1653, %v1652
      %v1660 = vpack.c.bf16 %v1655, %v1654
      %v1661 = vpack.c.bf16 %v1657, %v1656
      %v1662 = vld [vmem:[%s6] sm:$0x3]
      %v1664 = vsel %vm526, %v1658, 0
      %v1667 = vsel %vm526, %v1659, 0
      %v1670 = vsel %vm526, %v1660, 0
      %v1673 = vsel %vm526, %v1661, 0
      %v1676 = vsel %vm669, %v1662, 0
      %1678 = vmatprep.subr.bf16.mxu0 0
      %1679 = vmatpush1.bf16.msra.mxu0 %v1676
      %1680 = vmatprep.subr.bf16.mxu0 0
      %1681 = vmatpush1.bf16.msra.mxu0 0
      %1682 = vmatprep.subr.bf16.mxu0 0
      %1683 = vmatpush1.bf16.msra.mxu0 0
      %1684 = vmatprep.subr.bf16.mxu0 0
      %1685 = vmatpush1.bf16.msra.mxu0 0
      %1686 = vmatprep.subr.bf16.mxu0 0
      %1687 = vmatpush1.bf16.msra.mxu0 0
      %1688 = vmatprep.subr.bf16.mxu0 0
      %1689 = vmatpush1.bf16.msra.mxu0 0
      %1690 = vmatprep.subr.bf16.mxu0 0
      %1691 = vmatpush1.bf16.msra.mxu0 0
      %1692 = vmatprep.subr.bf16.mxu0 0
      %1693 = vmatpush1.bf16.msra.mxu0 0
      %1694 = vmatprep.subr.bf16.mxu0 0
      %1695 = vmatpush1.bf16.msra.mxu0 0
      %1696 = vmatprep.subr.bf16.mxu0 0
      %1697 = vmatpush1.bf16.msra.mxu0 0
      %1698 = vmatprep.subr.bf16.mxu0 0
      %1699 = vmatpush1.bf16.msra.mxu0 0
      %1700 = vmatprep.subr.bf16.mxu0 0
      %1701 = vmatpush1.bf16.msra.mxu0 0
      %1702 = vmatprep.subr.bf16.mxu0 0
      %1703 = vmatpush1.bf16.msra.mxu0 0
      %1704 = vmatprep.subr.bf16.mxu0 0
      %1705 = vmatpush1.bf16.msra.mxu0 0
      %1706 = vmatprep.subr.bf16.mxu0 0
      %1707 = vmatpush1.bf16.msra.mxu0 0
      %1708 = vmatprep.subr.bf16.mxu0 0
      %1709 = vmatpush1.bf16.msra.mxu0 0
      %1710 = vmatprep.mubr.bf16.mxu0 0
      %1711 = vmatmul.mubr.bf16.gmra.mrb[0].mxu0 %v1664
      %v1712 = vpop.f32.mrb[0].mxu0
      %v1713 = vadd.f32 0.0, %v1712
      %v1714 = vpop.f32.mrb[0].mxu0
      %v1715 = vpop.f32.mrb[0].mxu0
      %v1716 = vadd.f32 0.0, %v1715
      %v1717 = vpop.f32.mrb[0].mxu0
      %1718 = vmatprep.mubr.bf16.mxu0 0
      %1719 = vmatmul.mubr.bf16.gmra.mrb[0].mxu0 %v1667
      %v1720 = vpop.f32.mrb[0].mxu0
      %v1721 = vadd.f32 0.0, %v1720
      %v1722 = vpop.f32.mrb[0].mxu0
      %v1723 = vpop.f32.mrb[0].mxu0
      %v1724 = vadd.f32 0.0, %v1723
      %v1725 = vpop.f32.mrb[0].mxu0
      %1726 = vmatprep.mubr.bf16.mxu0 0
      %1727 = vmatmul.mubr.bf16.gmra.mrb[0].mxu0 %v1670
      %v1728 = vpop.f32.mrb[0].mxu0
      %v1729 = vadd.f32 0.0, %v1728
      %v1730 = vpop.f32.mrb[0].mxu0
      %v1731 = vpop.f32.mrb[0].mxu0
      %v1732 = vadd.f32 0.0, %v1731
      %v1733 = vpop.f32.mrb[0].mxu0
      %1734 = vmatprep.mubr.bf16.mxu0 0
      %1735 = vmatmul.mubr.bf16.gmra.mrb[0].mxu0 %v1673
      %v1736 = vpop.f32.mrb[0].mxu0
      %v1737 = vadd.f32 0.0, %v1736
      %v1738 = vpop.f32.mrb[0].mxu0
      %v1739 = vpop.f32.mrb[0].mxu0
      %v1740 = vadd.f32 0.0, %v1739
      %v1741 = vpop.f32.mrb[0].mxu0
      %1742 = vdwg.mxu0
      %1743 = vst.msk [vmem:[%s318] sm:$0xff] %vm1641, %v1713
      %1744 = vst.msk [vmem:[%s318 + $0x8] sm:$0xff] %vm1641, %v1716
      %1745 = vst.msk [vmem:[%s318 + $0x10] sm:$0xff] %vm1641, %v1721
      %1746 = vst.msk [vmem:[%s318 + $0x18] sm:$0xff] %vm1641, %v1724
      %1747 = vst.msk [vmem:[%s318 + $0x20] sm:$0xff] %vm1641, %v1729
      %1748 = vst.msk [vmem:[%s318 + $0x28] sm:$0xff] %vm1641, %v1732
      %1749 = vst.msk [vmem:[%s318 + $0x30] sm:$0xff] %vm1641, %v1737
      %1750 = vst.msk [vmem:[%s318 + $0x38] sm:$0xff] %vm1641, %v1740
      %p1751 = scmp.lt.s32.totalorder %s20, 1
      %s1752 = scalar_select %p1751, %s20, 1
      %s1753 = smul.addr %s1752, 8
      %s1754 = smul.addr %s1753, 8
      %s1755 = scalar_lea.vmem %s7, %s1754
      %p1756 = scmp.lt.s32.totalorder %s20, 1
      %s1757 = scalar_select %p1756, %s20, 1
      %s1758 = smul.addr %s1757, 8
      %s1759 = smul.addr %s1758, 8
      %s1760 = scalar_lea.vmem %s8, %s1759
      // Predicated region
      $region49: #{basic_block_forward.2} parent=47 // pred_check
        %p1761 = pneg %p190
      $region50: #{basic_block_forward.2} parent=47 // pred_check_branch
        %1763 = sbr.rel (%p1761) target = $region52
      $region51: #{basic_block_forward.2} parent=47 // pred_region
        _
      $region52: #{basic_block_forward.2} parent=47 // pred_fallthru
        _
      // Predicated region
      $region53: #{basic_block_forward.2} parent=47 // pred_check
        %p1764 = pneg %p216
      $region54: #{basic_block_forward.2} parent=47 // pred_check_branch
        %1766 = sbr.rel (%p1764) target = $region56
      $region55: #{basic_block_forward.2} parent=47 // pred_region
        _
      $region56: #{basic_block_forward.2} parent=47 // pred_fallthru
        _
    $region48: #{basic_block_forward.2} parent=5 // pred_fallthru
      _
    %p1767 = scmp.le.s32.totalorder 2, %s15
    // Predicated region
    $region57: #{basic_block_forward.2} parent=5 // pred_check
      %p1768 = pneg %p1767
    $region58: #{basic_block_forward.2} parent=5 // pred_check_branch
      %1770 = sbr.rel (%p1768) target = $region60
    $region59: #{basic_block_forward.2} parent=5 // pred_region
      %s1771 = ssub.s32 %s15, 2
      // Predicated region
      $region61: #{basic_block_forward.2} parent=59 // pred_check
        %p1772 = pneg %p196
      $region62: #{basic_block_forward.2} parent=59 // pred_check_branch
        %1774 = sbr.rel (%p1772) target = $region64
      $region63: #{basic_block_forward.2} parent=59 // pred_region
        %p1775 = scmp.lt.s32.totalorder %s21, 1
        %s1776 = scalar_select %p1775, %s21, 1
        %s1777 = smul.addr %s1776, 8
        %s1778 = smul.addr %s1777, 8
        %s1779 = scalar_lea.vmem %s7, %s1778
      $region64: #{basic_block_forward.2} parent=59 // pred_fallthru
        _
      // Predicated region
      $region65: #{basic_block_forward.2} parent=59 // pred_check
        %p1780 = pneg %p222
      $region66: #{basic_block_forward.2} parent=59 // pred_check_branch
        %1782 = sbr.rel (%p1780) target = $region68
      $region67: #{basic_block_forward.2} parent=59 // pred_region
        %p1783 = scmp.lt.s32.totalorder %s21, 1
        %s1784 = scalar_select %p1783, %s21, 1
        %s1785 = smul.addr %s1784, 8
        %s1786 = smul.addr %s1785, 8
        %s1787 = scalar_lea.vmem %s8, %s1786
      $region68: #{basic_block_forward.2} parent=59 // pred_fallthru
        _
    $region60: #{basic_block_forward.2} parent=5 // pred_fallthru
      _
  $region6: #{basic_block_forward.2} parent=0 // loop_footer
    %s19 = sadd.s32 1, %s15
  $region7: #{basic_block_forward.2} parent=0 // loop_footer_branch
    %14 = sbr.rel target = $region3
  $region8: #{basic_block_forward.2} parent=0 // loop_exit
    _

</llo_original>
